<compile_context>
chip_gen: v7x
topology: tpu7x:2x2x1
jax: 0.10.0
libtpu: 0.0.40
codegen_flags: <defaults>
</compile_context>

<pallas_src>
import functools
import math

import jax
import jax.numpy as jnp
from jax.experimental import pallas as pl
from jax.experimental.pallas import tpu as pltpu

# ---- FastKAN RBF constants (fast-kan defaults) -------------------------------
NUM_GRIDS = 8
GRID_MIN, GRID_MAX = -2.0, 2.0
DENOM = (GRID_MAX - GRID_MIN) / (NUM_GRIDS - 1)
LN_EPS = 1e-5
BN_EPS = 1e-5
KSIZE = 3
PAD = 1
LANE = 128
MXU_DTYPE = jnp.bfloat16          # MXU operand dtype (f32 accumulation)

# compile-time constants for the 3-exp RBF formulation
_RBF_CENTER = (NUM_GRIDS - 1) / 2.0                       # 3.5
_RBF_CG = tuple(math.exp(-((g - _RBF_CENTER) ** 2)) for g in range(NUM_GRIDS))


def _round_up(x, m):
    return (x + m - 1) // m * m


def _pick_row_tile(rows):
    # Big tiles amortize the ~0.35us per-grid-step overhead; keep >=2 grid steps
    # so the "parallel" row axis can be sharded across both v7x TensorCores.
    for t in (1024, 512, 256):
        if rows >= 2 * t:
            return t
    return 256


# ---- Pallas kernel: fused FastKAN conv (im2col form) + BN(eval) + ReLU --------
def _kan_conv_bn_relu_kernel(x_ref, ln_g_ref, ln_b_ref, w_fused_ref, b_base_ref,
                             bn_scale_ref, bn_shift_ref, o_ref):
    x = x_ref[...].astype(jnp.float32)                        # (T, K)

    # --- base branch input: SiLU(x) ---
    silu = x * jax.nn.sigmoid(x)

    # --- spline branch: LayerNorm -> RBF basis (8 grids, only 3 exps total) ---
    mean = jnp.mean(x, axis=-1, keepdims=True)
    var = jnp.mean(jnp.square(x - mean), axis=-1, keepdims=True)
    xn = (x - mean) * jax.lax.rsqrt(var + LN_EPS)
    xn = xn * ln_g_ref[...] + ln_b_ref[...]                   # (T, K)

    u = (xn - GRID_MIN) * (1.0 / DENOM)                       # grid-index coords
    v = u - _RBF_CENTER
    e0 = jnp.exp(-(v * v))                                    # EUP
    rp = jnp.exp(v)                                           # EUP
    rn = jnp.exp(-v)                                          # EUP
    rp2 = rp * rp; rp3 = rp2 * rp; rp5 = rp3 * rp2; rp7 = rp5 * rp2
    rn2 = rn * rn; rn3 = rn2 * rn; rn5 = rn3 * rn2; rn7 = rn5 * rn2
    odd_pow = (rn7, rn5, rn3, rn, rp, rp3, rp5, rp7)          # exp(v)^(2g-7)

    # fused feature matrix: [SiLU(x) | rbf_0(xn) | ... | rbf_7(xn)] -> (T, 9K)
    feats = [silu]
    for g in range(NUM_GRIDS):                                # static unroll (VPU only)
        feats.append(e0 * odd_pow[g] * _RBF_CG[g])
    features = jnp.concatenate(feats, axis=-1)

    # --- single fused MXU contraction: (T, 9K) @ (9K, out_pad) ---
    acc = jnp.dot(features.astype(MXU_DTYPE), w_fused_ref[...],
                  preferred_element_type=jnp.float32)
    acc = acc + b_base_ref[...]

    # --- BatchNorm2d (eval mode, folded into scale/shift) + ReLU ---
    y = acc * bn_scale_ref[...] + bn_shift_ref[...]
    o_ref[...] = jnp.maximum(y, 0.0).astype(o_ref.dtype)


# ---- glue: im2col on NHWC (im2col-friendly inter-layer layout) ----------------
def _im2col_nhwc(x_nhwc, k=KSIZE, pad=PAD):
    """3x3 / stride-1 unfold on NHWC -> (B*H*W, k*k*C) patch rows.

    Feature ordering is (kh, kw, c); the synthetic parameters below are built
    with the same ordering, so this is equivalent to PyTorch's unfold up to a
    fixed permutation of the (synthetic) parameter indices.
    """
    B, H, W, C = x_nhwc.shape
    xp = jnp.pad(x_nhwc, ((0, 0), (pad, pad), (pad, pad), (0, 0)))
    cols = []
    for dh in range(k):
        for dw in range(k):
            cols.append(xp[:, dh:dh + H, dw:dw + W, :])       # (B, H, W, C)
    patches = jnp.concatenate(cols, axis=-1)                  # (B, H, W, k*k*C)
    return patches.reshape(B * H * W, k * k * C)


def _fastkan_conv_bn_relu(x_nhwc, p, out_ch):
    """One FastKANConvLayer(RBF, k=3, pad=1, stride=1) + BatchNorm2d(eval) + ReLU."""
    B, H, W, C = x_nhwc.shape
    K = C * KSIZE * KSIZE
    KF = (1 + NUM_GRIDS) * K
    out_pad = p["w_fused"].shape[1]

    patches = _im2col_nhwc(x_nhwc).astype(jnp.float32)        # (B*H*W, K)
    rows = B * H * W
    row_tile = _pick_row_tile(rows)
    pad_rows = (-rows) % row_tile
    if pad_rows:
        patches = jnp.pad(patches, ((0, pad_rows), (0, 0)))
    rows_p = rows + pad_rows

    out = pl.pallas_call(
        _kan_conv_bn_relu_kernel,
        out_shape=jax.ShapeDtypeStruct((rows_p, out_pad), jnp.float32),
        grid_spec=pltpu.PrefetchScalarGridSpec(
            num_scalar_prefetch=0,
            grid=(rows_p // row_tile,),
            in_specs=[
                pl.BlockSpec((row_tile, K), lambda i: (i, 0)),     # patch rows
                pl.BlockSpec((1, K), lambda i: (0, 0)),            # LN gamma
                pl.BlockSpec((1, K), lambda i: (0, 0)),            # LN beta
                pl.BlockSpec((KF, out_pad), lambda i: (0, 0)),     # fused W (bf16)
                pl.BlockSpec((1, out_pad), lambda i: (0, 0)),      # base bias
                pl.BlockSpec((1, out_pad), lambda i: (0, 0)),      # BN scale
                pl.BlockSpec((1, out_pad), lambda i: (0, 0)),      # BN shift
            ],
            out_specs=pl.BlockSpec((row_tile, out_pad), lambda i: (i, 0)),
        ),
        compiler_params=pltpu.CompilerParams(
            dimension_semantics=("parallel",),
            vmem_limit_bytes=32 * 1024 * 1024),
    )(patches, p["ln_g"], p["ln_b"], p["w_fused"], p["b_base"],
      p["bn_scale"], p["bn_shift"])

    out = out[:rows, :out_ch]                                 # drop row / lane padding
    return out.reshape(B, H, W, out_ch)                       # stay NHWC between layers


# ---- parameter construction (deterministic, synthetic) ------------------------
def _make_layer_params(key, in_ch, out_ch):
    K = in_ch * KSIZE * KSIZE
    out_pad = _round_up(out_ch, LANE)
    pad_c = out_pad - out_ch
    ks = jax.random.split(key, 8)
    ln_g = 1.0 + 0.05 * jax.random.normal(ks[0], (1, K), jnp.float32)
    ln_b = 0.05 * jax.random.normal(ks[1], (1, K), jnp.float32)
    w_base = jax.random.normal(ks[2], (K, out_ch), jnp.float32) / jnp.sqrt(K)
    b_base = 0.05 * jax.random.normal(ks[3], (1, out_ch), jnp.float32)
    w_spline = 0.1 * jax.random.normal(ks[4], (NUM_GRIDS, K, out_ch), jnp.float32)
    # BatchNorm2d params + running stats folded into scale/shift (eval mode).
    gamma = 1.0 + 0.05 * jax.random.normal(ks[5], (1, out_ch), jnp.float32)
    beta = 0.05 * jax.random.normal(ks[6], (1, out_ch), jnp.float32)
    run_mean = 0.05 * jax.random.normal(ks[7], (1, out_ch), jnp.float32)
    run_var = jnp.ones((1, out_ch), jnp.float32)
    bn_scale = gamma / jnp.sqrt(run_var + BN_EPS)
    bn_shift = beta - run_mean * bn_scale
    # Fuse base + 8 spline matmuls into one (9K, out) contraction; lane-pad the
    # output channel dimension to a multiple of 128 (lane-dense stores, full MXU N).
    w_fused = jnp.concatenate([w_base] + [w_spline[g] for g in range(NUM_GRIDS)],
                              axis=0)                          # (9K, out_ch)
    w_fused = jnp.pad(w_fused, ((0, 0), (0, pad_c))).astype(MXU_DTYPE)
    b_base = jnp.pad(b_base, ((0, 0), (0, pad_c)))
    bn_scale = jnp.pad(bn_scale, ((0, 0), (0, pad_c)))
    bn_shift = jnp.pad(bn_shift, ((0, 0), (0, pad_c)))
    return dict(ln_g=ln_g, ln_b=ln_b, w_fused=w_fused, b_base=b_base,
                bn_scale=bn_scale, bn_shift=bn_shift)


def make_double_conv_params(key, in_channels, out_channels):
    k1, k2 = jax.random.split(key)
    mid = out_channels // 2
    return {"layer1": _make_layer_params(k1, in_channels, mid),
            "layer2": _make_layer_params(k2, mid, out_channels)}


@functools.partial(jax.jit, static_argnames=("mid_ch", "out_ch"))
def double_conv_forward(x_nchw, params, *, mid_ch, out_ch):
    # NCHW <-> NHWC transposes only at the module boundary; the intermediate
    # activation stays in the im2col-friendly NHWC layout.
    x = jnp.transpose(x_nchw, (0, 2, 3, 1))                   # NCHW -> NHWC
    h = _fastkan_conv_bn_relu(x, params["layer1"], mid_ch)
    y = _fastkan_conv_bn_relu(h, params["layer2"], out_ch)
    return jnp.transpose(y, (0, 3, 1, 2))                     # NHWC -> NCHW


# ---- main ----------------------------------------------------------------------
if __name__ == "__main__":
    key = jax.random.PRNGKey(0)
    kx, kp = jax.random.split(key)

    B, IN_CH, OUT_CH, H, W = 2, 4, 8, 16, 16
    x = jax.random.normal(kx, (B, IN_CH, H, W), jnp.float32)
    params = make_double_conv_params(kp, IN_CH, OUT_CH)

    y = double_conv_forward(x, params, mid_ch=OUT_CH // 2, out_ch=OUT_CH)
    y = jax.block_until_ready(y)

    assert y.shape == (B, OUT_CH, H, W), y.shape
    assert bool(jnp.all(jnp.isfinite(y)))
    assert bool(jnp.all(y >= 0.0))  # ReLU epilogue
    print("KERNEL_OK")
</pallas_src>

<mosaic_0001>
module attributes {stable_mosaic.version = 11 : i64} {
  func.func @_kan_conv_bn_relu_kernel(%arg0: i32, %arg1: memref<256x36xf32, #tpu.memory_space<vmem>>, %arg2: memref<1x36xf32, #tpu.memory_space<vmem>>, %arg3: memref<1x36xf32, #tpu.memory_space<vmem>>, %arg4: memref<324x128xbf16, #tpu.memory_space<vmem>>, %arg5: memref<1x128xf32, #tpu.memory_space<vmem>>, %arg6: memref<1x128xf32, #tpu.memory_space<vmem>>, %arg7: memref<1x128xf32, #tpu.memory_space<vmem>>, %arg8: memref<256x128xf32, #tpu.memory_space<vmem>>) attributes {dimension_semantics = [#tpu.dimension_semantics<parallel>], iteration_bounds = array<i64: 2>, scalar_prefetch = 0 : i64, scratch_operands = 0 : i64, tpu.core_type = #tpu.core_type<tc>, window_params = [{transform_indices = @transform_0, window_bounds = array<i64: 256, 36>}, {pipeline_mode = #tpu.pipeline_mode<synchronous>, transform_indices = @transform_1, window_bounds = array<i64: 1, 36>}, {pipeline_mode = #tpu.pipeline_mode<synchronous>, transform_indices = @transform_2, window_bounds = array<i64: 1, 36>}, {pipeline_mode = #tpu.pipeline_mode<synchronous>, transform_indices = @transform_3, window_bounds = array<i64: 324, 128>}, {pipeline_mode = #tpu.pipeline_mode<synchronous>, transform_indices = @transform_4, window_bounds = array<i64: 1, 128>}, {pipeline_mode = #tpu.pipeline_mode<synchronous>, transform_indices = @transform_5, window_bounds = array<i64: 1, 128>}, {pipeline_mode = #tpu.pipeline_mode<synchronous>, transform_indices = @transform_6, window_bounds = array<i64: 1, 128>}, {transform_indices = @transform_7, window_bounds = array<i64: 256, 128>}]} {
    %c0 = arith.constant 0 : index
    %c0_0 = arith.constant 0 : index
    %0 = vector.load %arg1[%c0, %c0_0] : memref<256x36xf32, #tpu.memory_space<vmem>>, vector<256x36xf32>
    %1 = arith.negf %0 : vector<256x36xf32>
    %2 = math.exp %1 : vector<256x36xf32>
    %cst = arith.constant 1.000000e+00 : f32
    %3 = vector.broadcast %cst : f32 to vector<256x36xf32>
    %4 = arith.addf %3, %2 : vector<256x36xf32>
    %5 = arith.divf %3, %4 : vector<256x36xf32>
    %6 = arith.mulf %0, %5 : vector<256x36xf32>
    %cst_1 = arith.constant dense<0.000000e+00> : vector<256xf32>
    %7 = vector.multi_reduction <add>, %0, %cst_1 [1] : vector<256x36xf32> to vector<256xf32>
    %8 = vector.shape_cast %7 : vector<256xf32> to vector<256x1xf32>
    %cst_2 = arith.constant 3.600000e+01 : f32
    %9 = vector.broadcast %cst_2 : f32 to vector<256x1xf32>
    %10 = arith.divf %8, %9 : vector<256x1xf32>
    %11 = vector.broadcast %10 : vector<256x1xf32> to vector<256x36xf32>
    %12 = arith.subf %0, %11 : vector<256x36xf32>
    %13 = arith.mulf %12, %12 : vector<256x36xf32>
    %cst_3 = arith.constant dense<0.000000e+00> : vector<256xf32>
    %14 = vector.multi_reduction <add>, %13, %cst_3 [1] : vector<256x36xf32> to vector<256xf32>
    %15 = vector.shape_cast %14 : vector<256xf32> to vector<256x1xf32>
    %cst_4 = arith.constant 3.600000e+01 : f32
    %16 = vector.broadcast %cst_4 : f32 to vector<256x1xf32>
    %17 = arith.divf %15, %16 : vector<256x1xf32>
    %18 = vector.broadcast %10 : vector<256x1xf32> to vector<256x36xf32>
    %19 = arith.subf %0, %18 : vector<256x36xf32>
    %cst_5 = arith.constant 9.99999974E-6 : f32
    %20 = vector.broadcast %cst_5 : f32 to vector<256x1xf32>
    %21 = arith.addf %17, %20 : vector<256x1xf32>
    %22 = math.rsqrt %21 : vector<256x1xf32>
    %23 = vector.broadcast %22 : vector<256x1xf32> to vector<256x36xf32>
    %24 = arith.mulf %19, %23 : vector<256x36xf32>
    %c0_6 = arith.constant 0 : index
    %c0_7 = arith.constant 0 : index
    %25 = vector.load %arg2[%c0_6, %c0_7] : memref<1x36xf32, #tpu.memory_space<vmem>>, vector<1x36xf32>
    %26 = vector.broadcast %25 : vector<1x36xf32> to vector<256x36xf32>
    %27 = arith.mulf %24, %26 : vector<256x36xf32>
    %c0_8 = arith.constant 0 : index
    %c0_9 = arith.constant 0 : index
    %28 = vector.load %arg3[%c0_8, %c0_9] : memref<1x36xf32, #tpu.memory_space<vmem>>, vector<1x36xf32>
    %29 = vector.broadcast %28 : vector<1x36xf32> to vector<256x36xf32>
    %30 = arith.addf %27, %29 : vector<256x36xf32>
    %cst_10 = arith.constant -2.000000e+00 : f32
    %31 = vector.broadcast %cst_10 : f32 to vector<256x36xf32>
    %32 = arith.subf %30, %31 : vector<256x36xf32>
    %cst_11 = arith.constant 1.750000e+00 : f32
    %33 = vector.broadcast %cst_11 : f32 to vector<256x36xf32>
    %34 = arith.mulf %32, %33 : vector<256x36xf32>
    %cst_12 = arith.constant 3.500000e+00 : f32
    %35 = vector.broadcast %cst_12 : f32 to vector<256x36xf32>
    %36 = arith.subf %34, %35 : vector<256x36xf32>
    %37 = arith.mulf %36, %36 : vector<256x36xf32>
    %cst_13 = arith.constant 0.000000e+00 : f32
    %38 = vector.broadcast %cst_13 : f32 to vector<256x36xf32>
    %39 = arith.subf %38, %37 : vector<256x36xf32>
    %40 = math.exp %39 : vector<256x36xf32>
    %41 = math.exp %36 : vector<256x36xf32>
    %cst_14 = arith.constant 0.000000e+00 : f32
    %42 = vector.broadcast %cst_14 : f32 to vector<256x36xf32>
    %43 = arith.subf %42, %36 : vector<256x36xf32>
    %44 = math.exp %43 : vector<256x36xf32>
    %45 = arith.mulf %41, %41 : vector<256x36xf32>
    %46 = arith.mulf %45, %41 : vector<256x36xf32>
    %47 = arith.mulf %46, %45 : vector<256x36xf32>
    %48 = arith.mulf %47, %45 : vector<256x36xf32>
    %49 = arith.mulf %44, %44 : vector<256x36xf32>
    %50 = arith.mulf %49, %44 : vector<256x36xf32>
    %51 = arith.mulf %50, %49 : vector<256x36xf32>
    %52 = arith.mulf %51, %49 : vector<256x36xf32>
    %53 = arith.mulf %40, %52 : vector<256x36xf32>
    %cst_15 = arith.constant 4.7851172E-6 : f32
    %54 = vector.broadcast %cst_15 : f32 to vector<256x36xf32>
    %55 = arith.mulf %53, %54 : vector<256x36xf32>
    %56 = arith.mulf %40, %51 : vector<256x36xf32>
    %cst_16 = arith.constant 0.00193045416 : f32
    %57 = vector.broadcast %cst_16 : f32 to vector<256x36xf32>
    %58 = arith.mulf %56, %57 : vector<256x36xf32>
    %59 = arith.mulf %40, %50 : vector<256x36xf32>
    %cst_17 = arith.constant 0.105399221 : f32
    %60 = vector.broadcast %cst_17 : f32 to vector<256x36xf32>
    %61 = arith.mulf %59, %60 : vector<256x36xf32>
    %62 = arith.mulf %40, %44 : vector<256x36xf32>
    %cst_18 = arith.constant 0.778800785 : f32
    %63 = vector.broadcast %cst_18 : f32 to vector<256x36xf32>
    %64 = arith.mulf %62, %63 : vector<256x36xf32>
    %65 = arith.mulf %40, %41 : vector<256x36xf32>
    %cst_19 = arith.constant 0.778800785 : f32
    %66 = vector.broadcast %cst_19 : f32 to vector<256x36xf32>
    %67 = arith.mulf %65, %66 : vector<256x36xf32>
    %68 = arith.mulf %40, %46 : vector<256x36xf32>
    %cst_20 = arith.constant 0.105399221 : f32
    %69 = vector.broadcast %cst_20 : f32 to vector<256x36xf32>
    %70 = arith.mulf %68, %69 : vector<256x36xf32>
    %71 = arith.mulf %40, %47 : vector<256x36xf32>
    %cst_21 = arith.constant 0.00193045416 : f32
    %72 = vector.broadcast %cst_21 : f32 to vector<256x36xf32>
    %73 = arith.mulf %71, %72 : vector<256x36xf32>
    %74 = arith.mulf %40, %48 : vector<256x36xf32>
    %cst_22 = arith.constant 4.7851172E-6 : f32
    %75 = vector.broadcast %cst_22 : f32 to vector<256x36xf32>
    %76 = arith.mulf %74, %75 : vector<256x36xf32>
    %77 = tpu.concatenate %6, %55, %58, %61, %64, %67, %70, %73, %76 in 1 : vector<256x36xf32>, vector<256x36xf32>, vector<256x36xf32>, vector<256x36xf32>, vector<256x36xf32>, vector<256x36xf32>, vector<256x36xf32>, vector<256x36xf32>, vector<256x36xf32> -> vector<256x324xf32>
    %78 = arith.truncf %77 : vector<256x324xf32> to vector<256x324xbf16>
    %c0_23 = arith.constant 0 : index
    %c0_24 = arith.constant 0 : index
    %79 = vector.load %arg4[%c0_23, %c0_24] : memref<324x128xbf16, #tpu.memory_space<vmem>>, vector<324x128xbf16>
    %cst_25 = arith.constant dense<0.000000e+00> : vector<256x128xf32>
    %80 = tpu.matmul %78, %79, %cst_25 {dimension_numbers = #tpu.dot_dimension_numbers<[1], [0], [0], [1], [0, 0, 1, 1], [], []>} : vector<256x324xbf16>, vector<324x128xbf16>, vector<256x128xf32> -> vector<256x128xf32>
    %c0_26 = arith.constant 0 : index
    %c0_27 = arith.constant 0 : index
    %81 = vector.load %arg5[%c0_26, %c0_27] : memref<1x128xf32, #tpu.memory_space<vmem>>, vector<1x128xf32>
    %82 = vector.broadcast %81 : vector<1x128xf32> to vector<256x128xf32>
    %83 = arith.addf %80, %82 : vector<256x128xf32>
    %c0_28 = arith.constant 0 : index
    %c0_29 = arith.constant 0 : index
    %84 = vector.load %arg6[%c0_28, %c0_29] : memref<1x128xf32, #tpu.memory_space<vmem>>, vector<1x128xf32>
    %85 = vector.broadcast %84 : vector<1x128xf32> to vector<256x128xf32>
    %86 = arith.mulf %83, %85 : vector<256x128xf32>
    %c0_30 = arith.constant 0 : index
    %c0_31 = arith.constant 0 : index
    %87 = vector.load %arg7[%c0_30, %c0_31] : memref<1x128xf32, #tpu.memory_space<vmem>>, vector<1x128xf32>
    %88 = vector.broadcast %87 : vector<1x128xf32> to vector<256x128xf32>
    %89 = arith.addf %86, %88 : vector<256x128xf32>
    %cst_32 = arith.constant 0.000000e+00 : f32
    %90 = vector.broadcast %cst_32 : f32 to vector<256x128xf32>
    %91 = arith.maximumf %89, %90 : vector<256x128xf32>
    %c0_33 = arith.constant 0 : index
    %c0_34 = arith.constant 0 : index
    %92 = vector.load %arg8[%c0_33, %c0_34] : memref<256x128xf32, #tpu.memory_space<vmem>>, vector<256x128xf32>
    tpu.vector_store %arg8[%c0_33, %c0_34], %91 {strides = array<i32>} : memref<256x128xf32, #tpu.memory_space<vmem>>, vector<256x128xf32>,
    return
  }
  func.func @transform_0(%arg0: i32) -> (i32, i32) {
    %c0_i32 = arith.constant 0 : i32
    %c0_i32_0 = arith.constant 0 : i32
    return %arg0, %c0_i32 : i32, i32
  }
  func.func @transform_1(%arg0: i32) -> (i32, i32) {
    %c0_i32 = arith.constant 0 : i32
    %c0_i32_0 = arith.constant 0 : i32
    %c0_i32_1 = arith.constant 0 : i32
    return %c0_i32, %c0_i32_0 : i32, i32
  }
  func.func @transform_2(%arg0: i32) -> (i32, i32) {
    %c0_i32 = arith.constant 0 : i32
    %c0_i32_0 = arith.constant 0 : i32
    %c0_i32_1 = arith.constant 0 : i32
    return %c0_i32, %c0_i32_0 : i32, i32
  }
  func.func @transform_3(%arg0: i32) -> (i32, i32) {
    %c0_i32 = arith.constant 0 : i32
    %c0_i32_0 = arith.constant 0 : i32
    %c0_i32_1 = arith.constant 0 : i32
    return %c0_i32, %c0_i32_0 : i32, i32
  }
  func.func @transform_4(%arg0: i32) -> (i32, i32) {
    %c0_i32 = arith.constant 0 : i32
    %c0_i32_0 = arith.constant 0 : i32
    %c0_i32_1 = arith.constant 0 : i32
    return %c0_i32, %c0_i32_0 : i32, i32
  }
  func.func @transform_5(%arg0: i32) -> (i32, i32) {
    %c0_i32 = arith.constant 0 : i32
    %c0_i32_0 = arith.constant 0 : i32
    %c0_i32_1 = arith.constant 0 : i32
    return %c0_i32, %c0_i32_0 : i32, i32
  }
  func.func @transform_6(%arg0: i32) -> (i32, i32) {
    %c0_i32 = arith.constant 0 : i32
    %c0_i32_0 = arith.constant 0 : i32
    %c0_i32_1 = arith.constant 0 : i32
    return %c0_i32, %c0_i32_0 : i32, i32
  }
  func.func @transform_7(%arg0: i32) -> (i32, i32) {
    %c0_i32 = arith.constant 0 : i32
    %c0_i32_0 = arith.constant 0 : i32
    return %arg0, %c0_i32 : i32, i32
  }
}

</mosaic_0001>

<llo_original>
// kernel: double_conv_forward.2
$region0: #{double_conv_forward.2}
  #allocation0 [shape = 'u32[]', space=smem, size = 0x4, offset = 0x4, fixed_abs, tag = 'smem constant byte address 0x4 - core index']
  #allocation1 [shape = 'u32[144,128]{1,0:T(1,128)}', space=vmem, size = 0x12000, scoped, tag = 'internal scratch']
  %s0 = inlined_call_operand.vmem [shape: f32[512,36], index: 0, kind: input, shape index: {}]
  %s1 = inlined_call_operand.vmem [shape: f32[1,36], index: 1, kind: input, shape index: {}]
  %s2 = inlined_call_operand.vmem [shape: f32[1,36], index: 2, kind: input, shape index: {}]
  %s3 = inlined_call_operand.vmem [shape: bf16[324,128], index: 3, kind: input, shape index: {}]
  %s4 = inlined_call_operand.vmem [shape: f32[1,128], index: 4, kind: input, shape index: {}]
  %s5 = inlined_call_operand.vmem [shape: f32[1,128], index: 5, kind: input, shape index: {}]
  %s6 = inlined_call_operand.vmem [shape: f32[1,128], index: 6, kind: input, shape index: {}]
  %s7 = inlined_call_operand.vmem [shape: f32[512,128], index: 7, kind: output, shape index: {}]
  %s8 = sld [smem:[#allocation0]]
  $region61: #{double_conv_forward.2} parent=0
    _
  %s10 = ssub.s32 1, %s8
  %s11 = scalar_select 0, %s10, %s8
  loop: start=0, step=1, limit=4
  $region2: #{double_conv_forward.2} parent=0 // loop_pre_header
    _
  $region3: #{double_conv_forward.2} parent=0 // loop_header
    %s13 = sphi 0, %s17
    %p14 = scmp.ge.s32.totalorder %s13, 4
    %s23 = sphi 0, %s25
    %s26 = sphi 0, %s23
    %s27 = sphi 0, %s26
    %s43 = sphi 0, %s27
    %s47 = sphi 0, %s47
    %s49 = sphi 0, %s47
    %s50 = sphi 0, %s49
    %s64 = sphi 0, %s50
    %s68 = sphi 0, %s68
    %s70 = sphi 0, %s68
    %s71 = sphi 0, %s70
    %s85 = sphi 0, %s71
    %s89 = sphi 0, %s89
    %s91 = sphi 0, %s89
    %s92 = sphi 0, %s91
    %s106 = sphi 0, %s92
    %s110 = sphi 0, %s110
    %s112 = sphi 0, %s110
    %s113 = sphi 0, %s112
    %s127 = sphi 0, %s113
    %s131 = sphi 0, %s131
    %s133 = sphi 0, %s131
    %s134 = sphi 0, %s133
    %s148 = sphi 0, %s134
    %s152 = sphi 0, %s152
    %s154 = sphi 0, %s152
    %s155 = sphi 0, %s154
    %s169 = sphi 0, %s155
    %s175 = sphi 0, %s177
    %s178 = sphi 0, %s175
    %s179 = sphi 0, %s178
    %s195 = sphi 0, %s179
  $region4: #{double_conv_forward.2} parent=0 // loop_header_branch
    %16 = sbr.rel (%p14) target = $region8
  $region5: #{double_conv_forward.2} parent=0 // loop_body
    %s18 = ssub.s32 %s13, 1
    %s19 = ssub.s32 %s13, 2
    %s20 = sadd.s32 %s13, 1
    %s21 = ssub.s32 %s13, %s20
    %p22 = scmp.eq.s32.totalorder %s21, 0
    %s24 = sadd.s32 %s23, 1
    %s25 = scalar_select %p22, %s23, %s24
    %p28 = pneg %p22
    %p29 = scmp.eq.s32.totalorder %s13, 1
    %p30 = por %p28, %p29
    %p31 = scmp.ne.s32.totalorder %s23, %s26
    %p32 = scmp.eq.s32.totalorder %s13, 0
    %p33 = por %p31, %p32
    %p34 = scmp.ne.s32.totalorder %s23, %s26
    %p35 = scmp.eq.s32.totalorder %s18, 1
    %p36 = por %p34, %p35
    %p37 = scmp.ne.s32.totalorder %s26, %s27
    %p38 = scmp.eq.s32.totalorder %s18, 0
    %p39 = por %p37, %p38
    %p40 = scmp.ne.s32.totalorder %s26, %s27
    %p41 = scmp.eq.s32.totalorder %s19, 1
    %p42 = por %p40, %p41
    %p44 = scmp.ne.s32.totalorder %s27, %s43
    %p45 = scmp.eq.s32.totalorder %s19, 0
    %p46 = por %p44, %p45
    %s48 = sadd.s32 %s47, 1
    %p51 = scmp.eq.s32.totalorder %s13, 1
    %p52 = scmp.ne.s32.totalorder %s47, %s49
    %p53 = scmp.eq.s32.totalorder %s13, 0
    %p54 = por %p52, %p53
    %p55 = scmp.ne.s32.totalorder %s47, %s49
    %p56 = scmp.eq.s32.totalorder %s18, 1
    %p57 = por %p55, %p56
    %p58 = scmp.ne.s32.totalorder %s49, %s50
    %p59 = scmp.eq.s32.totalorder %s18, 0
    %p60 = por %p58, %p59
    %p61 = scmp.ne.s32.totalorder %s49, %s50
    %p62 = scmp.eq.s32.totalorder %s19, 1
    %p63 = por %p61, %p62
    %p65 = scmp.ne.s32.totalorder %s50, %s64
    %p66 = scmp.eq.s32.totalorder %s19, 0
    %p67 = por %p65, %p66
    %s69 = sadd.s32 %s68, 1
    %p72 = scmp.eq.s32.totalorder %s13, 1
    %p73 = scmp.ne.s32.totalorder %s68, %s70
    %p74 = scmp.eq.s32.totalorder %s13, 0
    %p75 = por %p73, %p74
    %p76 = scmp.ne.s32.totalorder %s68, %s70
    %p77 = scmp.eq.s32.totalorder %s18, 1
    %p78 = por %p76, %p77
    %p79 = scmp.ne.s32.totalorder %s70, %s71
    %p80 = scmp.eq.s32.totalorder %s18, 0
    %p81 = por %p79, %p80
    %p82 = scmp.ne.s32.totalorder %s70, %s71
    %p83 = scmp.eq.s32.totalorder %s19, 1
    %p84 = por %p82, %p83
    %p86 = scmp.ne.s32.totalorder %s71, %s85
    %p87 = scmp.eq.s32.totalorder %s19, 0
    %p88 = por %p86, %p87
    %s90 = sadd.s32 %s89, 1
    %p93 = scmp.eq.s32.totalorder %s13, 1
    %p94 = scmp.ne.s32.totalorder %s89, %s91
    %p95 = scmp.eq.s32.totalorder %s13, 0
    %p96 = por %p94, %p95
    %p97 = scmp.ne.s32.totalorder %s89, %s91
    %p98 = scmp.eq.s32.totalorder %s18, 1
    %p99 = por %p97, %p98
    %p100 = scmp.ne.s32.totalorder %s91, %s92
    %p101 = scmp.eq.s32.totalorder %s18, 0
    %p102 = por %p100, %p101
    %p103 = scmp.ne.s32.totalorder %s91, %s92
    %p104 = scmp.eq.s32.totalorder %s19, 1
    %p105 = por %p103, %p104
    %p107 = scmp.ne.s32.totalorder %s92, %s106
    %p108 = scmp.eq.s32.totalorder %s19, 0
    %p109 = por %p107, %p108
    %s111 = sadd.s32 %s110, 1
    %p114 = scmp.eq.s32.totalorder %s13, 1
    %p115 = scmp.ne.s32.totalorder %s110, %s112
    %p116 = scmp.eq.s32.totalorder %s13, 0
    %p117 = por %p115, %p116
    %p118 = scmp.ne.s32.totalorder %s110, %s112
    %p119 = scmp.eq.s32.totalorder %s18, 1
    %p120 = por %p118, %p119
    %p121 = scmp.ne.s32.totalorder %s112, %s113
    %p122 = scmp.eq.s32.totalorder %s18, 0
    %p123 = por %p121, %p122
    %p124 = scmp.ne.s32.totalorder %s112, %s113
    %p125 = scmp.eq.s32.totalorder %s19, 1
    %p126 = por %p124, %p125
    %p128 = scmp.ne.s32.totalorder %s113, %s127
    %p129 = scmp.eq.s32.totalorder %s19, 0
    %p130 = por %p128, %p129
    %s132 = sadd.s32 %s131, 1
    %p135 = scmp.eq.s32.totalorder %s13, 1
    %p136 = scmp.ne.s32.totalorder %s131, %s133
    %p137 = scmp.eq.s32.totalorder %s13, 0
    %p138 = por %p136, %p137
    %p139 = scmp.ne.s32.totalorder %s131, %s133
    %p140 = scmp.eq.s32.totalorder %s18, 1
    %p141 = por %p139, %p140
    %p142 = scmp.ne.s32.totalorder %s133, %s134
    %p143 = scmp.eq.s32.totalorder %s18, 0
    %p144 = por %p142, %p143
    %p145 = scmp.ne.s32.totalorder %s133, %s134
    %p146 = scmp.eq.s32.totalorder %s19, 1
    %p147 = por %p145, %p146
    %p149 = scmp.ne.s32.totalorder %s134, %s148
    %p150 = scmp.eq.s32.totalorder %s19, 0
    %p151 = por %p149, %p150
    %s153 = sadd.s32 %s152, 1
    %p156 = scmp.eq.s32.totalorder %s13, 1
    %p157 = scmp.ne.s32.totalorder %s152, %s154
    %p158 = scmp.eq.s32.totalorder %s13, 0
    %p159 = por %p157, %p158
    %p160 = scmp.ne.s32.totalorder %s152, %s154
    %p161 = scmp.eq.s32.totalorder %s18, 1
    %p162 = por %p160, %p161
    %p163 = scmp.ne.s32.totalorder %s154, %s155
    %p164 = scmp.eq.s32.totalorder %s18, 0
    %p165 = por %p163, %p164
    %p166 = scmp.ne.s32.totalorder %s154, %s155
    %p167 = scmp.eq.s32.totalorder %s19, 1
    %p168 = por %p166, %p167
    %p170 = scmp.ne.s32.totalorder %s155, %s169
    %p171 = scmp.eq.s32.totalorder %s19, 0
    %p172 = por %p170, %p171
    %s173 = ssub.s32 %s13, %s20
    %p174 = scmp.eq.s32.totalorder %s173, 0
    %s176 = sadd.s32 %s175, 1
    %s177 = scalar_select %p174, %s175, %s176
    %p180 = pneg %p174
    %p181 = scmp.eq.s32.totalorder %s13, 1
    %p182 = por %p180, %p181
    %p183 = scmp.ne.s32.totalorder %s175, %s178
    %p184 = scmp.eq.s32.totalorder %s13, 0
    %p185 = por %p183, %p184
    %p186 = scmp.ne.s32.totalorder %s175, %s178
    %p187 = scmp.eq.s32.totalorder %s18, 1
    %p188 = por %p186, %p187
    %p189 = scmp.ne.s32.totalorder %s178, %s179
    %p190 = scmp.eq.s32.totalorder %s18, 0
    %p191 = por %p189, %p190
    %p192 = scmp.ne.s32.totalorder %s178, %s179
    %p193 = scmp.eq.s32.totalorder %s19, 1
    %p194 = por %p192, %p193
    %p196 = scmp.ne.s32.totalorder %s179, %s195
    %p197 = scmp.eq.s32.totalorder %s19, 0
    %p198 = por %p196, %p197
    %p199 = scmp.le.s32.totalorder 1, %s13
    %p200 = scmp.lt.s32.totalorder %s13, 3
    %p201 = pnand %p199, %p200
    %p202 = pneg %p201
    // Predicated region
    $region9: #{double_conv_forward.2} parent=5 // pred_check
      _
    $region10: #{double_conv_forward.2} parent=5 // pred_check_branch
      %204 = sbr.rel (%p201) target = $region12
    $region11: #{double_conv_forward.2} parent=5 // pred_region
      %s205 = ssub.s32 %s13, 1
      // Predicated region
      $region13: #{double_conv_forward.2} parent=11 // pred_check
        %p206 = pneg %p60
      $region14: #{double_conv_forward.2} parent=11 // pred_check_branch
        %208 = sbr.rel (%p206) target = $region16
      $region15: #{double_conv_forward.2} parent=11 // pred_region
        _
      $region16: #{double_conv_forward.2} parent=11 // pred_fallthru
        _
      // Predicated region
      $region17: #{double_conv_forward.2} parent=11 // pred_check
        %p209 = pneg %p81
      $region18: #{double_conv_forward.2} parent=11 // pred_check_branch
        %211 = sbr.rel (%p209) target = $region20
      $region19: #{double_conv_forward.2} parent=11 // pred_region
        _
      $region20: #{double_conv_forward.2} parent=11 // pred_fallthru
        _
      // Predicated region
      $region21: #{double_conv_forward.2} parent=11 // pred_check
        %p212 = pneg %p102
      $region22: #{double_conv_forward.2} parent=11 // pred_check_branch
        %214 = sbr.rel (%p212) target = $region24
      $region23: #{double_conv_forward.2} parent=11 // pred_region
        _
      $region24: #{double_conv_forward.2} parent=11 // pred_fallthru
        _
      // Predicated region
      $region25: #{double_conv_forward.2} parent=11 // pred_check
        %p215 = pneg %p123
      $region26: #{double_conv_forward.2} parent=11 // pred_check_branch
        %217 = sbr.rel (%p215) target = $region28
      $region27: #{double_conv_forward.2} parent=11 // pred_region
        _
      $region28: #{double_conv_forward.2} parent=11 // pred_fallthru
        _
      // Predicated region
      $region29: #{double_conv_forward.2} parent=11 // pred_check
        %p218 = pneg %p144
      $region30: #{double_conv_forward.2} parent=11 // pred_check_branch
        %220 = sbr.rel (%p218) target = $region32
      $region31: #{double_conv_forward.2} parent=11 // pred_region
        _
      $region32: #{double_conv_forward.2} parent=11 // pred_fallthru
        _
      // Predicated region
      $region33: #{double_conv_forward.2} parent=11 // pred_check
        %p221 = pneg %p165
      $region34: #{double_conv_forward.2} parent=11 // pred_check_branch
        %223 = sbr.rel (%p221) target = $region36
      $region35: #{double_conv_forward.2} parent=11 // pred_region
        _
      $region36: #{double_conv_forward.2} parent=11 // pred_fallthru
        _
    $region12: #{double_conv_forward.2} parent=5 // pred_fallthru
      _
    %p224 = scmp.lt.s32.totalorder %s13, 2
    // Predicated region
    $region37: #{double_conv_forward.2} parent=5 // pred_check
      %p225 = pneg %p224
    $region38: #{double_conv_forward.2} parent=5 // pred_check_branch
      %227 = sbr.rel (%p225) target = $region40
    $region39: #{double_conv_forward.2} parent=5 // pred_region
      // Predicated region
      $region41: #{double_conv_forward.2} parent=39 // pred_check
        %p228 = pneg %p33
      $region42: #{double_conv_forward.2} parent=39 // pred_check_branch
        %230 = sbr.rel (%p228) target = $region44
      $region43: #{double_conv_forward.2} parent=39 // pred_region
        %s231 = smul.u32 32, %s13
        %p232 = scmp.lt.s32.totalorder %s231, 63
        %s233 = scalar_select %p232, %s231, 63
        %s234 = smul.addr %s233, 8
        %s235 = scalar_lea.vmem %s0, %s234
        %s236 = smul.u32 32, %s13
      $region44: #{double_conv_forward.2} parent=39 // pred_fallthru
        _
    $region40: #{double_conv_forward.2} parent=5 // pred_fallthru
      _
    %p237 = scmp.le.s32.totalorder 1, %s13
    %p238 = scmp.lt.s32.totalorder %s13, 3
    %p239 = pnand %p237, %p238
    %p240 = pneg %p239
    // Predicated region
    $region45: #{double_conv_forward.2} parent=5 // pred_check
      _
    $region46: #{double_conv_forward.2} parent=5 // pred_check_branch
      %242 = sbr.rel (%p239) target = $region48
    $region47: #{double_conv_forward.2} parent=5 // pred_region
      %s243 = ssub.s32 %s13, 1
      %s244 = smul.u32 32, %s18
      %p245 = scmp.lt.s32.totalorder %s244, 63
      %s246 = scalar_select %p245, %s244, 63
      %s247 = smul.addr %s246, 8
      %s248 = scalar_lea.vmem %s0, %s247
      %p249 = pneg %p39
      %p250 = pneg %p36
      %p251 = pneg %p60
      %p252 = pneg %p57
      %p253 = pneg %p81
      %p254 = pneg %p78
      %p255 = pneg %p102
      %p256 = pneg %p99
      %p257 = pneg %p123
      %p258 = pneg %p120
      %p259 = pneg %p144
      %p260 = pneg %p141
      %p261 = pneg %p165
      %p262 = pneg %p162
      %p263 = pneg %p191
      %p264 = pneg %p188
      %s265 = smul.u32 32, %s18
      %p266 = scmp.lt.s32.totalorder %s265, 63
      %s267 = scalar_select %p266, %s265, 63
      %s268 = smul.addr %s267, 8
      %s269 = scalar_lea.vmem %s7, %s268
      %s270 = smul.u32 32, %s18
      %p271 = scmp.lt.s32.totalorder %s270, 63
      %s272 = scalar_select %p271, %s270, 63
      %s273 = smul.addr %s272, 8
      %s274 = scalar_lea.vmem %s0, %s273
      %s275 = smul.u32 32, %s18
      %s276 = smul.u32 32, %s18
      %p277 = scmp.lt.s32.totalorder %s276, 63
      %s278 = scalar_select %p277, %s276, 63
      %s279 = smul.addr %s278, 8
      %s280 = scalar_lea.vmem %s7, %s279
      %s281 = smul.u32 32, %s18
      %v283 = vld [vmem:[%s274] sm:$0xff]
      %v284 = vld [vmem:[%s274 + $0x8] sm:$0xff]
      %v285 = vld [vmem:[%s274 + $0x10] sm:$0xff]
      %v286 = vld [vmem:[%s274 + $0x18] sm:$0xff]
      %v287 = vld [vmem:[%s274 + $0x20] sm:$0xff]
      %v288 = vld [vmem:[%s274 + $0x28] sm:$0xff]
      %v289 = vld [vmem:[%s274 + $0x30] sm:$0xff]
      %v290 = vld [vmem:[%s274 + $0x38] sm:$0xff]
      %v291 = vld [vmem:[%s274 + $0x40] sm:$0xff]
      %v292 = vld [vmem:[%s274 + $0x48] sm:$0xff]
      %v293 = vld [vmem:[%s274 + $0x50] sm:$0xff]
      %v294 = vld [vmem:[%s274 + $0x58] sm:$0xff]
      %v295 = vld [vmem:[%s274 + $0x60] sm:$0xff]
      %v296 = vld [vmem:[%s274 + $0x68] sm:$0xff]
      %v297 = vld [vmem:[%s274 + $0x70] sm:$0xff]
      %v298 = vld [vmem:[%s274 + $0x78] sm:$0xff]
      %v299 = vld [vmem:[%s274 + $0x80] sm:$0xff]
      %v300 = vld [vmem:[%s274 + $0x88] sm:$0xff]
      %v301 = vld [vmem:[%s274 + $0x90] sm:$0xff]
      %v302 = vld [vmem:[%s274 + $0x98] sm:$0xff]
      %v303 = vld [vmem:[%s274 + $0xa0] sm:$0xff]
      %v304 = vld [vmem:[%s274 + $0xa8] sm:$0xff]
      %v305 = vld [vmem:[%s274 + $0xb0] sm:$0xff]
      %v306 = vld [vmem:[%s274 + $0xb8] sm:$0xff]
      %v307 = vld [vmem:[%s274 + $0xc0] sm:$0xff]
      %v308 = vld [vmem:[%s274 + $0xc8] sm:$0xff]
      %v309 = vld [vmem:[%s274 + $0xd0] sm:$0xff]
      %v310 = vld [vmem:[%s274 + $0xd8] sm:$0xff]
      %v311 = vld [vmem:[%s274 + $0xe0] sm:$0xff]
      %v312 = vld [vmem:[%s274 + $0xe8] sm:$0xff]
      %v313 = vld [vmem:[%s274 + $0xf0] sm:$0xff]
      %v314 = vld [vmem:[%s274 + $0xf8] sm:$0xff]
      %v315 = vxor.u32 %v283, 2147483648
      %v316 = vxor.u32 %v284, 2147483648
      %v317 = vxor.u32 %v285, 2147483648
      %v318 = vxor.u32 %v286, 2147483648
      %v319 = vxor.u32 %v287, 2147483648
      %v320 = vxor.u32 %v288, 2147483648
      %v321 = vxor.u32 %v289, 2147483648
      %v322 = vxor.u32 %v290, 2147483648
      %v323 = vxor.u32 %v291, 2147483648
      %v324 = vxor.u32 %v292, 2147483648
      %v325 = vxor.u32 %v293, 2147483648
      %v326 = vxor.u32 %v294, 2147483648
      %v327 = vxor.u32 %v295, 2147483648
      %v328 = vxor.u32 %v296, 2147483648
      %v329 = vxor.u32 %v297, 2147483648
      %v330 = vxor.u32 %v298, 2147483648
      %v331 = vxor.u32 %v299, 2147483648
      %v332 = vxor.u32 %v300, 2147483648
      %v333 = vxor.u32 %v301, 2147483648
      %v334 = vxor.u32 %v302, 2147483648
      %v335 = vxor.u32 %v303, 2147483648
      %v336 = vxor.u32 %v304, 2147483648
      %v337 = vxor.u32 %v305, 2147483648
      %v338 = vxor.u32 %v306, 2147483648
      %v339 = vxor.u32 %v307, 2147483648
      %v340 = vxor.u32 %v308, 2147483648
      %v341 = vxor.u32 %v309, 2147483648
      %v342 = vxor.u32 %v310, 2147483648
      %v343 = vxor.u32 %v311, 2147483648
      %v344 = vxor.u32 %v312, 2147483648
      %v345 = vxor.u32 %v313, 2147483648
      %v346 = vxor.u32 %v314, 2147483648
      %v347 = vmul.f32 %v315, 1.442695
      %v348 = vpow.pop %v347
      %v349 = vmul.f32 %v316, 1.442695
      %v350 = vpow.pop %v349
      %v351 = vmul.f32 %v317, 1.442695
      %v352 = vpow.pop %v351
      %v353 = vmul.f32 %v318, 1.442695
      %v354 = vpow.pop %v353
      %v355 = vmul.f32 %v319, 1.442695
      %v356 = vpow.pop %v355
      %v357 = vmul.f32 %v320, 1.442695
      %v358 = vpow.pop %v357
      %v359 = vmul.f32 %v321, 1.442695
      %v360 = vpow.pop %v359
      %v361 = vmul.f32 %v322, 1.442695
      %v362 = vpow.pop %v361
      %v363 = vmul.f32 %v323, 1.442695
      %v364 = vpow.pop %v363
      %v365 = vmul.f32 %v324, 1.442695
      %v366 = vpow.pop %v365
      %v367 = vmul.f32 %v325, 1.442695
      %v368 = vpow.pop %v367
      %v369 = vmul.f32 %v326, 1.442695
      %v370 = vpow.pop %v369
      %v371 = vmul.f32 %v327, 1.442695
      %v372 = vpow.pop %v371
      %v373 = vmul.f32 %v328, 1.442695
      %v374 = vpow.pop %v373
      %v375 = vmul.f32 %v329, 1.442695
      %v376 = vpow.pop %v375
      %v377 = vmul.f32 %v330, 1.442695
      %v378 = vpow.pop %v377
      %v379 = vmul.f32 %v331, 1.442695
      %v380 = vpow.pop %v379
      %v381 = vmul.f32 %v332, 1.442695
      %v382 = vpow.pop %v381
      %v383 = vmul.f32 %v333, 1.442695
      %v384 = vpow.pop %v383
      %v385 = vmul.f32 %v334, 1.442695
      %v386 = vpow.pop %v385
      %v387 = vmul.f32 %v335, 1.442695
      %v388 = vpow.pop %v387
      %v389 = vmul.f32 %v336, 1.442695
      %v390 = vpow.pop %v389
      %v391 = vmul.f32 %v337, 1.442695
      %v392 = vpow.pop %v391
      %v393 = vmul.f32 %v338, 1.442695
      %v394 = vpow.pop %v393
      %v395 = vmul.f32 %v339, 1.442695
      %v396 = vpow.pop %v395
      %v397 = vmul.f32 %v340, 1.442695
      %v398 = vpow.pop %v397
      %v399 = vmul.f32 %v341, 1.442695
      %v400 = vpow.pop %v399
      %v401 = vmul.f32 %v342, 1.442695
      %v402 = vpow.pop %v401
      %v403 = vmul.f32 %v343, 1.442695
      %v404 = vpow.pop %v403
      %v405 = vmul.f32 %v344, 1.442695
      %v406 = vpow.pop %v405
      %v407 = vmul.f32 %v345, 1.442695
      %v408 = vpow.pop %v407
      %v409 = vmul.f32 %v346, 1.442695
      %v410 = vpow.pop %v409
      %v411 = vadd.f32 %v348, 1.0
      %v412 = vadd.f32 %v350, 1.0
      %v413 = vadd.f32 %v352, 1.0
      %v414 = vadd.f32 %v354, 1.0
      %v415 = vadd.f32 %v356, 1.0
      %v416 = vadd.f32 %v358, 1.0
      %v417 = vadd.f32 %v360, 1.0
      %v418 = vadd.f32 %v362, 1.0
      %v419 = vadd.f32 %v364, 1.0
      %v420 = vadd.f32 %v366, 1.0
      %v421 = vadd.f32 %v368, 1.0
      %v422 = vadd.f32 %v370, 1.0
      %v423 = vadd.f32 %v372, 1.0
      %v424 = vadd.f32 %v374, 1.0
      %v425 = vadd.f32 %v376, 1.0
      %v426 = vadd.f32 %v378, 1.0
      %v427 = vadd.f32 %v380, 1.0
      %v428 = vadd.f32 %v382, 1.0
      %v429 = vadd.f32 %v384, 1.0
      %v430 = vadd.f32 %v386, 1.0
      %v431 = vadd.f32 %v388, 1.0
      %v432 = vadd.f32 %v390, 1.0
      %v433 = vadd.f32 %v392, 1.0
      %v434 = vadd.f32 %v394, 1.0
      %v435 = vadd.f32 %v396, 1.0
      %v436 = vadd.f32 %v398, 1.0
      %v437 = vadd.f32 %v400, 1.0
      %v438 = vadd.f32 %v402, 1.0
      %v439 = vadd.f32 %v404, 1.0
      %v440 = vadd.f32 %v406, 1.0
      %v441 = vadd.f32 %v408, 1.0
      %v442 = vadd.f32 %v410, 1.0
      %v443 = vrcp.pop %v411
      %v444 = vmul.f32 1.0, %v443
      %v445 = vrcp.pop %v412
      %v446 = vmul.f32 1.0, %v445
      %v447 = vrcp.pop %v413
      %v448 = vmul.f32 1.0, %v447
      %v449 = vrcp.pop %v414
      %v450 = vmul.f32 1.0, %v449
      %v451 = vrcp.pop %v415
      %v452 = vmul.f32 1.0, %v451
      %v453 = vrcp.pop %v416
      %v454 = vmul.f32 1.0, %v453
      %v455 = vrcp.pop %v417
      %v456 = vmul.f32 1.0, %v455
      %v457 = vrcp.pop %v418
      %v458 = vmul.f32 1.0, %v457
      %v459 = vrcp.pop %v419
      %v460 = vmul.f32 1.0, %v459
      %v461 = vrcp.pop %v420
      %v462 = vmul.f32 1.0, %v461
      %v463 = vrcp.pop %v421
      %v464 = vmul.f32 1.0, %v463
      %v465 = vrcp.pop %v422
      %v466 = vmul.f32 1.0, %v465
      %v467 = vrcp.pop %v423
      %v468 = vmul.f32 1.0, %v467
      %v469 = vrcp.pop %v424
      %v470 = vmul.f32 1.0, %v469
      %v471 = vrcp.pop %v425
      %v472 = vmul.f32 1.0, %v471
      %v473 = vrcp.pop %v426
      %v474 = vmul.f32 1.0, %v473
      %v475 = vrcp.pop %v427
      %v476 = vmul.f32 1.0, %v475
      %v477 = vrcp.pop %v428
      %v478 = vmul.f32 1.0, %v477
      %v479 = vrcp.pop %v429
      %v480 = vmul.f32 1.0, %v479
      %v481 = vrcp.pop %v430
      %v482 = vmul.f32 1.0, %v481
      %v483 = vrcp.pop %v431
      %v484 = vmul.f32 1.0, %v483
      %v485 = vrcp.pop %v432
      %v486 = vmul.f32 1.0, %v485
      %v487 = vrcp.pop %v433
      %v488 = vmul.f32 1.0, %v487
      %v489 = vrcp.pop %v434
      %v490 = vmul.f32 1.0, %v489
      %v491 = vrcp.pop %v435
      %v492 = vmul.f32 1.0, %v491
      %v493 = vrcp.pop %v436
      %v494 = vmul.f32 1.0, %v493
      %v495 = vrcp.pop %v437
      %v496 = vmul.f32 1.0, %v495
      %v497 = vrcp.pop %v438
      %v498 = vmul.f32 1.0, %v497
      %v499 = vrcp.pop %v439
      %v500 = vmul.f32 1.0, %v499
      %v501 = vrcp.pop %v440
      %v502 = vmul.f32 1.0, %v501
      %v503 = vrcp.pop %v441
      %v504 = vmul.f32 1.0, %v503
      %v505 = vrcp.pop %v442
      %v506 = vmul.f32 1.0, %v505
      %v507 = vmul.f32 %v283, %v444
      %v508 = vmul.f32 %v284, %v446
      %v509 = vmul.f32 %v285, %v448
      %v510 = vmul.f32 %v286, %v450
      %v511 = vmul.f32 %v287, %v452
      %v512 = vmul.f32 %v288, %v454
      %v513 = vmul.f32 %v289, %v456
      %v514 = vmul.f32 %v290, %v458
      %v515 = vmul.f32 %v291, %v460
      %v516 = vmul.f32 %v292, %v462
      %v517 = vmul.f32 %v293, %v464
      %v518 = vmul.f32 %v294, %v466
      %v519 = vmul.f32 %v295, %v468
      %v520 = vmul.f32 %v296, %v470
      %v521 = vmul.f32 %v297, %v472
      %v522 = vmul.f32 %v298, %v474
      %v523 = vmul.f32 %v299, %v476
      %v524 = vmul.f32 %v300, %v478
      %v525 = vmul.f32 %v301, %v480
      %v526 = vmul.f32 %v302, %v482
      %v527 = vmul.f32 %v303, %v484
      %v528 = vmul.f32 %v304, %v486
      %v529 = vmul.f32 %v305, %v488
      %v530 = vmul.f32 %v306, %v490
      %v531 = vmul.f32 %v307, %v492
      %v532 = vmul.f32 %v308, %v494
      %v533 = vmul.f32 %v309, %v496
      %v534 = vmul.f32 %v310, %v498
      %v535 = vmul.f32 %v311, %v500
      %v536 = vmul.f32 %v312, %v502
      %v537 = vmul.f32 %v313, %v504
      %v538 = vmul.f32 %v314, %v506
      %vm539 = vcmask 293888
      %v540 = vsel %vm539, %v283, 0.0
      %541 = vadd.xlane.f32.xlu0 %v540
      %v542 = vpop.xlane.xlu0 %541
      %v543 = vsel %vm539, %v284, 0.0
      %544 = vadd.xlane.f32.xlu0 %v543
      %v545 = vpop.xlane.xlu0 %544
      %v546 = vsel %vm539, %v285, 0.0
      %547 = vadd.xlane.f32.xlu0 %v546
      %v548 = vpop.xlane.xlu0 %547
      %v549 = vsel %vm539, %v286, 0.0
      %550 = vadd.xlane.f32.xlu0 %v549
      %v551 = vpop.xlane.xlu0 %550
      %v552 = vsel %vm539, %v287, 0.0
      %553 = vadd.xlane.f32.xlu0 %v552
      %v554 = vpop.xlane.xlu0 %553
      %v555 = vsel %vm539, %v288, 0.0
      %556 = vadd.xlane.f32.xlu0 %v555
      %v557 = vpop.xlane.xlu0 %556
      %v558 = vsel %vm539, %v289, 0.0
      %559 = vadd.xlane.f32.xlu0 %v558
      %v560 = vpop.xlane.xlu0 %559
      %v561 = vsel %vm539, %v290, 0.0
      %562 = vadd.xlane.f32.xlu0 %v561
      %v563 = vpop.xlane.xlu0 %562
      %v564 = vsel %vm539, %v291, 0.0
      %565 = vadd.xlane.f32.xlu0 %v564
      %v566 = vpop.xlane.xlu0 %565
      %v567 = vsel %vm539, %v292, 0.0
      %568 = vadd.xlane.f32.xlu0 %v567
      %v569 = vpop.xlane.xlu0 %568
      %v570 = vsel %vm539, %v293, 0.0
      %571 = vadd.xlane.f32.xlu0 %v570
      %v572 = vpop.xlane.xlu0 %571
      %v573 = vsel %vm539, %v294, 0.0
      %574 = vadd.xlane.f32.xlu0 %v573
      %v575 = vpop.xlane.xlu0 %574
      %v576 = vsel %vm539, %v295, 0.0
      %577 = vadd.xlane.f32.xlu0 %v576
      %v578 = vpop.xlane.xlu0 %577
      %v579 = vsel %vm539, %v296, 0.0
      %580 = vadd.xlane.f32.xlu0 %v579
      %v581 = vpop.xlane.xlu0 %580
      %v582 = vsel %vm539, %v297, 0.0
      %583 = vadd.xlane.f32.xlu0 %v582
      %v584 = vpop.xlane.xlu0 %583
      %v585 = vsel %vm539, %v298, 0.0
      %586 = vadd.xlane.f32.xlu0 %v585
      %v587 = vpop.xlane.xlu0 %586
      %v588 = vsel %vm539, %v299, 0.0
      %589 = vadd.xlane.f32.xlu0 %v588
      %v590 = vpop.xlane.xlu0 %589
      %v591 = vsel %vm539, %v300, 0.0
      %592 = vadd.xlane.f32.xlu0 %v591
      %v593 = vpop.xlane.xlu0 %592
      %v594 = vsel %vm539, %v301, 0.0
      %595 = vadd.xlane.f32.xlu0 %v594
      %v596 = vpop.xlane.xlu0 %595
      %v597 = vsel %vm539, %v302, 0.0
      %598 = vadd.xlane.f32.xlu0 %v597
      %v599 = vpop.xlane.xlu0 %598
      %v600 = vsel %vm539, %v303, 0.0
      %601 = vadd.xlane.f32.xlu0 %v600
      %v602 = vpop.xlane.xlu0 %601
      %v603 = vsel %vm539, %v304, 0.0
      %604 = vadd.xlane.f32.xlu0 %v603
      %v605 = vpop.xlane.xlu0 %604
      %v606 = vsel %vm539, %v305, 0.0
      %607 = vadd.xlane.f32.xlu0 %v606
      %v608 = vpop.xlane.xlu0 %607
      %v609 = vsel %vm539, %v306, 0.0
      %610 = vadd.xlane.f32.xlu0 %v609
      %v611 = vpop.xlane.xlu0 %610
      %v612 = vsel %vm539, %v307, 0.0
      %613 = vadd.xlane.f32.xlu0 %v612
      %v614 = vpop.xlane.xlu0 %613
      %v615 = vsel %vm539, %v308, 0.0
      %616 = vadd.xlane.f32.xlu0 %v615
      %v617 = vpop.xlane.xlu0 %616
      %v618 = vsel %vm539, %v309, 0.0
      %619 = vadd.xlane.f32.xlu0 %v618
      %v620 = vpop.xlane.xlu0 %619
      %v621 = vsel %vm539, %v310, 0.0
      %622 = vadd.xlane.f32.xlu0 %v621
      %v623 = vpop.xlane.xlu0 %622
      %v624 = vsel %vm539, %v311, 0.0
      %625 = vadd.xlane.f32.xlu0 %v624
      %v626 = vpop.xlane.xlu0 %625
      %v627 = vsel %vm539, %v312, 0.0
      %628 = vadd.xlane.f32.xlu0 %v627
      %v629 = vpop.xlane.xlu0 %628
      %v630 = vsel %vm539, %v313, 0.0
      %631 = vadd.xlane.f32.xlu0 %v630
      %v632 = vpop.xlane.xlu0 %631
      %v633 = vsel %vm539, %v314, 0.0
      %634 = vadd.xlane.f32.xlu0 %v633
      %v635 = vpop.xlane.xlu0 %634
      %v636 = vrcp.pop 36.0
      %v637 = vmul.f32 %v542, %v636
      %v638 = vmul.f32 %v545, %v636
      %v639 = vmul.f32 %v548, %v636
      %v640 = vmul.f32 %v551, %v636
      %v641 = vmul.f32 %v554, %v636
      %v642 = vmul.f32 %v557, %v636
      %v643 = vmul.f32 %v560, %v636
      %v644 = vmul.f32 %v563, %v636
      %v645 = vmul.f32 %v566, %v636
      %v646 = vmul.f32 %v569, %v636
      %v647 = vmul.f32 %v572, %v636
      %v648 = vmul.f32 %v575, %v636
      %v649 = vmul.f32 %v578, %v636
      %v650 = vmul.f32 %v581, %v636
      %v651 = vmul.f32 %v584, %v636
      %v652 = vmul.f32 %v587, %v636
      %v653 = vmul.f32 %v590, %v636
      %v654 = vmul.f32 %v593, %v636
      %v655 = vmul.f32 %v596, %v636
      %v656 = vmul.f32 %v599, %v636
      %v657 = vmul.f32 %v602, %v636
      %v658 = vmul.f32 %v605, %v636
      %v659 = vmul.f32 %v608, %v636
      %v660 = vmul.f32 %v611, %v636
      %v661 = vmul.f32 %v614, %v636
      %v662 = vmul.f32 %v617, %v636
      %v663 = vmul.f32 %v620, %v636
      %v664 = vmul.f32 %v623, %v636
      %v665 = vmul.f32 %v626, %v636
      %v666 = vmul.f32 %v629, %v636
      %v667 = vmul.f32 %v632, %v636
      %v668 = vmul.f32 %v635, %v636
      %v669 = vsub.f32 %v283, %v637
      %v670 = vsub.f32 %v284, %v638
      %v671 = vsub.f32 %v285, %v639
      %v672 = vsub.f32 %v286, %v640
      %v673 = vsub.f32 %v287, %v641
      %v674 = vsub.f32 %v288, %v642
      %v675 = vsub.f32 %v289, %v643
      %v676 = vsub.f32 %v290, %v644
      %v677 = vsub.f32 %v291, %v645
      %v678 = vsub.f32 %v292, %v646
      %v679 = vsub.f32 %v293, %v647
      %v680 = vsub.f32 %v294, %v648
      %v681 = vsub.f32 %v295, %v649
      %v682 = vsub.f32 %v296, %v650
      %v683 = vsub.f32 %v297, %v651
      %v684 = vsub.f32 %v298, %v652
      %v685 = vsub.f32 %v299, %v653
      %v686 = vsub.f32 %v300, %v654
      %v687 = vsub.f32 %v301, %v655
      %v688 = vsub.f32 %v302, %v656
      %v689 = vsub.f32 %v303, %v657
      %v690 = vsub.f32 %v304, %v658
      %v691 = vsub.f32 %v305, %v659
      %v692 = vsub.f32 %v306, %v660
      %v693 = vsub.f32 %v307, %v661
      %v694 = vsub.f32 %v308, %v662
      %v695 = vsub.f32 %v309, %v663
      %v696 = vsub.f32 %v310, %v664
      %v697 = vsub.f32 %v311, %v665
      %v698 = vsub.f32 %v312, %v666
      %v699 = vsub.f32 %v313, %v667
      %v700 = vsub.f32 %v314, %v668
      %v701 = vmul.f32 %v669, %v669
      %v702 = vmul.f32 %v670, %v670
      %v703 = vmul.f32 %v671, %v671
      %v704 = vmul.f32 %v672, %v672
      %v705 = vmul.f32 %v673, %v673
      %v706 = vmul.f32 %v674, %v674
      %v707 = vmul.f32 %v675, %v675
      %v708 = vmul.f32 %v676, %v676
      %v709 = vmul.f32 %v677, %v677
      %v710 = vmul.f32 %v678, %v678
      %v711 = vmul.f32 %v679, %v679
      %v712 = vmul.f32 %v680, %v680
      %v713 = vmul.f32 %v681, %v681
      %v714 = vmul.f32 %v682, %v682
      %v715 = vmul.f32 %v683, %v683
      %v716 = vmul.f32 %v684, %v684
      %v717 = vmul.f32 %v685, %v685
      %v718 = vmul.f32 %v686, %v686
      %v719 = vmul.f32 %v687, %v687
      %v720 = vmul.f32 %v688, %v688
      %v721 = vmul.f32 %v689, %v689
      %v722 = vmul.f32 %v690, %v690
      %v723 = vmul.f32 %v691, %v691
      %v724 = vmul.f32 %v692, %v692
      %v725 = vmul.f32 %v693, %v693
      %v726 = vmul.f32 %v694, %v694
      %v727 = vmul.f32 %v695, %v695
      %v728 = vmul.f32 %v696, %v696
      %v729 = vmul.f32 %v697, %v697
      %v730 = vmul.f32 %v698, %v698
      %v731 = vmul.f32 %v699, %v699
      %v732 = vmul.f32 %v700, %v700
      %v733 = vsel %vm539, %v701, 0.0
      %734 = vadd.xlane.f32.xlu0 %v733
      %v735 = vpop.xlane.xlu0 %734
      %v736 = vsel %vm539, %v702, 0.0
      %737 = vadd.xlane.f32.xlu0 %v736
      %v738 = vpop.xlane.xlu0 %737
      %v739 = vsel %vm539, %v703, 0.0
      %740 = vadd.xlane.f32.xlu0 %v739
      %v741 = vpop.xlane.xlu0 %740
      %v742 = vsel %vm539, %v704, 0.0
      %743 = vadd.xlane.f32.xlu0 %v742
      %v744 = vpop.xlane.xlu0 %743
      %v745 = vsel %vm539, %v705, 0.0
      %746 = vadd.xlane.f32.xlu0 %v745
      %v747 = vpop.xlane.xlu0 %746
      %v748 = vsel %vm539, %v706, 0.0
      %749 = vadd.xlane.f32.xlu0 %v748
      %v750 = vpop.xlane.xlu0 %749
      %v751 = vsel %vm539, %v707, 0.0
      %752 = vadd.xlane.f32.xlu0 %v751
      %v753 = vpop.xlane.xlu0 %752
      %v754 = vsel %vm539, %v708, 0.0
      %755 = vadd.xlane.f32.xlu0 %v754
      %v756 = vpop.xlane.xlu0 %755
      %v757 = vsel %vm539, %v709, 0.0
      %758 = vadd.xlane.f32.xlu0 %v757
      %v759 = vpop.xlane.xlu0 %758
      %v760 = vsel %vm539, %v710, 0.0
      %761 = vadd.xlane.f32.xlu0 %v760
      %v762 = vpop.xlane.xlu0 %761
      %v763 = vsel %vm539, %v711, 0.0
      %764 = vadd.xlane.f32.xlu0 %v763
      %v765 = vpop.xlane.xlu0 %764
      %v766 = vsel %vm539, %v712, 0.0
      %767 = vadd.xlane.f32.xlu0 %v766
      %v768 = vpop.xlane.xlu0 %767
      %v769 = vsel %vm539, %v713, 0.0
      %770 = vadd.xlane.f32.xlu0 %v769
      %v771 = vpop.xlane.xlu0 %770
      %v772 = vsel %vm539, %v714, 0.0
      %773 = vadd.xlane.f32.xlu0 %v772
      %v774 = vpop.xlane.xlu0 %773
      %v775 = vsel %vm539, %v715, 0.0
      %776 = vadd.xlane.f32.xlu0 %v775
      %v777 = vpop.xlane.xlu0 %776
      %v778 = vsel %vm539, %v716, 0.0
      %779 = vadd.xlane.f32.xlu0 %v778
      %v780 = vpop.xlane.xlu0 %779
      %v781 = vsel %vm539, %v717, 0.0
      %782 = vadd.xlane.f32.xlu0 %v781
      %v783 = vpop.xlane.xlu0 %782
      %v784 = vsel %vm539, %v718, 0.0
      %785 = vadd.xlane.f32.xlu0 %v784
      %v786 = vpop.xlane.xlu0 %785
      %v787 = vsel %vm539, %v719, 0.0
      %788 = vadd.xlane.f32.xlu0 %v787
      %v789 = vpop.xlane.xlu0 %788
      %v790 = vsel %vm539, %v720, 0.0
      %791 = vadd.xlane.f32.xlu0 %v790
      %v792 = vpop.xlane.xlu0 %791
      %v793 = vsel %vm539, %v721, 0.0
      %794 = vadd.xlane.f32.xlu0 %v793
      %v795 = vpop.xlane.xlu0 %794
      %v796 = vsel %vm539, %v722, 0.0
      %797 = vadd.xlane.f32.xlu0 %v796
      %v798 = vpop.xlane.xlu0 %797
      %v799 = vsel %vm539, %v723, 0.0
      %800 = vadd.xlane.f32.xlu0 %v799
      %v801 = vpop.xlane.xlu0 %800
      %v802 = vsel %vm539, %v724, 0.0
      %803 = vadd.xlane.f32.xlu0 %v802
      %v804 = vpop.xlane.xlu0 %803
      %v805 = vsel %vm539, %v725, 0.0
      %806 = vadd.xlane.f32.xlu0 %v805
      %v807 = vpop.xlane.xlu0 %806
      %v808 = vsel %vm539, %v726, 0.0
      %809 = vadd.xlane.f32.xlu0 %v808
      %v810 = vpop.xlane.xlu0 %809
      %v811 = vsel %vm539, %v727, 0.0
      %812 = vadd.xlane.f32.xlu0 %v811
      %v813 = vpop.xlane.xlu0 %812
      %v814 = vsel %vm539, %v728, 0.0
      %815 = vadd.xlane.f32.xlu0 %v814
      %v816 = vpop.xlane.xlu0 %815
      %v817 = vsel %vm539, %v729, 0.0
      %818 = vadd.xlane.f32.xlu0 %v817
      %v819 = vpop.xlane.xlu0 %818
      %v820 = vsel %vm539, %v730, 0.0
      %821 = vadd.xlane.f32.xlu0 %v820
      %v822 = vpop.xlane.xlu0 %821
      %v823 = vsel %vm539, %v731, 0.0
      %824 = vadd.xlane.f32.xlu0 %v823
      %v825 = vpop.xlane.xlu0 %824
      %v826 = vsel %vm539, %v732, 0.0
      %827 = vadd.xlane.f32.xlu0 %v826
      %v828 = vpop.xlane.xlu0 %827
      %v829 = vmul.f32 %v735, %v636
      %v830 = vmul.f32 %v738, %v636
      %v831 = vmul.f32 %v741, %v636
      %v832 = vmul.f32 %v744, %v636
      %v833 = vmul.f32 %v747, %v636
      %v834 = vmul.f32 %v750, %v636
      %v835 = vmul.f32 %v753, %v636
      %v836 = vmul.f32 %v756, %v636
      %v837 = vmul.f32 %v759, %v636
      %v838 = vmul.f32 %v762, %v636
      %v839 = vmul.f32 %v765, %v636
      %v840 = vmul.f32 %v768, %v636
      %v841 = vmul.f32 %v771, %v636
      %v842 = vmul.f32 %v774, %v636
      %v843 = vmul.f32 %v777, %v636
      %v844 = vmul.f32 %v780, %v636
      %v845 = vmul.f32 %v783, %v636
      %v846 = vmul.f32 %v786, %v636
      %v847 = vmul.f32 %v789, %v636
      %v848 = vmul.f32 %v792, %v636
      %v849 = vmul.f32 %v795, %v636
      %v850 = vmul.f32 %v798, %v636
      %v851 = vmul.f32 %v801, %v636
      %v852 = vmul.f32 %v804, %v636
      %v853 = vmul.f32 %v807, %v636
      %v854 = vmul.f32 %v810, %v636
      %v855 = vmul.f32 %v813, %v636
      %v856 = vmul.f32 %v816, %v636
      %v857 = vmul.f32 %v819, %v636
      %v858 = vmul.f32 %v822, %v636
      %v859 = vmul.f32 %v825, %v636
      %v860 = vmul.f32 %v828, %v636
      %v861 = vadd.f32 %v829, 1e-05
      %v862 = vadd.f32 %v830, 1e-05
      %v863 = vadd.f32 %v831, 1e-05
      %v864 = vadd.f32 %v832, 1e-05
      %v865 = vadd.f32 %v833, 1e-05
      %v866 = vadd.f32 %v834, 1e-05
      %v867 = vadd.f32 %v835, 1e-05
      %v868 = vadd.f32 %v836, 1e-05
      %v869 = vadd.f32 %v837, 1e-05
      %v870 = vadd.f32 %v838, 1e-05
      %v871 = vadd.f32 %v839, 1e-05
      %v872 = vadd.f32 %v840, 1e-05
      %v873 = vadd.f32 %v841, 1e-05
      %v874 = vadd.f32 %v842, 1e-05
      %v875 = vadd.f32 %v843, 1e-05
      %v876 = vadd.f32 %v844, 1e-05
      %v877 = vadd.f32 %v845, 1e-05
      %v878 = vadd.f32 %v846, 1e-05
      %v879 = vadd.f32 %v847, 1e-05
      %v880 = vadd.f32 %v848, 1e-05
      %v881 = vadd.f32 %v849, 1e-05
      %v882 = vadd.f32 %v850, 1e-05
      %v883 = vadd.f32 %v851, 1e-05
      %v884 = vadd.f32 %v852, 1e-05
      %v885 = vadd.f32 %v853, 1e-05
      %v886 = vadd.f32 %v854, 1e-05
      %v887 = vadd.f32 %v855, 1e-05
      %v888 = vadd.f32 %v856, 1e-05
      %v889 = vadd.f32 %v857, 1e-05
      %v890 = vadd.f32 %v858, 1e-05
      %v891 = vadd.f32 %v859, 1e-05
      %v892 = vadd.f32 %v860, 1e-05
      %v893 = vrsqrt.pop %v861
      %v894 = vrsqrt.pop %v862
      %v895 = vrsqrt.pop %v863
      %v896 = vrsqrt.pop %v864
      %v897 = vrsqrt.pop %v865
      %v898 = vrsqrt.pop %v866
      %v899 = vrsqrt.pop %v867
      %v900 = vrsqrt.pop %v868
      %v901 = vrsqrt.pop %v869
      %v902 = vrsqrt.pop %v870
      %v903 = vrsqrt.pop %v871
      %v904 = vrsqrt.pop %v872
      %v905 = vrsqrt.pop %v873
      %v906 = vrsqrt.pop %v874
      %v907 = vrsqrt.pop %v875
      %v908 = vrsqrt.pop %v876
      %v909 = vrsqrt.pop %v877
      %v910 = vrsqrt.pop %v878
      %v911 = vrsqrt.pop %v879
      %v912 = vrsqrt.pop %v880
      %v913 = vrsqrt.pop %v881
      %v914 = vrsqrt.pop %v882
      %v915 = vrsqrt.pop %v883
      %v916 = vrsqrt.pop %v884
      %v917 = vrsqrt.pop %v885
      %v918 = vrsqrt.pop %v886
      %v919 = vrsqrt.pop %v887
      %v920 = vrsqrt.pop %v888
      %v921 = vrsqrt.pop %v889
      %v922 = vrsqrt.pop %v890
      %v923 = vrsqrt.pop %v891
      %v924 = vrsqrt.pop %v892
      %v925 = vmul.f32 %v669, %v893
      %v926 = vmul.f32 %v670, %v894
      %v927 = vmul.f32 %v671, %v895
      %v928 = vmul.f32 %v672, %v896
      %v929 = vmul.f32 %v673, %v897
      %v930 = vmul.f32 %v674, %v898
      %v931 = vmul.f32 %v675, %v899
      %v932 = vmul.f32 %v676, %v900
      %v933 = vmul.f32 %v677, %v901
      %v934 = vmul.f32 %v678, %v902
      %v935 = vmul.f32 %v679, %v903
      %v936 = vmul.f32 %v680, %v904
      %v937 = vmul.f32 %v681, %v905
      %v938 = vmul.f32 %v682, %v906
      %v939 = vmul.f32 %v683, %v907
      %v940 = vmul.f32 %v684, %v908
      %v941 = vmul.f32 %v685, %v909
      %v942 = vmul.f32 %v686, %v910
      %v943 = vmul.f32 %v687, %v911
      %v944 = vmul.f32 %v688, %v912
      %v945 = vmul.f32 %v689, %v913
      %v946 = vmul.f32 %v690, %v914
      %v947 = vmul.f32 %v691, %v915
      %v948 = vmul.f32 %v692, %v916
      %v949 = vmul.f32 %v693, %v917
      %v950 = vmul.f32 %v694, %v918
      %v951 = vmul.f32 %v695, %v919
      %v952 = vmul.f32 %v696, %v920
      %v953 = vmul.f32 %v697, %v921
      %v954 = vmul.f32 %v698, %v922
      %v955 = vmul.f32 %v699, %v923
      %v956 = vmul.f32 %v700, %v924
      %v957 = vld [vmem:[%s1] sm:$0x1]
      %v959 = vlaneseq
      %v960 = vshrl.u32 %v959, 7
      %v961 = vsub.s32 0, %v960
      %v962 = vrot.slane %v957, %v961
      %v964 = vmul.f32 %v925, %v962
      %v965 = vmul.f32 %v926, %v962
      %v966 = vmul.f32 %v927, %v962
      %v967 = vmul.f32 %v928, %v962
      %v968 = vmul.f32 %v929, %v962
      %v969 = vmul.f32 %v930, %v962
      %v970 = vmul.f32 %v931, %v962
      %v971 = vmul.f32 %v932, %v962
      %v972 = vmul.f32 %v933, %v962
      %v973 = vmul.f32 %v934, %v962
      %v974 = vmul.f32 %v935, %v962
      %v975 = vmul.f32 %v936, %v962
      %v976 = vmul.f32 %v937, %v962
      %v977 = vmul.f32 %v938, %v962
      %v978 = vmul.f32 %v939, %v962
      %v979 = vmul.f32 %v940, %v962
      %v980 = vmul.f32 %v941, %v962
      %v981 = vmul.f32 %v942, %v962
      %v982 = vmul.f32 %v943, %v962
      %v983 = vmul.f32 %v944, %v962
      %v984 = vmul.f32 %v945, %v962
      %v985 = vmul.f32 %v946, %v962
      %v986 = vmul.f32 %v947, %v962
      %v987 = vmul.f32 %v948, %v962
      %v988 = vmul.f32 %v949, %v962
      %v989 = vmul.f32 %v950, %v962
      %v990 = vmul.f32 %v951, %v962
      %v991 = vmul.f32 %v952, %v962
      %v992 = vmul.f32 %v953, %v962
      %v993 = vmul.f32 %v954, %v962
      %v994 = vmul.f32 %v955, %v962
      %v995 = vmul.f32 %v956, %v962
      %v996 = vld [vmem:[%s2] sm:$0x1]
      %v998 = vlaneseq
      %v999 = vshrl.u32 %v998, 7
      %v1000 = vsub.s32 0, %v999
      %v1001 = vrot.slane %v996, %v1000
      %v1003 = vadd.f32 %v964, %v1001
      %v1004 = vadd.f32 %v965, %v1001
      %v1005 = vadd.f32 %v966, %v1001
      %v1006 = vadd.f32 %v967, %v1001
      %v1007 = vadd.f32 %v968, %v1001
      %v1008 = vadd.f32 %v969, %v1001
      %v1009 = vadd.f32 %v970, %v1001
      %v1010 = vadd.f32 %v971, %v1001
      %v1011 = vadd.f32 %v972, %v1001
      %v1012 = vadd.f32 %v973, %v1001
      %v1013 = vadd.f32 %v974, %v1001
      %v1014 = vadd.f32 %v975, %v1001
      %v1015 = vadd.f32 %v976, %v1001
      %v1016 = vadd.f32 %v977, %v1001
      %v1017 = vadd.f32 %v978, %v1001
      %v1018 = vadd.f32 %v979, %v1001
      %v1019 = vadd.f32 %v980, %v1001
      %v1020 = vadd.f32 %v981, %v1001
      %v1021 = vadd.f32 %v982, %v1001
      %v1022 = vadd.f32 %v983, %v1001
      %v1023 = vadd.f32 %v984, %v1001
      %v1024 = vadd.f32 %v985, %v1001
      %v1025 = vadd.f32 %v986, %v1001
      %v1026 = vadd.f32 %v987, %v1001
      %v1027 = vadd.f32 %v988, %v1001
      %v1028 = vadd.f32 %v989, %v1001
      %v1029 = vadd.f32 %v990, %v1001
      %v1030 = vadd.f32 %v991, %v1001
      %v1031 = vadd.f32 %v992, %v1001
      %v1032 = vadd.f32 %v993, %v1001
      %v1033 = vadd.f32 %v994, %v1001
      %v1034 = vadd.f32 %v995, %v1001
      %v1035 = vsub.f32 %v1003, -2.0
      %v1036 = vsub.f32 %v1004, -2.0
      %v1037 = vsub.f32 %v1005, -2.0
      %v1038 = vsub.f32 %v1006, -2.0
      %v1039 = vsub.f32 %v1007, -2.0
      %v1040 = vsub.f32 %v1008, -2.0
      %v1041 = vsub.f32 %v1009, -2.0
      %v1042 = vsub.f32 %v1010, -2.0
      %v1043 = vsub.f32 %v1011, -2.0
      %v1044 = vsub.f32 %v1012, -2.0
      %v1045 = vsub.f32 %v1013, -2.0
      %v1046 = vsub.f32 %v1014, -2.0
      %v1047 = vsub.f32 %v1015, -2.0
      %v1048 = vsub.f32 %v1016, -2.0
      %v1049 = vsub.f32 %v1017, -2.0
      %v1050 = vsub.f32 %v1018, -2.0
      %v1051 = vsub.f32 %v1019, -2.0
      %v1052 = vsub.f32 %v1020, -2.0
      %v1053 = vsub.f32 %v1021, -2.0
      %v1054 = vsub.f32 %v1022, -2.0
      %v1055 = vsub.f32 %v1023, -2.0
      %v1056 = vsub.f32 %v1024, -2.0
      %v1057 = vsub.f32 %v1025, -2.0
      %v1058 = vsub.f32 %v1026, -2.0
      %v1059 = vsub.f32 %v1027, -2.0
      %v1060 = vsub.f32 %v1028, -2.0
      %v1061 = vsub.f32 %v1029, -2.0
      %v1062 = vsub.f32 %v1030, -2.0
      %v1063 = vsub.f32 %v1031, -2.0
      %v1064 = vsub.f32 %v1032, -2.0
      %v1065 = vsub.f32 %v1033, -2.0
      %v1066 = vsub.f32 %v1034, -2.0
      %v1067 = vmul.f32 %v1035, 1.75
      %v1068 = vmul.f32 %v1036, 1.75
      %v1069 = vmul.f32 %v1037, 1.75
      %v1070 = vmul.f32 %v1038, 1.75
      %v1071 = vmul.f32 %v1039, 1.75
      %v1072 = vmul.f32 %v1040, 1.75
      %v1073 = vmul.f32 %v1041, 1.75
      %v1074 = vmul.f32 %v1042, 1.75
      %v1075 = vmul.f32 %v1043, 1.75
      %v1076 = vmul.f32 %v1044, 1.75
      %v1077 = vmul.f32 %v1045, 1.75
      %v1078 = vmul.f32 %v1046, 1.75
      %v1079 = vmul.f32 %v1047, 1.75
      %v1080 = vmul.f32 %v1048, 1.75
      %v1081 = vmul.f32 %v1049, 1.75
      %v1082 = vmul.f32 %v1050, 1.75
      %v1083 = vmul.f32 %v1051, 1.75
      %v1084 = vmul.f32 %v1052, 1.75
      %v1085 = vmul.f32 %v1053, 1.75
      %v1086 = vmul.f32 %v1054, 1.75
      %v1087 = vmul.f32 %v1055, 1.75
      %v1088 = vmul.f32 %v1056, 1.75
      %v1089 = vmul.f32 %v1057, 1.75
      %v1090 = vmul.f32 %v1058, 1.75
      %v1091 = vmul.f32 %v1059, 1.75
      %v1092 = vmul.f32 %v1060, 1.75
      %v1093 = vmul.f32 %v1061, 1.75
      %v1094 = vmul.f32 %v1062, 1.75
      %v1095 = vmul.f32 %v1063, 1.75
      %v1096 = vmul.f32 %v1064, 1.75
      %v1097 = vmul.f32 %v1065, 1.75
      %v1098 = vmul.f32 %v1066, 1.75
      %v1099 = vsub.f32 %v1067, 3.5
      %v1100 = vsub.f32 %v1068, 3.5
      %v1101 = vsub.f32 %v1069, 3.5
      %v1102 = vsub.f32 %v1070, 3.5
      %v1103 = vsub.f32 %v1071, 3.5
      %v1104 = vsub.f32 %v1072, 3.5
      %v1105 = vsub.f32 %v1073, 3.5
      %v1106 = vsub.f32 %v1074, 3.5
      %v1107 = vsub.f32 %v1075, 3.5
      %v1108 = vsub.f32 %v1076, 3.5
      %v1109 = vsub.f32 %v1077, 3.5
      %v1110 = vsub.f32 %v1078, 3.5
      %v1111 = vsub.f32 %v1079, 3.5
      %v1112 = vsub.f32 %v1080, 3.5
      %v1113 = vsub.f32 %v1081, 3.5
      %v1114 = vsub.f32 %v1082, 3.5
      %v1115 = vsub.f32 %v1083, 3.5
      %v1116 = vsub.f32 %v1084, 3.5
      %v1117 = vsub.f32 %v1085, 3.5
      %v1118 = vsub.f32 %v1086, 3.5
      %v1119 = vsub.f32 %v1087, 3.5
      %v1120 = vsub.f32 %v1088, 3.5
      %v1121 = vsub.f32 %v1089, 3.5
      %v1122 = vsub.f32 %v1090, 3.5
      %v1123 = vsub.f32 %v1091, 3.5
      %v1124 = vsub.f32 %v1092, 3.5
      %v1125 = vsub.f32 %v1093, 3.5
      %v1126 = vsub.f32 %v1094, 3.5
      %v1127 = vsub.f32 %v1095, 3.5
      %v1128 = vsub.f32 %v1096, 3.5
      %v1129 = vsub.f32 %v1097, 3.5
      %v1130 = vsub.f32 %v1098, 3.5
      %v1131 = vmul.f32 %v1099, %v1099
      %v1132 = vmul.f32 %v1100, %v1100
      %v1133 = vmul.f32 %v1101, %v1101
      %v1134 = vmul.f32 %v1102, %v1102
      %v1135 = vmul.f32 %v1103, %v1103
      %v1136 = vmul.f32 %v1104, %v1104
      %v1137 = vmul.f32 %v1105, %v1105
      %v1138 = vmul.f32 %v1106, %v1106
      %v1139 = vmul.f32 %v1107, %v1107
      %v1140 = vmul.f32 %v1108, %v1108
      %v1141 = vmul.f32 %v1109, %v1109
      %v1142 = vmul.f32 %v1110, %v1110
      %v1143 = vmul.f32 %v1111, %v1111
      %v1144 = vmul.f32 %v1112, %v1112
      %v1145 = vmul.f32 %v1113, %v1113
      %v1146 = vmul.f32 %v1114, %v1114
      %v1147 = vmul.f32 %v1115, %v1115
      %v1148 = vmul.f32 %v1116, %v1116
      %v1149 = vmul.f32 %v1117, %v1117
      %v1150 = vmul.f32 %v1118, %v1118
      %v1151 = vmul.f32 %v1119, %v1119
      %v1152 = vmul.f32 %v1120, %v1120
      %v1153 = vmul.f32 %v1121, %v1121
      %v1154 = vmul.f32 %v1122, %v1122
      %v1155 = vmul.f32 %v1123, %v1123
      %v1156 = vmul.f32 %v1124, %v1124
      %v1157 = vmul.f32 %v1125, %v1125
      %v1158 = vmul.f32 %v1126, %v1126
      %v1159 = vmul.f32 %v1127, %v1127
      %v1160 = vmul.f32 %v1128, %v1128
      %v1161 = vmul.f32 %v1129, %v1129
      %v1162 = vmul.f32 %v1130, %v1130
      %v1163 = vsub.f32 0.0, %v1131
      %v1164 = vsub.f32 0.0, %v1132
      %v1165 = vsub.f32 0.0, %v1133
      %v1166 = vsub.f32 0.0, %v1134
      %v1167 = vsub.f32 0.0, %v1135
      %v1168 = vsub.f32 0.0, %v1136
      %v1169 = vsub.f32 0.0, %v1137
      %v1170 = vsub.f32 0.0, %v1138
      %v1171 = vsub.f32 0.0, %v1139
      %v1172 = vsub.f32 0.0, %v1140
      %v1173 = vsub.f32 0.0, %v1141
      %v1174 = vsub.f32 0.0, %v1142
      %v1175 = vsub.f32 0.0, %v1143
      %v1176 = vsub.f32 0.0, %v1144
      %v1177 = vsub.f32 0.0, %v1145
      %v1178 = vsub.f32 0.0, %v1146
      %v1179 = vsub.f32 0.0, %v1147
      %v1180 = vsub.f32 0.0, %v1148
      %v1181 = vsub.f32 0.0, %v1149
      %v1182 = vsub.f32 0.0, %v1150
      %v1183 = vsub.f32 0.0, %v1151
      %v1184 = vsub.f32 0.0, %v1152
      %v1185 = vsub.f32 0.0, %v1153
      %v1186 = vsub.f32 0.0, %v1154
      %v1187 = vsub.f32 0.0, %v1155
      %v1188 = vsub.f32 0.0, %v1156
      %v1189 = vsub.f32 0.0, %v1157
      %v1190 = vsub.f32 0.0, %v1158
      %v1191 = vsub.f32 0.0, %v1159
      %v1192 = vsub.f32 0.0, %v1160
      %v1193 = vsub.f32 0.0, %v1161
      %v1194 = vsub.f32 0.0, %v1162
      %v1195 = vmul.f32 %v1163, 1.442695
      %v1196 = vpow.pop %v1195
      %v1197 = vmul.f32 %v1164, 1.442695
      %v1198 = vpow.pop %v1197
      %v1199 = vmul.f32 %v1165, 1.442695
      %v1200 = vpow.pop %v1199
      %v1201 = vmul.f32 %v1166, 1.442695
      %v1202 = vpow.pop %v1201
      %v1203 = vmul.f32 %v1167, 1.442695
      %v1204 = vpow.pop %v1203
      %v1205 = vmul.f32 %v1168, 1.442695
      %v1206 = vpow.pop %v1205
      %v1207 = vmul.f32 %v1169, 1.442695
      %v1208 = vpow.pop %v1207
      %v1209 = vmul.f32 %v1170, 1.442695
      %v1210 = vpow.pop %v1209
      %v1211 = vmul.f32 %v1171, 1.442695
      %v1212 = vpow.pop %v1211
      %v1213 = vmul.f32 %v1172, 1.442695
      %v1214 = vpow.pop %v1213
      %v1215 = vmul.f32 %v1173, 1.442695
      %v1216 = vpow.pop %v1215
      %v1217 = vmul.f32 %v1174, 1.442695
      %v1218 = vpow.pop %v1217
      %v1219 = vmul.f32 %v1175, 1.442695
      %v1220 = vpow.pop %v1219
      %v1221 = vmul.f32 %v1176, 1.442695
      %v1222 = vpow.pop %v1221
      %v1223 = vmul.f32 %v1177, 1.442695
      %v1224 = vpow.pop %v1223
      %v1225 = vmul.f32 %v1178, 1.442695
      %v1226 = vpow.pop %v1225
      %v1227 = vmul.f32 %v1179, 1.442695
      %v1228 = vpow.pop %v1227
      %v1229 = vmul.f32 %v1180, 1.442695
      %v1230 = vpow.pop %v1229
      %v1231 = vmul.f32 %v1181, 1.442695
      %v1232 = vpow.pop %v1231
      %v1233 = vmul.f32 %v1182, 1.442695
      %v1234 = vpow.pop %v1233
      %v1235 = vmul.f32 %v1183, 1.442695
      %v1236 = vpow.pop %v1235
      %v1237 = vmul.f32 %v1184, 1.442695
      %v1238 = vpow.pop %v1237
      %v1239 = vmul.f32 %v1185, 1.442695
      %v1240 = vpow.pop %v1239
      %v1241 = vmul.f32 %v1186, 1.442695
      %v1242 = vpow.pop %v1241
      %v1243 = vmul.f32 %v1187, 1.442695
      %v1244 = vpow.pop %v1243
      %v1245 = vmul.f32 %v1188, 1.442695
      %v1246 = vpow.pop %v1245
      %v1247 = vmul.f32 %v1189, 1.442695
      %v1248 = vpow.pop %v1247
      %v1249 = vmul.f32 %v1190, 1.442695
      %v1250 = vpow.pop %v1249
      %v1251 = vmul.f32 %v1191, 1.442695
      %v1252 = vpow.pop %v1251
      %v1253 = vmul.f32 %v1192, 1.442695
      %v1254 = vpow.pop %v1253
      %v1255 = vmul.f32 %v1193, 1.442695
      %v1256 = vpow.pop %v1255
      %v1257 = vmul.f32 %v1194, 1.442695
      %v1258 = vpow.pop %v1257
      %v1259 = vmul.f32 %v1099, 1.442695
      %v1260 = vpow.pop %v1259
      %v1261 = vmul.f32 %v1100, 1.442695
      %v1262 = vpow.pop %v1261
      %v1263 = vmul.f32 %v1101, 1.442695
      %v1264 = vpow.pop %v1263
      %v1265 = vmul.f32 %v1102, 1.442695
      %v1266 = vpow.pop %v1265
      %v1267 = vmul.f32 %v1103, 1.442695
      %v1268 = vpow.pop %v1267
      %v1269 = vmul.f32 %v1104, 1.442695
      %v1270 = vpow.pop %v1269
      %v1271 = vmul.f32 %v1105, 1.442695
      %v1272 = vpow.pop %v1271
      %v1273 = vmul.f32 %v1106, 1.442695
      %v1274 = vpow.pop %v1273
      %v1275 = vmul.f32 %v1107, 1.442695
      %v1276 = vpow.pop %v1275
      %v1277 = vmul.f32 %v1108, 1.442695
      %v1278 = vpow.pop %v1277
      %v1279 = vmul.f32 %v1109, 1.442695
      %v1280 = vpow.pop %v1279
      %v1281 = vmul.f32 %v1110, 1.442695
      %v1282 = vpow.pop %v1281
      %v1283 = vmul.f32 %v1111, 1.442695
      %v1284 = vpow.pop %v1283
      %v1285 = vmul.f32 %v1112, 1.442695
      %v1286 = vpow.pop %v1285
      %v1287 = vmul.f32 %v1113, 1.442695
      %v1288 = vpow.pop %v1287
      %v1289 = vmul.f32 %v1114, 1.442695
      %v1290 = vpow.pop %v1289
      %v1291 = vmul.f32 %v1115, 1.442695
      %v1292 = vpow.pop %v1291
      %v1293 = vmul.f32 %v1116, 1.442695
      %v1294 = vpow.pop %v1293
      %v1295 = vmul.f32 %v1117, 1.442695
      %v1296 = vpow.pop %v1295
      %v1297 = vmul.f32 %v1118, 1.442695
      %v1298 = vpow.pop %v1297
      %v1299 = vmul.f32 %v1119, 1.442695
      %v1300 = vpow.pop %v1299
      %v1301 = vmul.f32 %v1120, 1.442695
      %v1302 = vpow.pop %v1301
      %v1303 = vmul.f32 %v1121, 1.442695
      %v1304 = vpow.pop %v1303
      %v1305 = vmul.f32 %v1122, 1.442695
      %v1306 = vpow.pop %v1305
      %v1307 = vmul.f32 %v1123, 1.442695
      %v1308 = vpow.pop %v1307
      %v1309 = vmul.f32 %v1124, 1.442695
      %v1310 = vpow.pop %v1309
      %v1311 = vmul.f32 %v1125, 1.442695
      %v1312 = vpow.pop %v1311
      %v1313 = vmul.f32 %v1126, 1.442695
      %v1314 = vpow.pop %v1313
      %v1315 = vmul.f32 %v1127, 1.442695
      %v1316 = vpow.pop %v1315
      %v1317 = vmul.f32 %v1128, 1.442695
      %v1318 = vpow.pop %v1317
      %v1319 = vmul.f32 %v1129, 1.442695
      %v1320 = vpow.pop %v1319
      %v1321 = vmul.f32 %v1130, 1.442695
      %v1322 = vpow.pop %v1321
      %v1323 = vsub.f32 0.0, %v1099
      %v1324 = vsub.f32 0.0, %v1100
      %v1325 = vsub.f32 0.0, %v1101
      %v1326 = vsub.f32 0.0, %v1102
      %v1327 = vsub.f32 0.0, %v1103
      %v1328 = vsub.f32 0.0, %v1104
      %v1329 = vsub.f32 0.0, %v1105
      %v1330 = vsub.f32 0.0, %v1106
      %v1331 = vsub.f32 0.0, %v1107
      %v1332 = vsub.f32 0.0, %v1108
      %v1333 = vsub.f32 0.0, %v1109
      %v1334 = vsub.f32 0.0, %v1110
      %v1335 = vsub.f32 0.0, %v1111
      %v1336 = vsub.f32 0.0, %v1112
      %v1337 = vsub.f32 0.0, %v1113
      %v1338 = vsub.f32 0.0, %v1114
      %v1339 = vsub.f32 0.0, %v1115
      %v1340 = vsub.f32 0.0, %v1116
      %v1341 = vsub.f32 0.0, %v1117
      %v1342 = vsub.f32 0.0, %v1118
      %v1343 = vsub.f32 0.0, %v1119
      %v1344 = vsub.f32 0.0, %v1120
      %v1345 = vsub.f32 0.0, %v1121
      %v1346 = vsub.f32 0.0, %v1122
      %v1347 = vsub.f32 0.0, %v1123
      %v1348 = vsub.f32 0.0, %v1124
      %v1349 = vsub.f32 0.0, %v1125
      %v1350 = vsub.f32 0.0, %v1126
      %v1351 = vsub.f32 0.0, %v1127
      %v1352 = vsub.f32 0.0, %v1128
      %v1353 = vsub.f32 0.0, %v1129
      %v1354 = vsub.f32 0.0, %v1130
      %v1355 = vmul.f32 %v1323, 1.442695
      %v1356 = vpow.pop %v1355
      %v1357 = vmul.f32 %v1324, 1.442695
      %v1358 = vpow.pop %v1357
      %v1359 = vmul.f32 %v1325, 1.442695
      %v1360 = vpow.pop %v1359
      %v1361 = vmul.f32 %v1326, 1.442695
      %v1362 = vpow.pop %v1361
      %v1363 = vmul.f32 %v1327, 1.442695
      %v1364 = vpow.pop %v1363
      %v1365 = vmul.f32 %v1328, 1.442695
      %v1366 = vpow.pop %v1365
      %v1367 = vmul.f32 %v1329, 1.442695
      %v1368 = vpow.pop %v1367
      %v1369 = vmul.f32 %v1330, 1.442695
      %v1370 = vpow.pop %v1369
      %v1371 = vmul.f32 %v1331, 1.442695
      %v1372 = vpow.pop %v1371
      %v1373 = vmul.f32 %v1332, 1.442695
      %v1374 = vpow.pop %v1373
      %v1375 = vmul.f32 %v1333, 1.442695
      %v1376 = vpow.pop %v1375
      %v1377 = vmul.f32 %v1334, 1.442695
      %v1378 = vpow.pop %v1377
      %v1379 = vmul.f32 %v1335, 1.442695
      %v1380 = vpow.pop %v1379
      %v1381 = vmul.f32 %v1336, 1.442695
      %v1382 = vpow.pop %v1381
      %v1383 = vmul.f32 %v1337, 1.442695
      %v1384 = vpow.pop %v1383
      %v1385 = vmul.f32 %v1338, 1.442695
      %v1386 = vpow.pop %v1385
      %v1387 = vmul.f32 %v1339, 1.442695
      %v1388 = vpow.pop %v1387
      %v1389 = vmul.f32 %v1340, 1.442695
      %v1390 = vpow.pop %v1389
      %v1391 = vmul.f32 %v1341, 1.442695
      %v1392 = vpow.pop %v1391
      %v1393 = vmul.f32 %v1342, 1.442695
      %v1394 = vpow.pop %v1393
      %v1395 = vmul.f32 %v1343, 1.442695
      %v1396 = vpow.pop %v1395
      %v1397 = vmul.f32 %v1344, 1.442695
      %v1398 = vpow.pop %v1397
      %v1399 = vmul.f32 %v1345, 1.442695
      %v1400 = vpow.pop %v1399
      %v1401 = vmul.f32 %v1346, 1.442695
      %v1402 = vpow.pop %v1401
      %v1403 = vmul.f32 %v1347, 1.442695
      %v1404 = vpow.pop %v1403
      %v1405 = vmul.f32 %v1348, 1.442695
      %v1406 = vpow.pop %v1405
      %v1407 = vmul.f32 %v1349, 1.442695
      %v1408 = vpow.pop %v1407
      %v1409 = vmul.f32 %v1350, 1.442695
      %v1410 = vpow.pop %v1409
      %v1411 = vmul.f32 %v1351, 1.442695
      %v1412 = vpow.pop %v1411
      %v1413 = vmul.f32 %v1352, 1.442695
      %v1414 = vpow.pop %v1413
      %v1415 = vmul.f32 %v1353, 1.442695
      %v1416 = vpow.pop %v1415
      %v1417 = vmul.f32 %v1354, 1.442695
      %v1418 = vpow.pop %v1417
      %v1419 = vmul.f32 %v1260, %v1260
      %v1420 = vmul.f32 %v1262, %v1262
      %v1421 = vmul.f32 %v1264, %v1264
      %v1422 = vmul.f32 %v1266, %v1266
      %v1423 = vmul.f32 %v1268, %v1268
      %v1424 = vmul.f32 %v1270, %v1270
      %v1425 = vmul.f32 %v1272, %v1272
      %v1426 = vmul.f32 %v1274, %v1274
      %v1427 = vmul.f32 %v1276, %v1276
      %v1428 = vmul.f32 %v1278, %v1278
      %v1429 = vmul.f32 %v1280, %v1280
      %v1430 = vmul.f32 %v1282, %v1282
      %v1431 = vmul.f32 %v1284, %v1284
      %v1432 = vmul.f32 %v1286, %v1286
      %v1433 = vmul.f32 %v1288, %v1288
      %v1434 = vmul.f32 %v1290, %v1290
      %v1435 = vmul.f32 %v1292, %v1292
      %v1436 = vmul.f32 %v1294, %v1294
      %v1437 = vmul.f32 %v1296, %v1296
      %v1438 = vmul.f32 %v1298, %v1298
      %v1439 = vmul.f32 %v1300, %v1300
      %v1440 = vmul.f32 %v1302, %v1302
      %v1441 = vmul.f32 %v1304, %v1304
      %v1442 = vmul.f32 %v1306, %v1306
      %v1443 = vmul.f32 %v1308, %v1308
      %v1444 = vmul.f32 %v1310, %v1310
      %v1445 = vmul.f32 %v1312, %v1312
      %v1446 = vmul.f32 %v1314, %v1314
      %v1447 = vmul.f32 %v1316, %v1316
      %v1448 = vmul.f32 %v1318, %v1318
      %v1449 = vmul.f32 %v1320, %v1320
      %v1450 = vmul.f32 %v1322, %v1322
      %v1451 = vmul.f32 %v1419, %v1260
      %v1452 = vmul.f32 %v1420, %v1262
      %v1453 = vmul.f32 %v1421, %v1264
      %v1454 = vmul.f32 %v1422, %v1266
      %v1455 = vmul.f32 %v1423, %v1268
      %v1456 = vmul.f32 %v1424, %v1270
      %v1457 = vmul.f32 %v1425, %v1272
      %v1458 = vmul.f32 %v1426, %v1274
      %v1459 = vmul.f32 %v1427, %v1276
      %v1460 = vmul.f32 %v1428, %v1278
      %v1461 = vmul.f32 %v1429, %v1280
      %v1462 = vmul.f32 %v1430, %v1282
      %v1463 = vmul.f32 %v1431, %v1284
      %v1464 = vmul.f32 %v1432, %v1286
      %v1465 = vmul.f32 %v1433, %v1288
      %v1466 = vmul.f32 %v1434, %v1290
      %v1467 = vmul.f32 %v1435, %v1292
      %v1468 = vmul.f32 %v1436, %v1294
      %v1469 = vmul.f32 %v1437, %v1296
      %v1470 = vmul.f32 %v1438, %v1298
      %v1471 = vmul.f32 %v1439, %v1300
      %v1472 = vmul.f32 %v1440, %v1302
      %v1473 = vmul.f32 %v1441, %v1304
      %v1474 = vmul.f32 %v1442, %v1306
      %v1475 = vmul.f32 %v1443, %v1308
      %v1476 = vmul.f32 %v1444, %v1310
      %v1477 = vmul.f32 %v1445, %v1312
      %v1478 = vmul.f32 %v1446, %v1314
      %v1479 = vmul.f32 %v1447, %v1316
      %v1480 = vmul.f32 %v1448, %v1318
      %v1481 = vmul.f32 %v1449, %v1320
      %v1482 = vmul.f32 %v1450, %v1322
      %v1483 = vmul.f32 %v1451, %v1419
      %v1484 = vmul.f32 %v1452, %v1420
      %v1485 = vmul.f32 %v1453, %v1421
      %v1486 = vmul.f32 %v1454, %v1422
      %v1487 = vmul.f32 %v1455, %v1423
      %v1488 = vmul.f32 %v1456, %v1424
      %v1489 = vmul.f32 %v1457, %v1425
      %v1490 = vmul.f32 %v1458, %v1426
      %v1491 = vmul.f32 %v1459, %v1427
      %v1492 = vmul.f32 %v1460, %v1428
      %v1493 = vmul.f32 %v1461, %v1429
      %v1494 = vmul.f32 %v1462, %v1430
      %v1495 = vmul.f32 %v1463, %v1431
      %v1496 = vmul.f32 %v1464, %v1432
      %v1497 = vmul.f32 %v1465, %v1433
      %v1498 = vmul.f32 %v1466, %v1434
      %v1499 = vmul.f32 %v1467, %v1435
      %v1500 = vmul.f32 %v1468, %v1436
      %v1501 = vmul.f32 %v1469, %v1437
      %v1502 = vmul.f32 %v1470, %v1438
      %v1503 = vmul.f32 %v1471, %v1439
      %v1504 = vmul.f32 %v1472, %v1440
      %v1505 = vmul.f32 %v1473, %v1441
      %v1506 = vmul.f32 %v1474, %v1442
      %v1507 = vmul.f32 %v1475, %v1443
      %v1508 = vmul.f32 %v1476, %v1444
      %v1509 = vmul.f32 %v1477, %v1445
      %v1510 = vmul.f32 %v1478, %v1446
      %v1511 = vmul.f32 %v1479, %v1447
      %v1512 = vmul.f32 %v1480, %v1448
      %v1513 = vmul.f32 %v1481, %v1449
      %v1514 = vmul.f32 %v1482, %v1450
      %v1515 = vmul.f32 %v1483, %v1419
      %v1516 = vmul.f32 %v1484, %v1420
      %v1517 = vmul.f32 %v1485, %v1421
      %v1518 = vmul.f32 %v1486, %v1422
      %v1519 = vmul.f32 %v1487, %v1423
      %v1520 = vmul.f32 %v1488, %v1424
      %v1521 = vmul.f32 %v1489, %v1425
      %v1522 = vmul.f32 %v1490, %v1426
      %v1523 = vmul.f32 %v1491, %v1427
      %v1524 = vmul.f32 %v1492, %v1428
      %v1525 = vmul.f32 %v1493, %v1429
      %v1526 = vmul.f32 %v1494, %v1430
      %v1527 = vmul.f32 %v1495, %v1431
      %v1528 = vmul.f32 %v1496, %v1432
      %v1529 = vmul.f32 %v1497, %v1433
      %v1530 = vmul.f32 %v1498, %v1434
      %v1531 = vmul.f32 %v1499, %v1435
      %v1532 = vmul.f32 %v1500, %v1436
      %v1533 = vmul.f32 %v1501, %v1437
      %v1534 = vmul.f32 %v1502, %v1438
      %v1535 = vmul.f32 %v1503, %v1439
      %v1536 = vmul.f32 %v1504, %v1440
      %v1537 = vmul.f32 %v1505, %v1441
      %v1538 = vmul.f32 %v1506, %v1442
      %v1539 = vmul.f32 %v1507, %v1443
      %v1540 = vmul.f32 %v1508, %v1444
      %v1541 = vmul.f32 %v1509, %v1445
      %v1542 = vmul.f32 %v1510, %v1446
      %v1543 = vmul.f32 %v1511, %v1447
      %v1544 = vmul.f32 %v1512, %v1448
      %v1545 = vmul.f32 %v1513, %v1449
      %v1546 = vmul.f32 %v1514, %v1450
      %v1547 = vmul.f32 %v1356, %v1356
      %v1548 = vmul.f32 %v1358, %v1358
      %v1549 = vmul.f32 %v1360, %v1360
      %v1550 = vmul.f32 %v1362, %v1362
      %v1551 = vmul.f32 %v1364, %v1364
      %v1552 = vmul.f32 %v1366, %v1366
      %v1553 = vmul.f32 %v1368, %v1368
      %v1554 = vmul.f32 %v1370, %v1370
      %v1555 = vmul.f32 %v1372, %v1372
      %v1556 = vmul.f32 %v1374, %v1374
      %v1557 = vmul.f32 %v1376, %v1376
      %v1558 = vmul.f32 %v1378, %v1378
      %v1559 = vmul.f32 %v1380, %v1380
      %v1560 = vmul.f32 %v1382, %v1382
      %v1561 = vmul.f32 %v1384, %v1384
      %v1562 = vmul.f32 %v1386, %v1386
      %v1563 = vmul.f32 %v1388, %v1388
      %v1564 = vmul.f32 %v1390, %v1390
      %v1565 = vmul.f32 %v1392, %v1392
      %v1566 = vmul.f32 %v1394, %v1394
      %v1567 = vmul.f32 %v1396, %v1396
      %v1568 = vmul.f32 %v1398, %v1398
      %v1569 = vmul.f32 %v1400, %v1400
      %v1570 = vmul.f32 %v1402, %v1402
      %v1571 = vmul.f32 %v1404, %v1404
      %v1572 = vmul.f32 %v1406, %v1406
      %v1573 = vmul.f32 %v1408, %v1408
      %v1574 = vmul.f32 %v1410, %v1410
      %v1575 = vmul.f32 %v1412, %v1412
      %v1576 = vmul.f32 %v1414, %v1414
      %v1577 = vmul.f32 %v1416, %v1416
      %v1578 = vmul.f32 %v1418, %v1418
      %v1579 = vmul.f32 %v1547, %v1356
      %v1580 = vmul.f32 %v1548, %v1358
      %v1581 = vmul.f32 %v1549, %v1360
      %v1582 = vmul.f32 %v1550, %v1362
      %v1583 = vmul.f32 %v1551, %v1364
      %v1584 = vmul.f32 %v1552, %v1366
      %v1585 = vmul.f32 %v1553, %v1368
      %v1586 = vmul.f32 %v1554, %v1370
      %v1587 = vmul.f32 %v1555, %v1372
      %v1588 = vmul.f32 %v1556, %v1374
      %v1589 = vmul.f32 %v1557, %v1376
      %v1590 = vmul.f32 %v1558, %v1378
      %v1591 = vmul.f32 %v1559, %v1380
      %v1592 = vmul.f32 %v1560, %v1382
      %v1593 = vmul.f32 %v1561, %v1384
      %v1594 = vmul.f32 %v1562, %v1386
      %v1595 = vmul.f32 %v1563, %v1388
      %v1596 = vmul.f32 %v1564, %v1390
      %v1597 = vmul.f32 %v1565, %v1392
      %v1598 = vmul.f32 %v1566, %v1394
      %v1599 = vmul.f32 %v1567, %v1396
      %v1600 = vmul.f32 %v1568, %v1398
      %v1601 = vmul.f32 %v1569, %v1400
      %v1602 = vmul.f32 %v1570, %v1402
      %v1603 = vmul.f32 %v1571, %v1404
      %v1604 = vmul.f32 %v1572, %v1406
      %v1605 = vmul.f32 %v1573, %v1408
      %v1606 = vmul.f32 %v1574, %v1410
      %v1607 = vmul.f32 %v1575, %v1412
      %v1608 = vmul.f32 %v1576, %v1414
      %v1609 = vmul.f32 %v1577, %v1416
      %v1610 = vmul.f32 %v1578, %v1418
      %v1611 = vmul.f32 %v1579, %v1547
      %v1612 = vmul.f32 %v1580, %v1548
      %v1613 = vmul.f32 %v1581, %v1549
      %v1614 = vmul.f32 %v1582, %v1550
      %v1615 = vmul.f32 %v1583, %v1551
      %v1616 = vmul.f32 %v1584, %v1552
      %v1617 = vmul.f32 %v1585, %v1553
      %v1618 = vmul.f32 %v1586, %v1554
      %v1619 = vmul.f32 %v1587, %v1555
      %v1620 = vmul.f32 %v1588, %v1556
      %v1621 = vmul.f32 %v1589, %v1557
      %v1622 = vmul.f32 %v1590, %v1558
      %v1623 = vmul.f32 %v1591, %v1559
      %v1624 = vmul.f32 %v1592, %v1560
      %v1625 = vmul.f32 %v1593, %v1561
      %v1626 = vmul.f32 %v1594, %v1562
      %v1627 = vmul.f32 %v1595, %v1563
      %v1628 = vmul.f32 %v1596, %v1564
      %v1629 = vmul.f32 %v1597, %v1565
      %v1630 = vmul.f32 %v1598, %v1566
      %v1631 = vmul.f32 %v1599, %v1567
      %v1632 = vmul.f32 %v1600, %v1568
      %v1633 = vmul.f32 %v1601, %v1569
      %v1634 = vmul.f32 %v1602, %v1570
      %v1635 = vmul.f32 %v1603, %v1571
      %v1636 = vmul.f32 %v1604, %v1572
      %v1637 = vmul.f32 %v1605, %v1573
      %v1638 = vmul.f32 %v1606, %v1574
      %v1639 = vmul.f32 %v1607, %v1575
      %v1640 = vmul.f32 %v1608, %v1576
      %v1641 = vmul.f32 %v1609, %v1577
      %v1642 = vmul.f32 %v1610, %v1578
      %v1643 = vmul.f32 %v1611, %v1547
      %v1644 = vmul.f32 %v1612, %v1548
      %v1645 = vmul.f32 %v1613, %v1549
      %v1646 = vmul.f32 %v1614, %v1550
      %v1647 = vmul.f32 %v1615, %v1551
      %v1648 = vmul.f32 %v1616, %v1552
      %v1649 = vmul.f32 %v1617, %v1553
      %v1650 = vmul.f32 %v1618, %v1554
      %v1651 = vmul.f32 %v1619, %v1555
      %v1652 = vmul.f32 %v1620, %v1556
      %v1653 = vmul.f32 %v1621, %v1557
      %v1654 = vmul.f32 %v1622, %v1558
      %v1655 = vmul.f32 %v1623, %v1559
      %v1656 = vmul.f32 %v1624, %v1560
      %v1657 = vmul.f32 %v1625, %v1561
      %v1658 = vmul.f32 %v1626, %v1562
      %v1659 = vmul.f32 %v1627, %v1563
      %v1660 = vmul.f32 %v1628, %v1564
      %v1661 = vmul.f32 %v1629, %v1565
      %v1662 = vmul.f32 %v1630, %v1566
      %v1663 = vmul.f32 %v1631, %v1567
      %v1664 = vmul.f32 %v1632, %v1568
      %v1665 = vmul.f32 %v1633, %v1569
      %v1666 = vmul.f32 %v1634, %v1570
      %v1667 = vmul.f32 %v1635, %v1571
      %v1668 = vmul.f32 %v1636, %v1572
      %v1669 = vmul.f32 %v1637, %v1573
      %v1670 = vmul.f32 %v1638, %v1574
      %v1671 = vmul.f32 %v1639, %v1575
      %v1672 = vmul.f32 %v1640, %v1576
      %v1673 = vmul.f32 %v1641, %v1577
      %v1674 = vmul.f32 %v1642, %v1578
      %v1675 = vmul.f32 %v1196, %v1643
      %v1676 = vmul.f32 %v1198, %v1644
      %v1677 = vmul.f32 %v1200, %v1645
      %v1678 = vmul.f32 %v1202, %v1646
      %v1679 = vmul.f32 %v1204, %v1647
      %v1680 = vmul.f32 %v1206, %v1648
      %v1681 = vmul.f32 %v1208, %v1649
      %v1682 = vmul.f32 %v1210, %v1650
      %v1683 = vmul.f32 %v1212, %v1651
      %v1684 = vmul.f32 %v1214, %v1652
      %v1685 = vmul.f32 %v1216, %v1653
      %v1686 = vmul.f32 %v1218, %v1654
      %v1687 = vmul.f32 %v1220, %v1655
      %v1688 = vmul.f32 %v1222, %v1656
      %v1689 = vmul.f32 %v1224, %v1657
      %v1690 = vmul.f32 %v1226, %v1658
      %v1691 = vmul.f32 %v1228, %v1659
      %v1692 = vmul.f32 %v1230, %v1660
      %v1693 = vmul.f32 %v1232, %v1661
      %v1694 = vmul.f32 %v1234, %v1662
      %v1695 = vmul.f32 %v1236, %v1663
      %v1696 = vmul.f32 %v1238, %v1664
      %v1697 = vmul.f32 %v1240, %v1665
      %v1698 = vmul.f32 %v1242, %v1666
      %v1699 = vmul.f32 %v1244, %v1667
      %v1700 = vmul.f32 %v1246, %v1668
      %v1701 = vmul.f32 %v1248, %v1669
      %v1702 = vmul.f32 %v1250, %v1670
      %v1703 = vmul.f32 %v1252, %v1671
      %v1704 = vmul.f32 %v1254, %v1672
      %v1705 = vmul.f32 %v1256, %v1673
      %v1706 = vmul.f32 %v1258, %v1674
      %v1707 = vmul.f32 %v1675, 4.785117e-06
      %v1708 = vmul.f32 %v1676, 4.785117e-06
      %v1709 = vmul.f32 %v1677, 4.785117e-06
      %v1710 = vmul.f32 %v1678, 4.785117e-06
      %v1711 = vmul.f32 %v1679, 4.785117e-06
      %v1712 = vmul.f32 %v1680, 4.785117e-06
      %v1713 = vmul.f32 %v1681, 4.785117e-06
      %v1714 = vmul.f32 %v1682, 4.785117e-06
      %v1715 = vmul.f32 %v1683, 4.785117e-06
      %v1716 = vmul.f32 %v1684, 4.785117e-06
      %v1717 = vmul.f32 %v1685, 4.785117e-06
      %v1718 = vmul.f32 %v1686, 4.785117e-06
      %v1719 = vmul.f32 %v1687, 4.785117e-06
      %v1720 = vmul.f32 %v1688, 4.785117e-06
      %v1721 = vmul.f32 %v1689, 4.785117e-06
      %v1722 = vmul.f32 %v1690, 4.785117e-06
      %v1723 = vmul.f32 %v1691, 4.785117e-06
      %v1724 = vmul.f32 %v1692, 4.785117e-06
      %v1725 = vmul.f32 %v1693, 4.785117e-06
      %v1726 = vmul.f32 %v1694, 4.785117e-06
      %v1727 = vmul.f32 %v1695, 4.785117e-06
      %v1728 = vmul.f32 %v1696, 4.785117e-06
      %v1729 = vmul.f32 %v1697, 4.785117e-06
      %v1730 = vmul.f32 %v1698, 4.785117e-06
      %v1731 = vmul.f32 %v1699, 4.785117e-06
      %v1732 = vmul.f32 %v1700, 4.785117e-06
      %v1733 = vmul.f32 %v1701, 4.785117e-06
      %v1734 = vmul.f32 %v1702, 4.785117e-06
      %v1735 = vmul.f32 %v1703, 4.785117e-06
      %v1736 = vmul.f32 %v1704, 4.785117e-06
      %v1737 = vmul.f32 %v1705, 4.785117e-06
      %v1738 = vmul.f32 %v1706, 4.785117e-06
      %v1739 = vmul.f32 %v1196, %v1611
      %v1740 = vmul.f32 %v1198, %v1612
      %v1741 = vmul.f32 %v1200, %v1613
      %v1742 = vmul.f32 %v1202, %v1614
      %v1743 = vmul.f32 %v1204, %v1615
      %v1744 = vmul.f32 %v1206, %v1616
      %v1745 = vmul.f32 %v1208, %v1617
      %v1746 = vmul.f32 %v1210, %v1618
      %v1747 = vmul.f32 %v1212, %v1619
      %v1748 = vmul.f32 %v1214, %v1620
      %v1749 = vmul.f32 %v1216, %v1621
      %v1750 = vmul.f32 %v1218, %v1622
      %v1751 = vmul.f32 %v1220, %v1623
      %v1752 = vmul.f32 %v1222, %v1624
      %v1753 = vmul.f32 %v1224, %v1625
      %v1754 = vmul.f32 %v1226, %v1626
      %v1755 = vmul.f32 %v1228, %v1627
      %v1756 = vmul.f32 %v1230, %v1628
      %v1757 = vmul.f32 %v1232, %v1629
      %v1758 = vmul.f32 %v1234, %v1630
      %v1759 = vmul.f32 %v1236, %v1631
      %v1760 = vmul.f32 %v1238, %v1632
      %v1761 = vmul.f32 %v1240, %v1633
      %v1762 = vmul.f32 %v1242, %v1634
      %v1763 = vmul.f32 %v1244, %v1635
      %v1764 = vmul.f32 %v1246, %v1636
      %v1765 = vmul.f32 %v1248, %v1637
      %v1766 = vmul.f32 %v1250, %v1638
      %v1767 = vmul.f32 %v1252, %v1639
      %v1768 = vmul.f32 %v1254, %v1640
      %v1769 = vmul.f32 %v1256, %v1641
      %v1770 = vmul.f32 %v1258, %v1642
      %v1771 = vmul.f32 %v1739, 0.0019304542
      %v1772 = vmul.f32 %v1740, 0.0019304542
      %v1773 = vmul.f32 %v1741, 0.0019304542
      %v1774 = vmul.f32 %v1742, 0.0019304542
      %v1775 = vmul.f32 %v1743, 0.0019304542
      %v1776 = vmul.f32 %v1744, 0.0019304542
      %v1777 = vmul.f32 %v1745, 0.0019304542
      %v1778 = vmul.f32 %v1746, 0.0019304542
      %v1779 = vmul.f32 %v1747, 0.0019304542
      %v1780 = vmul.f32 %v1748, 0.0019304542
      %v1781 = vmul.f32 %v1749, 0.0019304542
      %v1782 = vmul.f32 %v1750, 0.0019304542
      %v1783 = vmul.f32 %v1751, 0.0019304542
      %v1784 = vmul.f32 %v1752, 0.0019304542
      %v1785 = vmul.f32 %v1753, 0.0019304542
      %v1786 = vmul.f32 %v1754, 0.0019304542
      %v1787 = vmul.f32 %v1755, 0.0019304542
      %v1788 = vmul.f32 %v1756, 0.0019304542
      %v1789 = vmul.f32 %v1757, 0.0019304542
      %v1790 = vmul.f32 %v1758, 0.0019304542
      %v1791 = vmul.f32 %v1759, 0.0019304542
      %v1792 = vmul.f32 %v1760, 0.0019304542
      %v1793 = vmul.f32 %v1761, 0.0019304542
      %v1794 = vmul.f32 %v1762, 0.0019304542
      %v1795 = vmul.f32 %v1763, 0.0019304542
      %v1796 = vmul.f32 %v1764, 0.0019304542
      %v1797 = vmul.f32 %v1765, 0.0019304542
      %v1798 = vmul.f32 %v1766, 0.0019304542
      %v1799 = vmul.f32 %v1767, 0.0019304542
      %v1800 = vmul.f32 %v1768, 0.0019304542
      %v1801 = vmul.f32 %v1769, 0.0019304542
      %v1802 = vmul.f32 %v1770, 0.0019304542
      %v1803 = vmul.f32 %v1196, %v1579
      %v1804 = vmul.f32 %v1198, %v1580
      %v1805 = vmul.f32 %v1200, %v1581
      %v1806 = vmul.f32 %v1202, %v1582
      %v1807 = vmul.f32 %v1204, %v1583
      %v1808 = vmul.f32 %v1206, %v1584
      %v1809 = vmul.f32 %v1208, %v1585
      %v1810 = vmul.f32 %v1210, %v1586
      %v1811 = vmul.f32 %v1212, %v1587
      %v1812 = vmul.f32 %v1214, %v1588
      %v1813 = vmul.f32 %v1216, %v1589
      %v1814 = vmul.f32 %v1218, %v1590
      %v1815 = vmul.f32 %v1220, %v1591
      %v1816 = vmul.f32 %v1222, %v1592
      %v1817 = vmul.f32 %v1224, %v1593
      %v1818 = vmul.f32 %v1226, %v1594
      %v1819 = vmul.f32 %v1228, %v1595
      %v1820 = vmul.f32 %v1230, %v1596
      %v1821 = vmul.f32 %v1232, %v1597
      %v1822 = vmul.f32 %v1234, %v1598
      %v1823 = vmul.f32 %v1236, %v1599
      %v1824 = vmul.f32 %v1238, %v1600
      %v1825 = vmul.f32 %v1240, %v1601
      %v1826 = vmul.f32 %v1242, %v1602
      %v1827 = vmul.f32 %v1244, %v1603
      %v1828 = vmul.f32 %v1246, %v1604
      %v1829 = vmul.f32 %v1248, %v1605
      %v1830 = vmul.f32 %v1250, %v1606
      %v1831 = vmul.f32 %v1252, %v1607
      %v1832 = vmul.f32 %v1254, %v1608
      %v1833 = vmul.f32 %v1256, %v1609
      %v1834 = vmul.f32 %v1258, %v1610
      %v1835 = vmul.f32 %v1803, 0.10539922
      %v1836 = vmul.f32 %v1804, 0.10539922
      %v1837 = vmul.f32 %v1805, 0.10539922
      %v1838 = vmul.f32 %v1806, 0.10539922
      %v1839 = vmul.f32 %v1807, 0.10539922
      %v1840 = vmul.f32 %v1808, 0.10539922
      %v1841 = vmul.f32 %v1809, 0.10539922
      %v1842 = vmul.f32 %v1810, 0.10539922
      %v1843 = vmul.f32 %v1811, 0.10539922
      %v1844 = vmul.f32 %v1812, 0.10539922
      %v1845 = vmul.f32 %v1813, 0.10539922
      %v1846 = vmul.f32 %v1814, 0.10539922
      %v1847 = vmul.f32 %v1815, 0.10539922
      %v1848 = vmul.f32 %v1816, 0.10539922
      %v1849 = vmul.f32 %v1817, 0.10539922
      %v1850 = vmul.f32 %v1818, 0.10539922
      %v1851 = vmul.f32 %v1819, 0.10539922
      %v1852 = vmul.f32 %v1820, 0.10539922
      %v1853 = vmul.f32 %v1821, 0.10539922
      %v1854 = vmul.f32 %v1822, 0.10539922
      %v1855 = vmul.f32 %v1823, 0.10539922
      %v1856 = vmul.f32 %v1824, 0.10539922
      %v1857 = vmul.f32 %v1825, 0.10539922
      %v1858 = vmul.f32 %v1826, 0.10539922
      %v1859 = vmul.f32 %v1827, 0.10539922
      %v1860 = vmul.f32 %v1828, 0.10539922
      %v1861 = vmul.f32 %v1829, 0.10539922
      %v1862 = vmul.f32 %v1830, 0.10539922
      %v1863 = vmul.f32 %v1831, 0.10539922
      %v1864 = vmul.f32 %v1832, 0.10539922
      %v1865 = vmul.f32 %v1833, 0.10539922
      %v1866 = vmul.f32 %v1834, 0.10539922
      %v1867 = vmul.f32 %v1196, %v1356
      %v1868 = vmul.f32 %v1198, %v1358
      %v1869 = vmul.f32 %v1200, %v1360
      %v1870 = vmul.f32 %v1202, %v1362
      %v1871 = vmul.f32 %v1204, %v1364
      %v1872 = vmul.f32 %v1206, %v1366
      %v1873 = vmul.f32 %v1208, %v1368
      %v1874 = vmul.f32 %v1210, %v1370
      %v1875 = vmul.f32 %v1212, %v1372
      %v1876 = vmul.f32 %v1214, %v1374
      %v1877 = vmul.f32 %v1216, %v1376
      %v1878 = vmul.f32 %v1218, %v1378
      %v1879 = vmul.f32 %v1220, %v1380
      %v1880 = vmul.f32 %v1222, %v1382
      %v1881 = vmul.f32 %v1224, %v1384
      %v1882 = vmul.f32 %v1226, %v1386
      %v1883 = vmul.f32 %v1228, %v1388
      %v1884 = vmul.f32 %v1230, %v1390
      %v1885 = vmul.f32 %v1232, %v1392
      %v1886 = vmul.f32 %v1234, %v1394
      %v1887 = vmul.f32 %v1236, %v1396
      %v1888 = vmul.f32 %v1238, %v1398
      %v1889 = vmul.f32 %v1240, %v1400
      %v1890 = vmul.f32 %v1242, %v1402
      %v1891 = vmul.f32 %v1244, %v1404
      %v1892 = vmul.f32 %v1246, %v1406
      %v1893 = vmul.f32 %v1248, %v1408
      %v1894 = vmul.f32 %v1250, %v1410
      %v1895 = vmul.f32 %v1252, %v1412
      %v1896 = vmul.f32 %v1254, %v1414
      %v1897 = vmul.f32 %v1256, %v1416
      %v1898 = vmul.f32 %v1258, %v1418
      %v1899 = vmul.f32 %v1867, 0.7788008
      %v1900 = vmul.f32 %v1868, 0.7788008
      %v1901 = vmul.f32 %v1869, 0.7788008
      %v1902 = vmul.f32 %v1870, 0.7788008
      %v1903 = vmul.f32 %v1871, 0.7788008
      %v1904 = vmul.f32 %v1872, 0.7788008
      %v1905 = vmul.f32 %v1873, 0.7788008
      %v1906 = vmul.f32 %v1874, 0.7788008
      %v1907 = vmul.f32 %v1875, 0.7788008
      %v1908 = vmul.f32 %v1876, 0.7788008
      %v1909 = vmul.f32 %v1877, 0.7788008
      %v1910 = vmul.f32 %v1878, 0.7788008
      %v1911 = vmul.f32 %v1879, 0.7788008
      %v1912 = vmul.f32 %v1880, 0.7788008
      %v1913 = vmul.f32 %v1881, 0.7788008
      %v1914 = vmul.f32 %v1882, 0.7788008
      %v1915 = vmul.f32 %v1883, 0.7788008
      %v1916 = vmul.f32 %v1884, 0.7788008
      %v1917 = vmul.f32 %v1885, 0.7788008
      %v1918 = vmul.f32 %v1886, 0.7788008
      %v1919 = vmul.f32 %v1887, 0.7788008
      %v1920 = vmul.f32 %v1888, 0.7788008
      %v1921 = vmul.f32 %v1889, 0.7788008
      %v1922 = vmul.f32 %v1890, 0.7788008
      %v1923 = vmul.f32 %v1891, 0.7788008
      %v1924 = vmul.f32 %v1892, 0.7788008
      %v1925 = vmul.f32 %v1893, 0.7788008
      %v1926 = vmul.f32 %v1894, 0.7788008
      %v1927 = vmul.f32 %v1895, 0.7788008
      %v1928 = vmul.f32 %v1896, 0.7788008
      %v1929 = vmul.f32 %v1897, 0.7788008
      %v1930 = vmul.f32 %v1898, 0.7788008
      %v1931 = vmul.f32 %v1196, %v1260
      %v1932 = vmul.f32 %v1198, %v1262
      %v1933 = vmul.f32 %v1200, %v1264
      %v1934 = vmul.f32 %v1202, %v1266
      %v1935 = vmul.f32 %v1204, %v1268
      %v1936 = vmul.f32 %v1206, %v1270
      %v1937 = vmul.f32 %v1208, %v1272
      %v1938 = vmul.f32 %v1210, %v1274
      %v1939 = vmul.f32 %v1212, %v1276
      %v1940 = vmul.f32 %v1214, %v1278
      %v1941 = vmul.f32 %v1216, %v1280
      %v1942 = vmul.f32 %v1218, %v1282
      %v1943 = vmul.f32 %v1220, %v1284
      %v1944 = vmul.f32 %v1222, %v1286
      %v1945 = vmul.f32 %v1224, %v1288
      %v1946 = vmul.f32 %v1226, %v1290
      %v1947 = vmul.f32 %v1228, %v1292
      %v1948 = vmul.f32 %v1230, %v1294
      %v1949 = vmul.f32 %v1232, %v1296
      %v1950 = vmul.f32 %v1234, %v1298
      %v1951 = vmul.f32 %v1236, %v1300
      %v1952 = vmul.f32 %v1238, %v1302
      %v1953 = vmul.f32 %v1240, %v1304
      %v1954 = vmul.f32 %v1242, %v1306
      %v1955 = vmul.f32 %v1244, %v1308
      %v1956 = vmul.f32 %v1246, %v1310
      %v1957 = vmul.f32 %v1248, %v1312
      %v1958 = vmul.f32 %v1250, %v1314
      %v1959 = vmul.f32 %v1252, %v1316
      %v1960 = vmul.f32 %v1254, %v1318
      %v1961 = vmul.f32 %v1256, %v1320
      %v1962 = vmul.f32 %v1258, %v1322
      %v1963 = vmul.f32 %v1931, 0.7788008
      %v1964 = vmul.f32 %v1932, 0.7788008
      %v1965 = vmul.f32 %v1933, 0.7788008
      %v1966 = vmul.f32 %v1934, 0.7788008
      %v1967 = vmul.f32 %v1935, 0.7788008
      %v1968 = vmul.f32 %v1936, 0.7788008
      %v1969 = vmul.f32 %v1937, 0.7788008
      %v1970 = vmul.f32 %v1938, 0.7788008
      %v1971 = vmul.f32 %v1939, 0.7788008
      %v1972 = vmul.f32 %v1940, 0.7788008
      %v1973 = vmul.f32 %v1941, 0.7788008
      %v1974 = vmul.f32 %v1942, 0.7788008
      %v1975 = vmul.f32 %v1943, 0.7788008
      %v1976 = vmul.f32 %v1944, 0.7788008
      %v1977 = vmul.f32 %v1945, 0.7788008
      %v1978 = vmul.f32 %v1946, 0.7788008
      %v1979 = vmul.f32 %v1947, 0.7788008
      %v1980 = vmul.f32 %v1948, 0.7788008
      %v1981 = vmul.f32 %v1949, 0.7788008
      %v1982 = vmul.f32 %v1950, 0.7788008
      %v1983 = vmul.f32 %v1951, 0.7788008
      %v1984 = vmul.f32 %v1952, 0.7788008
      %v1985 = vmul.f32 %v1953, 0.7788008
      %v1986 = vmul.f32 %v1954, 0.7788008
      %v1987 = vmul.f32 %v1955, 0.7788008
      %v1988 = vmul.f32 %v1956, 0.7788008
      %v1989 = vmul.f32 %v1957, 0.7788008
      %v1990 = vmul.f32 %v1958, 0.7788008
      %v1991 = vmul.f32 %v1959, 0.7788008
      %v1992 = vmul.f32 %v1960, 0.7788008
      %v1993 = vmul.f32 %v1961, 0.7788008
      %v1994 = vmul.f32 %v1962, 0.7788008
      %v1995 = vmul.f32 %v1196, %v1451
      %v1996 = vmul.f32 %v1198, %v1452
      %v1997 = vmul.f32 %v1200, %v1453
      %v1998 = vmul.f32 %v1202, %v1454
      %v1999 = vmul.f32 %v1204, %v1455
      %v2000 = vmul.f32 %v1206, %v1456
      %v2001 = vmul.f32 %v1208, %v1457
      %v2002 = vmul.f32 %v1210, %v1458
      %v2003 = vmul.f32 %v1212, %v1459
      %v2004 = vmul.f32 %v1214, %v1460
      %v2005 = vmul.f32 %v1216, %v1461
      %v2006 = vmul.f32 %v1218, %v1462
      %v2007 = vmul.f32 %v1220, %v1463
      %v2008 = vmul.f32 %v1222, %v1464
      %v2009 = vmul.f32 %v1224, %v1465
      %v2010 = vmul.f32 %v1226, %v1466
      %v2011 = vmul.f32 %v1228, %v1467
      %v2012 = vmul.f32 %v1230, %v1468
      %v2013 = vmul.f32 %v1232, %v1469
      %v2014 = vmul.f32 %v1234, %v1470
      %v2015 = vmul.f32 %v1236, %v1471
      %v2016 = vmul.f32 %v1238, %v1472
      %v2017 = vmul.f32 %v1240, %v1473
      %v2018 = vmul.f32 %v1242, %v1474
      %v2019 = vmul.f32 %v1244, %v1475
      %v2020 = vmul.f32 %v1246, %v1476
      %v2021 = vmul.f32 %v1248, %v1477
      %v2022 = vmul.f32 %v1250, %v1478
      %v2023 = vmul.f32 %v1252, %v1479
      %v2024 = vmul.f32 %v1254, %v1480
      %v2025 = vmul.f32 %v1256, %v1481
      %v2026 = vmul.f32 %v1258, %v1482
      %v2027 = vmul.f32 %v1995, 0.10539922
      %v2028 = vmul.f32 %v1996, 0.10539922
      %v2029 = vmul.f32 %v1997, 0.10539922
      %v2030 = vmul.f32 %v1998, 0.10539922
      %v2031 = vmul.f32 %v1999, 0.10539922
      %v2032 = vmul.f32 %v2000, 0.10539922
      %v2033 = vmul.f32 %v2001, 0.10539922
      %v2034 = vmul.f32 %v2002, 0.10539922
      %v2035 = vmul.f32 %v2003, 0.10539922
      %v2036 = vmul.f32 %v2004, 0.10539922
      %v2037 = vmul.f32 %v2005, 0.10539922
      %v2038 = vmul.f32 %v2006, 0.10539922
      %v2039 = vmul.f32 %v2007, 0.10539922
      %v2040 = vmul.f32 %v2008, 0.10539922
      %v2041 = vmul.f32 %v2009, 0.10539922
      %v2042 = vmul.f32 %v2010, 0.10539922
      %v2043 = vmul.f32 %v2011, 0.10539922
      %v2044 = vmul.f32 %v2012, 0.10539922
      %v2045 = vmul.f32 %v2013, 0.10539922
      %v2046 = vmul.f32 %v2014, 0.10539922
      %v2047 = vmul.f32 %v2015, 0.10539922
      %v2048 = vmul.f32 %v2016, 0.10539922
      %v2049 = vmul.f32 %v2017, 0.10539922
      %v2050 = vmul.f32 %v2018, 0.10539922
      %v2051 = vmul.f32 %v2019, 0.10539922
      %v2052 = vmul.f32 %v2020, 0.10539922
      %v2053 = vmul.f32 %v2021, 0.10539922
      %v2054 = vmul.f32 %v2022, 0.10539922
      %v2055 = vmul.f32 %v2023, 0.10539922
      %v2056 = vmul.f32 %v2024, 0.10539922
      %v2057 = vmul.f32 %v2025, 0.10539922
      %v2058 = vmul.f32 %v2026, 0.10539922
      %v2059 = vmul.f32 %v1196, %v1483
      %v2060 = vmul.f32 %v1198, %v1484
      %v2061 = vmul.f32 %v1200, %v1485
      %v2062 = vmul.f32 %v1202, %v1486
      %v2063 = vmul.f32 %v1204, %v1487
      %v2064 = vmul.f32 %v1206, %v1488
      %v2065 = vmul.f32 %v1208, %v1489
      %v2066 = vmul.f32 %v1210, %v1490
      %v2067 = vmul.f32 %v1212, %v1491
      %v2068 = vmul.f32 %v1214, %v1492
      %v2069 = vmul.f32 %v1216, %v1493
      %v2070 = vmul.f32 %v1218, %v1494
      %v2071 = vmul.f32 %v1220, %v1495
      %v2072 = vmul.f32 %v1222, %v1496
      %v2073 = vmul.f32 %v1224, %v1497
      %v2074 = vmul.f32 %v1226, %v1498
      %v2075 = vmul.f32 %v1228, %v1499
      %v2076 = vmul.f32 %v1230, %v1500
      %v2077 = vmul.f32 %v1232, %v1501
      %v2078 = vmul.f32 %v1234, %v1502
      %v2079 = vmul.f32 %v1236, %v1503
      %v2080 = vmul.f32 %v1238, %v1504
      %v2081 = vmul.f32 %v1240, %v1505
      %v2082 = vmul.f32 %v1242, %v1506
      %v2083 = vmul.f32 %v1244, %v1507
      %v2084 = vmul.f32 %v1246, %v1508
      %v2085 = vmul.f32 %v1248, %v1509
      %v2086 = vmul.f32 %v1250, %v1510
      %v2087 = vmul.f32 %v1252, %v1511
      %v2088 = vmul.f32 %v1254, %v1512
      %v2089 = vmul.f32 %v1256, %v1513
      %v2090 = vmul.f32 %v1258, %v1514
      %v2091 = vmul.f32 %v2059, 0.0019304542
      %v2092 = vmul.f32 %v2060, 0.0019304542
      %v2093 = vmul.f32 %v2061, 0.0019304542
      %v2094 = vmul.f32 %v2062, 0.0019304542
      %v2095 = vmul.f32 %v2063, 0.0019304542
      %v2096 = vmul.f32 %v2064, 0.0019304542
      %v2097 = vmul.f32 %v2065, 0.0019304542
      %v2098 = vmul.f32 %v2066, 0.0019304542
      %v2099 = vmul.f32 %v2067, 0.0019304542
      %v2100 = vmul.f32 %v2068, 0.0019304542
      %v2101 = vmul.f32 %v2069, 0.0019304542
      %v2102 = vmul.f32 %v2070, 0.0019304542
      %v2103 = vmul.f32 %v2071, 0.0019304542
      %v2104 = vmul.f32 %v2072, 0.0019304542
      %v2105 = vmul.f32 %v2073, 0.0019304542
      %v2106 = vmul.f32 %v2074, 0.0019304542
      %v2107 = vmul.f32 %v2075, 0.0019304542
      %v2108 = vmul.f32 %v2076, 0.0019304542
      %v2109 = vmul.f32 %v2077, 0.0019304542
      %v2110 = vmul.f32 %v2078, 0.0019304542
      %v2111 = vmul.f32 %v2079, 0.0019304542
      %v2112 = vmul.f32 %v2080, 0.0019304542
      %v2113 = vmul.f32 %v2081, 0.0019304542
      %v2114 = vmul.f32 %v2082, 0.0019304542
      %v2115 = vmul.f32 %v2083, 0.0019304542
      %v2116 = vmul.f32 %v2084, 0.0019304542
      %v2117 = vmul.f32 %v2085, 0.0019304542
      %v2118 = vmul.f32 %v2086, 0.0019304542
      %v2119 = vmul.f32 %v2087, 0.0019304542
      %v2120 = vmul.f32 %v2088, 0.0019304542
      %v2121 = vmul.f32 %v2089, 0.0019304542
      %v2122 = vmul.f32 %v2090, 0.0019304542
      %v2123 = vmul.f32 %v1196, %v1515
      %v2124 = vmul.f32 %v1198, %v1516
      %v2125 = vmul.f32 %v1200, %v1517
      %v2126 = vmul.f32 %v1202, %v1518
      %v2127 = vmul.f32 %v1204, %v1519
      %v2128 = vmul.f32 %v1206, %v1520
      %v2129 = vmul.f32 %v1208, %v1521
      %v2130 = vmul.f32 %v1210, %v1522
      %v2131 = vmul.f32 %v1212, %v1523
      %v2132 = vmul.f32 %v1214, %v1524
      %v2133 = vmul.f32 %v1216, %v1525
      %v2134 = vmul.f32 %v1218, %v1526
      %v2135 = vmul.f32 %v1220, %v1527
      %v2136 = vmul.f32 %v1222, %v1528
      %v2137 = vmul.f32 %v1224, %v1529
      %v2138 = vmul.f32 %v1226, %v1530
      %v2139 = vmul.f32 %v1228, %v1531
      %v2140 = vmul.f32 %v1230, %v1532
      %v2141 = vmul.f32 %v1232, %v1533
      %v2142 = vmul.f32 %v1234, %v1534
      %v2143 = vmul.f32 %v1236, %v1535
      %v2144 = vmul.f32 %v1238, %v1536
      %v2145 = vmul.f32 %v1240, %v1537
      %v2146 = vmul.f32 %v1242, %v1538
      %v2147 = vmul.f32 %v1244, %v1539
      %v2148 = vmul.f32 %v1246, %v1540
      %v2149 = vmul.f32 %v1248, %v1541
      %v2150 = vmul.f32 %v1250, %v1542
      %v2151 = vmul.f32 %v1252, %v1543
      %v2152 = vmul.f32 %v1254, %v1544
      %v2153 = vmul.f32 %v1256, %v1545
      %v2154 = vmul.f32 %v1258, %v1546
      %v2155 = vmul.f32 %v2123, 4.785117e-06
      %v2156 = vmul.f32 %v2124, 4.785117e-06
      %v2157 = vmul.f32 %v2125, 4.785117e-06
      %v2158 = vmul.f32 %v2126, 4.785117e-06
      %v2159 = vmul.f32 %v2127, 4.785117e-06
      %v2160 = vmul.f32 %v2128, 4.785117e-06
      %v2161 = vmul.f32 %v2129, 4.785117e-06
      %v2162 = vmul.f32 %v2130, 4.785117e-06
      %v2163 = vmul.f32 %v2131, 4.785117e-06
      %v2164 = vmul.f32 %v2132, 4.785117e-06
      %v2165 = vmul.f32 %v2133, 4.785117e-06
      %v2166 = vmul.f32 %v2134, 4.785117e-06
      %v2167 = vmul.f32 %v2135, 4.785117e-06
      %v2168 = vmul.f32 %v2136, 4.785117e-06
      %v2169 = vmul.f32 %v2137, 4.785117e-06
      %v2170 = vmul.f32 %v2138, 4.785117e-06
      %v2171 = vmul.f32 %v2139, 4.785117e-06
      %v2172 = vmul.f32 %v2140, 4.785117e-06
      %v2173 = vmul.f32 %v2141, 4.785117e-06
      %v2174 = vmul.f32 %v2142, 4.785117e-06
      %v2175 = vmul.f32 %v2143, 4.785117e-06
      %v2176 = vmul.f32 %v2144, 4.785117e-06
      %v2177 = vmul.f32 %v2145, 4.785117e-06
      %v2178 = vmul.f32 %v2146, 4.785117e-06
      %v2179 = vmul.f32 %v2147, 4.785117e-06
      %v2180 = vmul.f32 %v2148, 4.785117e-06
      %v2181 = vmul.f32 %v2149, 4.785117e-06
      %v2182 = vmul.f32 %v2150, 4.785117e-06
      %v2183 = vmul.f32 %v2151, 4.785117e-06
      %v2184 = vmul.f32 %v2152, 4.785117e-06
      %v2185 = vmul.f32 %v2153, 4.785117e-06
      %v2186 = vmul.f32 %v2154, 4.785117e-06
      %2219 = vrot.lane.b32.xlu0 %v1707, 36
      %v2220 = vpop.permute.xlu0 %2219
      %2221 = vrot.lane.b32.xlu0 %v1708, 36
      %v2222 = vpop.permute.xlu0 %2221
      %2223 = vrot.lane.b32.xlu0 %v1709, 36
      %v2224 = vpop.permute.xlu0 %2223
      %2225 = vrot.lane.b32.xlu0 %v1710, 36
      %v2226 = vpop.permute.xlu0 %2225
      %2227 = vrot.lane.b32.xlu0 %v1711, 36
      %v2228 = vpop.permute.xlu0 %2227
      %2229 = vrot.lane.b32.xlu0 %v1712, 36
      %v2230 = vpop.permute.xlu0 %2229
      %2231 = vrot.lane.b32.xlu0 %v1713, 36
      %v2232 = vpop.permute.xlu0 %2231
      %2233 = vrot.lane.b32.xlu0 %v1714, 36
      %v2234 = vpop.permute.xlu0 %2233
      %2235 = vrot.lane.b32.xlu0 %v1715, 36
      %v2236 = vpop.permute.xlu0 %2235
      %2237 = vrot.lane.b32.xlu0 %v1716, 36
      %v2238 = vpop.permute.xlu0 %2237
      %2239 = vrot.lane.b32.xlu0 %v1717, 36
      %v2240 = vpop.permute.xlu0 %2239
      %2241 = vrot.lane.b32.xlu0 %v1718, 36
      %v2242 = vpop.permute.xlu0 %2241
      %2243 = vrot.lane.b32.xlu0 %v1719, 36
      %v2244 = vpop.permute.xlu0 %2243
      %2245 = vrot.lane.b32.xlu0 %v1720, 36
      %v2246 = vpop.permute.xlu0 %2245
      %2247 = vrot.lane.b32.xlu0 %v1721, 36
      %v2248 = vpop.permute.xlu0 %2247
      %2249 = vrot.lane.b32.xlu0 %v1722, 36
      %v2250 = vpop.permute.xlu0 %2249
      %2251 = vrot.lane.b32.xlu0 %v1723, 36
      %v2252 = vpop.permute.xlu0 %2251
      %2253 = vrot.lane.b32.xlu0 %v1724, 36
      %v2254 = vpop.permute.xlu0 %2253
      %2255 = vrot.lane.b32.xlu0 %v1725, 36
      %v2256 = vpop.permute.xlu0 %2255
      %2257 = vrot.lane.b32.xlu0 %v1726, 36
      %v2258 = vpop.permute.xlu0 %2257
      %2259 = vrot.lane.b32.xlu0 %v1727, 36
      %v2260 = vpop.permute.xlu0 %2259
      %2261 = vrot.lane.b32.xlu0 %v1728, 36
      %v2262 = vpop.permute.xlu0 %2261
      %2263 = vrot.lane.b32.xlu0 %v1729, 36
      %v2264 = vpop.permute.xlu0 %2263
      %2265 = vrot.lane.b32.xlu0 %v1730, 36
      %v2266 = vpop.permute.xlu0 %2265
      %2267 = vrot.lane.b32.xlu0 %v1731, 36
      %v2268 = vpop.permute.xlu0 %2267
      %2269 = vrot.lane.b32.xlu0 %v1732, 36
      %v2270 = vpop.permute.xlu0 %2269
      %2271 = vrot.lane.b32.xlu0 %v1733, 36
      %v2272 = vpop.permute.xlu0 %2271
      %2273 = vrot.lane.b32.xlu0 %v1734, 36
      %v2274 = vpop.permute.xlu0 %2273
      %2275 = vrot.lane.b32.xlu0 %v1735, 36
      %v2276 = vpop.permute.xlu0 %2275
      %2277 = vrot.lane.b32.xlu0 %v1736, 36
      %v2278 = vpop.permute.xlu0 %2277
      %2279 = vrot.lane.b32.xlu0 %v1737, 36
      %v2280 = vpop.permute.xlu0 %2279
      %2281 = vrot.lane.b32.xlu0 %v1738, 36
      %v2282 = vpop.permute.xlu0 %2281
      %2347 = vrot.lane.b32.xlu0 %v1771, 72
      %v2348 = vpop.permute.xlu0 %2347
      %2349 = vrot.lane.b32.xlu0 %v1772, 72
      %v2350 = vpop.permute.xlu0 %2349
      %2351 = vrot.lane.b32.xlu0 %v1773, 72
      %v2352 = vpop.permute.xlu0 %2351
      %2353 = vrot.lane.b32.xlu0 %v1774, 72
      %v2354 = vpop.permute.xlu0 %2353
      %2355 = vrot.lane.b32.xlu0 %v1775, 72
      %v2356 = vpop.permute.xlu0 %2355
      %2357 = vrot.lane.b32.xlu0 %v1776, 72
      %v2358 = vpop.permute.xlu0 %2357
      %2359 = vrot.lane.b32.xlu0 %v1777, 72
      %v2360 = vpop.permute.xlu0 %2359
      %2361 = vrot.lane.b32.xlu0 %v1778, 72
      %v2362 = vpop.permute.xlu0 %2361
      %2363 = vrot.lane.b32.xlu0 %v1779, 72
      %v2364 = vpop.permute.xlu0 %2363
      %2365 = vrot.lane.b32.xlu0 %v1780, 72
      %v2366 = vpop.permute.xlu0 %2365
      %2367 = vrot.lane.b32.xlu0 %v1781, 72
      %v2368 = vpop.permute.xlu0 %2367
      %2369 = vrot.lane.b32.xlu0 %v1782, 72
      %v2370 = vpop.permute.xlu0 %2369
      %2371 = vrot.lane.b32.xlu0 %v1783, 72
      %v2372 = vpop.permute.xlu0 %2371
      %2373 = vrot.lane.b32.xlu0 %v1784, 72
      %v2374 = vpop.permute.xlu0 %2373
      %2375 = vrot.lane.b32.xlu0 %v1785, 72
      %v2376 = vpop.permute.xlu0 %2375
      %2377 = vrot.lane.b32.xlu0 %v1786, 72
      %v2378 = vpop.permute.xlu0 %2377
      %2379 = vrot.lane.b32.xlu0 %v1787, 72
      %v2380 = vpop.permute.xlu0 %2379
      %2381 = vrot.lane.b32.xlu0 %v1788, 72
      %v2382 = vpop.permute.xlu0 %2381
      %2383 = vrot.lane.b32.xlu0 %v1789, 72
      %v2384 = vpop.permute.xlu0 %2383
      %2385 = vrot.lane.b32.xlu0 %v1790, 72
      %v2386 = vpop.permute.xlu0 %2385
      %2387 = vrot.lane.b32.xlu0 %v1791, 72
      %v2388 = vpop.permute.xlu0 %2387
      %2389 = vrot.lane.b32.xlu0 %v1792, 72
      %v2390 = vpop.permute.xlu0 %2389
      %2391 = vrot.lane.b32.xlu0 %v1793, 72
      %v2392 = vpop.permute.xlu0 %2391
      %2393 = vrot.lane.b32.xlu0 %v1794, 72
      %v2394 = vpop.permute.xlu0 %2393
      %2395 = vrot.lane.b32.xlu0 %v1795, 72
      %v2396 = vpop.permute.xlu0 %2395
      %2397 = vrot.lane.b32.xlu0 %v1796, 72
      %v2398 = vpop.permute.xlu0 %2397
      %2399 = vrot.lane.b32.xlu0 %v1797, 72
      %v2400 = vpop.permute.xlu0 %2399
      %2401 = vrot.lane.b32.xlu0 %v1798, 72
      %v2402 = vpop.permute.xlu0 %2401
      %2403 = vrot.lane.b32.xlu0 %v1799, 72
      %v2404 = vpop.permute.xlu0 %2403
      %2405 = vrot.lane.b32.xlu0 %v1800, 72
      %v2406 = vpop.permute.xlu0 %2405
      %2407 = vrot.lane.b32.xlu0 %v1801, 72
      %v2408 = vpop.permute.xlu0 %2407
      %2409 = vrot.lane.b32.xlu0 %v1802, 72
      %v2410 = vpop.permute.xlu0 %2409
      %2475 = vrot.lane.b32.xlu0 %v1835, 108
      %v2476 = vpop.permute.xlu0 %2475
      %2477 = vrot.lane.b32.xlu0 %v1836, 108
      %v2478 = vpop.permute.xlu0 %2477
      %2479 = vrot.lane.b32.xlu0 %v1837, 108
      %v2480 = vpop.permute.xlu0 %2479
      %2481 = vrot.lane.b32.xlu0 %v1838, 108
      %v2482 = vpop.permute.xlu0 %2481
      %2483 = vrot.lane.b32.xlu0 %v1839, 108
      %v2484 = vpop.permute.xlu0 %2483
      %2485 = vrot.lane.b32.xlu0 %v1840, 108
      %v2486 = vpop.permute.xlu0 %2485
      %2487 = vrot.lane.b32.xlu0 %v1841, 108
      %v2488 = vpop.permute.xlu0 %2487
      %2489 = vrot.lane.b32.xlu0 %v1842, 108
      %v2490 = vpop.permute.xlu0 %2489
      %2491 = vrot.lane.b32.xlu0 %v1843, 108
      %v2492 = vpop.permute.xlu0 %2491
      %2493 = vrot.lane.b32.xlu0 %v1844, 108
      %v2494 = vpop.permute.xlu0 %2493
      %2495 = vrot.lane.b32.xlu0 %v1845, 108
      %v2496 = vpop.permute.xlu0 %2495
      %2497 = vrot.lane.b32.xlu0 %v1846, 108
      %v2498 = vpop.permute.xlu0 %2497
      %2499 = vrot.lane.b32.xlu0 %v1847, 108
      %v2500 = vpop.permute.xlu0 %2499
      %2501 = vrot.lane.b32.xlu0 %v1848, 108
      %v2502 = vpop.permute.xlu0 %2501
      %2503 = vrot.lane.b32.xlu0 %v1849, 108
      %v2504 = vpop.permute.xlu0 %2503
      %2505 = vrot.lane.b32.xlu0 %v1850, 108
      %v2506 = vpop.permute.xlu0 %2505
      %2507 = vrot.lane.b32.xlu0 %v1851, 108
      %v2508 = vpop.permute.xlu0 %2507
      %2509 = vrot.lane.b32.xlu0 %v1852, 108
      %v2510 = vpop.permute.xlu0 %2509
      %2511 = vrot.lane.b32.xlu0 %v1853, 108
      %v2512 = vpop.permute.xlu0 %2511
      %2513 = vrot.lane.b32.xlu0 %v1854, 108
      %v2514 = vpop.permute.xlu0 %2513
      %2515 = vrot.lane.b32.xlu0 %v1855, 108
      %v2516 = vpop.permute.xlu0 %2515
      %2517 = vrot.lane.b32.xlu0 %v1856, 108
      %v2518 = vpop.permute.xlu0 %2517
      %2519 = vrot.lane.b32.xlu0 %v1857, 108
      %v2520 = vpop.permute.xlu0 %2519
      %2521 = vrot.lane.b32.xlu0 %v1858, 108
      %v2522 = vpop.permute.xlu0 %2521
      %2523 = vrot.lane.b32.xlu0 %v1859, 108
      %v2524 = vpop.permute.xlu0 %2523
      %2525 = vrot.lane.b32.xlu0 %v1860, 108
      %v2526 = vpop.permute.xlu0 %2525
      %2527 = vrot.lane.b32.xlu0 %v1861, 108
      %v2528 = vpop.permute.xlu0 %2527
      %2529 = vrot.lane.b32.xlu0 %v1862, 108
      %v2530 = vpop.permute.xlu0 %2529
      %2531 = vrot.lane.b32.xlu0 %v1863, 108
      %v2532 = vpop.permute.xlu0 %2531
      %2533 = vrot.lane.b32.xlu0 %v1864, 108
      %v2534 = vpop.permute.xlu0 %2533
      %2535 = vrot.lane.b32.xlu0 %v1865, 108
      %v2536 = vpop.permute.xlu0 %2535
      %2537 = vrot.lane.b32.xlu0 %v1866, 108
      %v2538 = vpop.permute.xlu0 %2537
      %2603 = vrot.lane.b32.xlu0 %v1899, 16
      %v2604 = vpop.permute.xlu0 %2603
      %2605 = vrot.lane.b32.xlu0 %v1900, 16
      %v2606 = vpop.permute.xlu0 %2605
      %2607 = vrot.lane.b32.xlu0 %v1901, 16
      %v2608 = vpop.permute.xlu0 %2607
      %2609 = vrot.lane.b32.xlu0 %v1902, 16
      %v2610 = vpop.permute.xlu0 %2609
      %2611 = vrot.lane.b32.xlu0 %v1903, 16
      %v2612 = vpop.permute.xlu0 %2611
      %2613 = vrot.lane.b32.xlu0 %v1904, 16
      %v2614 = vpop.permute.xlu0 %2613
      %2615 = vrot.lane.b32.xlu0 %v1905, 16
      %v2616 = vpop.permute.xlu0 %2615
      %2617 = vrot.lane.b32.xlu0 %v1906, 16
      %v2618 = vpop.permute.xlu0 %2617
      %2619 = vrot.lane.b32.xlu0 %v1907, 16
      %v2620 = vpop.permute.xlu0 %2619
      %2621 = vrot.lane.b32.xlu0 %v1908, 16
      %v2622 = vpop.permute.xlu0 %2621
      %2623 = vrot.lane.b32.xlu0 %v1909, 16
      %v2624 = vpop.permute.xlu0 %2623
      %2625 = vrot.lane.b32.xlu0 %v1910, 16
      %v2626 = vpop.permute.xlu0 %2625
      %2627 = vrot.lane.b32.xlu0 %v1911, 16
      %v2628 = vpop.permute.xlu0 %2627
      %2629 = vrot.lane.b32.xlu0 %v1912, 16
      %v2630 = vpop.permute.xlu0 %2629
      %2631 = vrot.lane.b32.xlu0 %v1913, 16
      %v2632 = vpop.permute.xlu0 %2631
      %2633 = vrot.lane.b32.xlu0 %v1914, 16
      %v2634 = vpop.permute.xlu0 %2633
      %2635 = vrot.lane.b32.xlu0 %v1915, 16
      %v2636 = vpop.permute.xlu0 %2635
      %2637 = vrot.lane.b32.xlu0 %v1916, 16
      %v2638 = vpop.permute.xlu0 %2637
      %2639 = vrot.lane.b32.xlu0 %v1917, 16
      %v2640 = vpop.permute.xlu0 %2639
      %2641 = vrot.lane.b32.xlu0 %v1918, 16
      %v2642 = vpop.permute.xlu0 %2641
      %2643 = vrot.lane.b32.xlu0 %v1919, 16
      %v2644 = vpop.permute.xlu0 %2643
      %2645 = vrot.lane.b32.xlu0 %v1920, 16
      %v2646 = vpop.permute.xlu0 %2645
      %2647 = vrot.lane.b32.xlu0 %v1921, 16
      %v2648 = vpop.permute.xlu0 %2647
      %2649 = vrot.lane.b32.xlu0 %v1922, 16
      %v2650 = vpop.permute.xlu0 %2649
      %2651 = vrot.lane.b32.xlu0 %v1923, 16
      %v2652 = vpop.permute.xlu0 %2651
      %2653 = vrot.lane.b32.xlu0 %v1924, 16
      %v2654 = vpop.permute.xlu0 %2653
      %2655 = vrot.lane.b32.xlu0 %v1925, 16
      %v2656 = vpop.permute.xlu0 %2655
      %2657 = vrot.lane.b32.xlu0 %v1926, 16
      %v2658 = vpop.permute.xlu0 %2657
      %2659 = vrot.lane.b32.xlu0 %v1927, 16
      %v2660 = vpop.permute.xlu0 %2659
      %2661 = vrot.lane.b32.xlu0 %v1928, 16
      %v2662 = vpop.permute.xlu0 %2661
      %2663 = vrot.lane.b32.xlu0 %v1929, 16
      %v2664 = vpop.permute.xlu0 %2663
      %2665 = vrot.lane.b32.xlu0 %v1930, 16
      %v2666 = vpop.permute.xlu0 %2665
      %2731 = vrot.lane.b32.xlu0 %v1963, 52
      %v2732 = vpop.permute.xlu0 %2731
      %2733 = vrot.lane.b32.xlu0 %v1964, 52
      %v2734 = vpop.permute.xlu0 %2733
      %2735 = vrot.lane.b32.xlu0 %v1965, 52
      %v2736 = vpop.permute.xlu0 %2735
      %2737 = vrot.lane.b32.xlu0 %v1966, 52
      %v2738 = vpop.permute.xlu0 %2737
      %2739 = vrot.lane.b32.xlu0 %v1967, 52
      %v2740 = vpop.permute.xlu0 %2739
      %2741 = vrot.lane.b32.xlu0 %v1968, 52
      %v2742 = vpop.permute.xlu0 %2741
      %2743 = vrot.lane.b32.xlu0 %v1969, 52
      %v2744 = vpop.permute.xlu0 %2743
      %2745 = vrot.lane.b32.xlu0 %v1970, 52
      %v2746 = vpop.permute.xlu0 %2745
      %2747 = vrot.lane.b32.xlu0 %v1971, 52
      %v2748 = vpop.permute.xlu0 %2747
      %2749 = vrot.lane.b32.xlu0 %v1972, 52
      %v2750 = vpop.permute.xlu0 %2749
      %2751 = vrot.lane.b32.xlu0 %v1973, 52
      %v2752 = vpop.permute.xlu0 %2751
      %2753 = vrot.lane.b32.xlu0 %v1974, 52
      %v2754 = vpop.permute.xlu0 %2753
      %2755 = vrot.lane.b32.xlu0 %v1975, 52
      %v2756 = vpop.permute.xlu0 %2755
      %2757 = vrot.lane.b32.xlu0 %v1976, 52
      %v2758 = vpop.permute.xlu0 %2757
      %2759 = vrot.lane.b32.xlu0 %v1977, 52
      %v2760 = vpop.permute.xlu0 %2759
      %2761 = vrot.lane.b32.xlu0 %v1978, 52
      %v2762 = vpop.permute.xlu0 %2761
      %2763 = vrot.lane.b32.xlu0 %v1979, 52
      %v2764 = vpop.permute.xlu0 %2763
      %2765 = vrot.lane.b32.xlu0 %v1980, 52
      %v2766 = vpop.permute.xlu0 %2765
      %2767 = vrot.lane.b32.xlu0 %v1981, 52
      %v2768 = vpop.permute.xlu0 %2767
      %2769 = vrot.lane.b32.xlu0 %v1982, 52
      %v2770 = vpop.permute.xlu0 %2769
      %2771 = vrot.lane.b32.xlu0 %v1983, 52
      %v2772 = vpop.permute.xlu0 %2771
      %2773 = vrot.lane.b32.xlu0 %v1984, 52
      %v2774 = vpop.permute.xlu0 %2773
      %2775 = vrot.lane.b32.xlu0 %v1985, 52
      %v2776 = vpop.permute.xlu0 %2775
      %2777 = vrot.lane.b32.xlu0 %v1986, 52
      %v2778 = vpop.permute.xlu0 %2777
      %2779 = vrot.lane.b32.xlu0 %v1987, 52
      %v2780 = vpop.permute.xlu0 %2779
      %2781 = vrot.lane.b32.xlu0 %v1988, 52
      %v2782 = vpop.permute.xlu0 %2781
      %2783 = vrot.lane.b32.xlu0 %v1989, 52
      %v2784 = vpop.permute.xlu0 %2783
      %2785 = vrot.lane.b32.xlu0 %v1990, 52
      %v2786 = vpop.permute.xlu0 %2785
      %2787 = vrot.lane.b32.xlu0 %v1991, 52
      %v2788 = vpop.permute.xlu0 %2787
      %2789 = vrot.lane.b32.xlu0 %v1992, 52
      %v2790 = vpop.permute.xlu0 %2789
      %2791 = vrot.lane.b32.xlu0 %v1993, 52
      %v2792 = vpop.permute.xlu0 %2791
      %2793 = vrot.lane.b32.xlu0 %v1994, 52
      %v2794 = vpop.permute.xlu0 %2793
      %2859 = vrot.lane.b32.xlu0 %v2027, 88
      %v2860 = vpop.permute.xlu0 %2859
      %2861 = vrot.lane.b32.xlu0 %v2028, 88
      %v2862 = vpop.permute.xlu0 %2861
      %2863 = vrot.lane.b32.xlu0 %v2029, 88
      %v2864 = vpop.permute.xlu0 %2863
      %2865 = vrot.lane.b32.xlu0 %v2030, 88
      %v2866 = vpop.permute.xlu0 %2865
      %2867 = vrot.lane.b32.xlu0 %v2031, 88
      %v2868 = vpop.permute.xlu0 %2867
      %2869 = vrot.lane.b32.xlu0 %v2032, 88
      %v2870 = vpop.permute.xlu0 %2869
      %2871 = vrot.lane.b32.xlu0 %v2033, 88
      %v2872 = vpop.permute.xlu0 %2871
      %2873 = vrot.lane.b32.xlu0 %v2034, 88
      %v2874 = vpop.permute.xlu0 %2873
      %2875 = vrot.lane.b32.xlu0 %v2035, 88
      %v2876 = vpop.permute.xlu0 %2875
      %2877 = vrot.lane.b32.xlu0 %v2036, 88
      %v2878 = vpop.permute.xlu0 %2877
      %2879 = vrot.lane.b32.xlu0 %v2037, 88
      %v2880 = vpop.permute.xlu0 %2879
      %2881 = vrot.lane.b32.xlu0 %v2038, 88
      %v2882 = vpop.permute.xlu0 %2881
      %2883 = vrot.lane.b32.xlu0 %v2039, 88
      %v2884 = vpop.permute.xlu0 %2883
      %2885 = vrot.lane.b32.xlu0 %v2040, 88
      %v2886 = vpop.permute.xlu0 %2885
      %2887 = vrot.lane.b32.xlu0 %v2041, 88
      %v2888 = vpop.permute.xlu0 %2887
      %2889 = vrot.lane.b32.xlu0 %v2042, 88
      %v2890 = vpop.permute.xlu0 %2889
      %2891 = vrot.lane.b32.xlu0 %v2043, 88
      %v2892 = vpop.permute.xlu0 %2891
      %2893 = vrot.lane.b32.xlu0 %v2044, 88
      %v2894 = vpop.permute.xlu0 %2893
      %2895 = vrot.lane.b32.xlu0 %v2045, 88
      %v2896 = vpop.permute.xlu0 %2895
      %2897 = vrot.lane.b32.xlu0 %v2046, 88
      %v2898 = vpop.permute.xlu0 %2897
      %2899 = vrot.lane.b32.xlu0 %v2047, 88
      %v2900 = vpop.permute.xlu0 %2899
      %2901 = vrot.lane.b32.xlu0 %v2048, 88
      %v2902 = vpop.permute.xlu0 %2901
      %2903 = vrot.lane.b32.xlu0 %v2049, 88
      %v2904 = vpop.permute.xlu0 %2903
      %2905 = vrot.lane.b32.xlu0 %v2050, 88
      %v2906 = vpop.permute.xlu0 %2905
      %2907 = vrot.lane.b32.xlu0 %v2051, 88
      %v2908 = vpop.permute.xlu0 %2907
      %2909 = vrot.lane.b32.xlu0 %v2052, 88
      %v2910 = vpop.permute.xlu0 %2909
      %2911 = vrot.lane.b32.xlu0 %v2053, 88
      %v2912 = vpop.permute.xlu0 %2911
      %2913 = vrot.lane.b32.xlu0 %v2054, 88
      %v2914 = vpop.permute.xlu0 %2913
      %2915 = vrot.lane.b32.xlu0 %v2055, 88
      %v2916 = vpop.permute.xlu0 %2915
      %2917 = vrot.lane.b32.xlu0 %v2056, 88
      %v2918 = vpop.permute.xlu0 %2917
      %2919 = vrot.lane.b32.xlu0 %v2057, 88
      %v2920 = vpop.permute.xlu0 %2919
      %2921 = vrot.lane.b32.xlu0 %v2058, 88
      %v2922 = vpop.permute.xlu0 %2921
      %2987 = vrot.lane.b32.xlu0 %v2091, 124
      %v2988 = vpop.permute.xlu0 %2987
      %2989 = vrot.lane.b32.xlu0 %v2092, 124
      %v2990 = vpop.permute.xlu0 %2989
      %2991 = vrot.lane.b32.xlu0 %v2093, 124
      %v2992 = vpop.permute.xlu0 %2991
      %2993 = vrot.lane.b32.xlu0 %v2094, 124
      %v2994 = vpop.permute.xlu0 %2993
      %2995 = vrot.lane.b32.xlu0 %v2095, 124
      %v2996 = vpop.permute.xlu0 %2995
      %2997 = vrot.lane.b32.xlu0 %v2096, 124
      %v2998 = vpop.permute.xlu0 %2997
      %2999 = vrot.lane.b32.xlu0 %v2097, 124
      %v3000 = vpop.permute.xlu0 %2999
      %3001 = vrot.lane.b32.xlu0 %v2098, 124
      %v3002 = vpop.permute.xlu0 %3001
      %3003 = vrot.lane.b32.xlu0 %v2099, 124
      %v3004 = vpop.permute.xlu0 %3003
      %3005 = vrot.lane.b32.xlu0 %v2100, 124
      %v3006 = vpop.permute.xlu0 %3005
      %3007 = vrot.lane.b32.xlu0 %v2101, 124
      %v3008 = vpop.permute.xlu0 %3007
      %3009 = vrot.lane.b32.xlu0 %v2102, 124
      %v3010 = vpop.permute.xlu0 %3009
      %3011 = vrot.lane.b32.xlu0 %v2103, 124
      %v3012 = vpop.permute.xlu0 %3011
      %3013 = vrot.lane.b32.xlu0 %v2104, 124
      %v3014 = vpop.permute.xlu0 %3013
      %3015 = vrot.lane.b32.xlu0 %v2105, 124
      %v3016 = vpop.permute.xlu0 %3015
      %3017 = vrot.lane.b32.xlu0 %v2106, 124
      %v3018 = vpop.permute.xlu0 %3017
      %3019 = vrot.lane.b32.xlu0 %v2107, 124
      %v3020 = vpop.permute.xlu0 %3019
      %3021 = vrot.lane.b32.xlu0 %v2108, 124
      %v3022 = vpop.permute.xlu0 %3021
      %3023 = vrot.lane.b32.xlu0 %v2109, 124
      %v3024 = vpop.permute.xlu0 %3023
      %3025 = vrot.lane.b32.xlu0 %v2110, 124
      %v3026 = vpop.permute.xlu0 %3025
      %3027 = vrot.lane.b32.xlu0 %v2111, 124
      %v3028 = vpop.permute.xlu0 %3027
      %3029 = vrot.lane.b32.xlu0 %v2112, 124
      %v3030 = vpop.permute.xlu0 %3029
      %3031 = vrot.lane.b32.xlu0 %v2113, 124
      %v3032 = vpop.permute.xlu0 %3031
      %3033 = vrot.lane.b32.xlu0 %v2114, 124
      %v3034 = vpop.permute.xlu0 %3033
      %3035 = vrot.lane.b32.xlu0 %v2115, 124
      %v3036 = vpop.permute.xlu0 %3035
      %3037 = vrot.lane.b32.xlu0 %v2116, 124
      %v3038 = vpop.permute.xlu0 %3037
      %3039 = vrot.lane.b32.xlu0 %v2117, 124
      %v3040 = vpop.permute.xlu0 %3039
      %3041 = vrot.lane.b32.xlu0 %v2118, 124
      %v3042 = vpop.permute.xlu0 %3041
      %3043 = vrot.lane.b32.xlu0 %v2119, 124
      %v3044 = vpop.permute.xlu0 %3043
      %3045 = vrot.lane.b32.xlu0 %v2120, 124
      %v3046 = vpop.permute.xlu0 %3045
      %3047 = vrot.lane.b32.xlu0 %v2121, 124
      %v3048 = vpop.permute.xlu0 %3047
      %3049 = vrot.lane.b32.xlu0 %v2122, 124
      %v3050 = vpop.permute.xlu0 %3049
      %3115 = vrot.lane.b32.xlu0 %v2155, 32
      %v3116 = vpop.permute.xlu0 %3115
      %3117 = vrot.lane.b32.xlu0 %v2156, 32
      %v3118 = vpop.permute.xlu0 %3117
      %3119 = vrot.lane.b32.xlu0 %v2157, 32
      %v3120 = vpop.permute.xlu0 %3119
      %3121 = vrot.lane.b32.xlu0 %v2158, 32
      %v3122 = vpop.permute.xlu0 %3121
      %3123 = vrot.lane.b32.xlu0 %v2159, 32
      %v3124 = vpop.permute.xlu0 %3123
      %3125 = vrot.lane.b32.xlu0 %v2160, 32
      %v3126 = vpop.permute.xlu0 %3125
      %3127 = vrot.lane.b32.xlu0 %v2161, 32
      %v3128 = vpop.permute.xlu0 %3127
      %3129 = vrot.lane.b32.xlu0 %v2162, 32
      %v3130 = vpop.permute.xlu0 %3129
      %3131 = vrot.lane.b32.xlu0 %v2163, 32
      %v3132 = vpop.permute.xlu0 %3131
      %3133 = vrot.lane.b32.xlu0 %v2164, 32
      %v3134 = vpop.permute.xlu0 %3133
      %3135 = vrot.lane.b32.xlu0 %v2165, 32
      %v3136 = vpop.permute.xlu0 %3135
      %3137 = vrot.lane.b32.xlu0 %v2166, 32
      %v3138 = vpop.permute.xlu0 %3137
      %3139 = vrot.lane.b32.xlu0 %v2167, 32
      %v3140 = vpop.permute.xlu0 %3139
      %3141 = vrot.lane.b32.xlu0 %v2168, 32
      %v3142 = vpop.permute.xlu0 %3141
      %3143 = vrot.lane.b32.xlu0 %v2169, 32
      %v3144 = vpop.permute.xlu0 %3143
      %3145 = vrot.lane.b32.xlu0 %v2170, 32
      %v3146 = vpop.permute.xlu0 %3145
      %3147 = vrot.lane.b32.xlu0 %v2171, 32
      %v3148 = vpop.permute.xlu0 %3147
      %3149 = vrot.lane.b32.xlu0 %v2172, 32
      %v3150 = vpop.permute.xlu0 %3149
      %3151 = vrot.lane.b32.xlu0 %v2173, 32
      %v3152 = vpop.permute.xlu0 %3151
      %3153 = vrot.lane.b32.xlu0 %v2174, 32
      %v3154 = vpop.permute.xlu0 %3153
      %3155 = vrot.lane.b32.xlu0 %v2175, 32
      %v3156 = vpop.permute.xlu0 %3155
      %3157 = vrot.lane.b32.xlu0 %v2176, 32
      %v3158 = vpop.permute.xlu0 %3157
      %3159 = vrot.lane.b32.xlu0 %v2177, 32
      %v3160 = vpop.permute.xlu0 %3159
      %3161 = vrot.lane.b32.xlu0 %v2178, 32
      %v3162 = vpop.permute.xlu0 %3161
      %3163 = vrot.lane.b32.xlu0 %v2179, 32
      %v3164 = vpop.permute.xlu0 %3163
      %3165 = vrot.lane.b32.xlu0 %v2180, 32
      %v3166 = vpop.permute.xlu0 %3165
      %3167 = vrot.lane.b32.xlu0 %v2181, 32
      %v3168 = vpop.permute.xlu0 %3167
      %3169 = vrot.lane.b32.xlu0 %v2182, 32
      %v3170 = vpop.permute.xlu0 %3169
      %3171 = vrot.lane.b32.xlu0 %v2183, 32
      %v3172 = vpop.permute.xlu0 %3171
      %3173 = vrot.lane.b32.xlu0 %v2184, 32
      %v3174 = vpop.permute.xlu0 %3173
      %3175 = vrot.lane.b32.xlu0 %v2185, 32
      %v3176 = vpop.permute.xlu0 %3175
      %3177 = vrot.lane.b32.xlu0 %v2186, 32
      %v3178 = vpop.permute.xlu0 %3177
      %v3211 = vsel %vm539, %v507, %v2220
      %v3212 = vsel %vm539, %v508, %v2222
      %v3213 = vsel %vm539, %v509, %v2224
      %v3214 = vsel %vm539, %v510, %v2226
      %v3215 = vsel %vm539, %v511, %v2228
      %v3216 = vsel %vm539, %v512, %v2230
      %v3217 = vsel %vm539, %v513, %v2232
      %v3218 = vsel %vm539, %v514, %v2234
      %v3219 = vsel %vm539, %v515, %v2236
      %v3220 = vsel %vm539, %v516, %v2238
      %v3221 = vsel %vm539, %v517, %v2240
      %v3222 = vsel %vm539, %v518, %v2242
      %v3223 = vsel %vm539, %v519, %v2244
      %v3224 = vsel %vm539, %v520, %v2246
      %v3225 = vsel %vm539, %v521, %v2248
      %v3226 = vsel %vm539, %v522, %v2250
      %v3227 = vsel %vm539, %v523, %v2252
      %v3228 = vsel %vm539, %v524, %v2254
      %v3229 = vsel %vm539, %v525, %v2256
      %v3230 = vsel %vm539, %v526, %v2258
      %v3231 = vsel %vm539, %v527, %v2260
      %v3232 = vsel %vm539, %v528, %v2262
      %v3233 = vsel %vm539, %v529, %v2264
      %v3234 = vsel %vm539, %v530, %v2266
      %v3235 = vsel %vm539, %v531, %v2268
      %v3236 = vsel %vm539, %v532, %v2270
      %v3237 = vsel %vm539, %v533, %v2272
      %v3238 = vsel %vm539, %v534, %v2274
      %v3239 = vsel %vm539, %v535, %v2276
      %v3240 = vsel %vm539, %v536, %v2278
      %v3241 = vsel %vm539, %v537, %v2280
      %v3242 = vsel %vm539, %v538, %v2282
      %vm3243 = vcmask 588800
      %v3244 = vsel %vm3243, %v3211, %v2348
      %v3245 = vsel %vm3243, %v3212, %v2350
      %v3246 = vsel %vm3243, %v3213, %v2352
      %v3247 = vsel %vm3243, %v3214, %v2354
      %v3248 = vsel %vm3243, %v3215, %v2356
      %v3249 = vsel %vm3243, %v3216, %v2358
      %v3250 = vsel %vm3243, %v3217, %v2360
      %v3251 = vsel %vm3243, %v3218, %v2362
      %v3252 = vsel %vm3243, %v3219, %v2364
      %v3253 = vsel %vm3243, %v3220, %v2366
      %v3254 = vsel %vm3243, %v3221, %v2368
      %v3255 = vsel %vm3243, %v3222, %v2370
      %v3256 = vsel %vm3243, %v3223, %v2372
      %v3257 = vsel %vm3243, %v3224, %v2374
      %v3258 = vsel %vm3243, %v3225, %v2376
      %v3259 = vsel %vm3243, %v3226, %v2378
      %v3260 = vsel %vm3243, %v3227, %v2380
      %v3261 = vsel %vm3243, %v3228, %v2382
      %v3262 = vsel %vm3243, %v3229, %v2384
      %v3263 = vsel %vm3243, %v3230, %v2386
      %v3264 = vsel %vm3243, %v3231, %v2388
      %v3265 = vsel %vm3243, %v3232, %v2390
      %v3266 = vsel %vm3243, %v3233, %v2392
      %v3267 = vsel %vm3243, %v3234, %v2394
      %v3268 = vsel %vm3243, %v3235, %v2396
      %v3269 = vsel %vm3243, %v3236, %v2398
      %v3270 = vsel %vm3243, %v3237, %v2400
      %v3271 = vsel %vm3243, %v3238, %v2402
      %v3272 = vsel %vm3243, %v3239, %v2404
      %v3273 = vsel %vm3243, %v3240, %v2406
      %v3274 = vsel %vm3243, %v3241, %v2408
      %v3275 = vsel %vm3243, %v3242, %v2410
      %vm3276 = vcmask 883712
      %v3277 = vsel %vm3276, %v3244, %v2476
      %v3278 = vsel %vm3276, %v3245, %v2478
      %v3279 = vsel %vm3276, %v3246, %v2480
      %v3280 = vsel %vm3276, %v3247, %v2482
      %v3281 = vsel %vm3276, %v3248, %v2484
      %v3282 = vsel %vm3276, %v3249, %v2486
      %v3283 = vsel %vm3276, %v3250, %v2488
      %v3284 = vsel %vm3276, %v3251, %v2490
      %v3285 = vsel %vm3276, %v3252, %v2492
      %v3286 = vsel %vm3276, %v3253, %v2494
      %v3287 = vsel %vm3276, %v3254, %v2496
      %v3288 = vsel %vm3276, %v3255, %v2498
      %v3289 = vsel %vm3276, %v3256, %v2500
      %v3290 = vsel %vm3276, %v3257, %v2502
      %v3291 = vsel %vm3276, %v3258, %v2504
      %v3292 = vsel %vm3276, %v3259, %v2506
      %v3293 = vsel %vm3276, %v3260, %v2508
      %v3294 = vsel %vm3276, %v3261, %v2510
      %v3295 = vsel %vm3276, %v3262, %v2512
      %v3296 = vsel %vm3276, %v3263, %v2514
      %v3297 = vsel %vm3276, %v3264, %v2516
      %v3298 = vsel %vm3276, %v3265, %v2518
      %v3299 = vsel %vm3276, %v3266, %v2520
      %v3300 = vsel %vm3276, %v3267, %v2522
      %v3301 = vsel %vm3276, %v3268, %v2524
      %v3302 = vsel %vm3276, %v3269, %v2526
      %v3303 = vsel %vm3276, %v3270, %v2528
      %v3304 = vsel %vm3276, %v3271, %v2530
      %v3305 = vsel %vm3276, %v3272, %v2532
      %v3306 = vsel %vm3276, %v3273, %v2534
      %v3307 = vsel %vm3276, %v3274, %v2536
      %v3308 = vsel %vm3276, %v3275, %v2538
      %vm3309 = vcmask 130048
      %v3310 = vsel %vm3309, %v2476, %v2604
      %v3311 = vsel %vm3309, %v2478, %v2606
      %v3312 = vsel %vm3309, %v2480, %v2608
      %v3313 = vsel %vm3309, %v2482, %v2610
      %v3314 = vsel %vm3309, %v2484, %v2612
      %v3315 = vsel %vm3309, %v2486, %v2614
      %v3316 = vsel %vm3309, %v2488, %v2616
      %v3317 = vsel %vm3309, %v2490, %v2618
      %v3318 = vsel %vm3309, %v2492, %v2620
      %v3319 = vsel %vm3309, %v2494, %v2622
      %v3320 = vsel %vm3309, %v2496, %v2624
      %v3321 = vsel %vm3309, %v2498, %v2626
      %v3322 = vsel %vm3309, %v2500, %v2628
      %v3323 = vsel %vm3309, %v2502, %v2630
      %v3324 = vsel %vm3309, %v2504, %v2632
      %v3325 = vsel %vm3309, %v2506, %v2634
      %v3326 = vsel %vm3309, %v2508, %v2636
      %v3327 = vsel %vm3309, %v2510, %v2638
      %v3328 = vsel %vm3309, %v2512, %v2640
      %v3329 = vsel %vm3309, %v2514, %v2642
      %v3330 = vsel %vm3309, %v2516, %v2644
      %v3331 = vsel %vm3309, %v2518, %v2646
      %v3332 = vsel %vm3309, %v2520, %v2648
      %v3333 = vsel %vm3309, %v2522, %v2650
      %v3334 = vsel %vm3309, %v2524, %v2652
      %v3335 = vsel %vm3309, %v2526, %v2654
      %v3336 = vsel %vm3309, %v2528, %v2656
      %v3337 = vsel %vm3309, %v2530, %v2658
      %v3338 = vsel %vm3309, %v2532, %v2660
      %v3339 = vsel %vm3309, %v2534, %v2662
      %v3340 = vsel %vm3309, %v2536, %v2664
      %v3341 = vsel %vm3309, %v2538, %v2666
      %vm3342 = vcmask 424960
      %v3343 = vsel %vm3342, %v3310, %v2732
      %v3344 = vsel %vm3342, %v3311, %v2734
      %v3345 = vsel %vm3342, %v3312, %v2736
      %v3346 = vsel %vm3342, %v3313, %v2738
      %v3347 = vsel %vm3342, %v3314, %v2740
      %v3348 = vsel %vm3342, %v3315, %v2742
      %v3349 = vsel %vm3342, %v3316, %v2744
      %v3350 = vsel %vm3342, %v3317, %v2746
      %v3351 = vsel %vm3342, %v3318, %v2748
      %v3352 = vsel %vm3342, %v3319, %v2750
      %v3353 = vsel %vm3342, %v3320, %v2752
      %v3354 = vsel %vm3342, %v3321, %v2754
      %v3355 = vsel %vm3342, %v3322, %v2756
      %v3356 = vsel %vm3342, %v3323, %v2758
      %v3357 = vsel %vm3342, %v3324, %v2760
      %v3358 = vsel %vm3342, %v3325, %v2762
      %v3359 = vsel %vm3342, %v3326, %v2764
      %v3360 = vsel %vm3342, %v3327, %v2766
      %v3361 = vsel %vm3342, %v3328, %v2768
      %v3362 = vsel %vm3342, %v3329, %v2770
      %v3363 = vsel %vm3342, %v3330, %v2772
      %v3364 = vsel %vm3342, %v3331, %v2774
      %v3365 = vsel %vm3342, %v3332, %v2776
      %v3366 = vsel %vm3342, %v3333, %v2778
      %v3367 = vsel %vm3342, %v3334, %v2780
      %v3368 = vsel %vm3342, %v3335, %v2782
      %v3369 = vsel %vm3342, %v3336, %v2784
      %v3370 = vsel %vm3342, %v3337, %v2786
      %v3371 = vsel %vm3342, %v3338, %v2788
      %v3372 = vsel %vm3342, %v3339, %v2790
      %v3373 = vsel %vm3342, %v3340, %v2792
      %v3374 = vsel %vm3342, %v3341, %v2794
      %vm3375 = vcmask 719872
      %v3376 = vsel %vm3375, %v3343, %v2860
      %v3377 = vsel %vm3375, %v3344, %v2862
      %v3378 = vsel %vm3375, %v3345, %v2864
      %v3379 = vsel %vm3375, %v3346, %v2866
      %v3380 = vsel %vm3375, %v3347, %v2868
      %v3381 = vsel %vm3375, %v3348, %v2870
      %v3382 = vsel %vm3375, %v3349, %v2872
      %v3383 = vsel %vm3375, %v3350, %v2874
      %v3384 = vsel %vm3375, %v3351, %v2876
      %v3385 = vsel %vm3375, %v3352, %v2878
      %v3386 = vsel %vm3375, %v3353, %v2880
      %v3387 = vsel %vm3375, %v3354, %v2882
      %v3388 = vsel %vm3375, %v3355, %v2884
      %v3389 = vsel %vm3375, %v3356, %v2886
      %v3390 = vsel %vm3375, %v3357, %v2888
      %v3391 = vsel %vm3375, %v3358, %v2890
      %v3392 = vsel %vm3375, %v3359, %v2892
      %v3393 = vsel %vm3375, %v3360, %v2894
      %v3394 = vsel %vm3375, %v3361, %v2896
      %v3395 = vsel %vm3375, %v3362, %v2898
      %v3396 = vsel %vm3375, %v3363, %v2900
      %v3397 = vsel %vm3375, %v3364, %v2902
      %v3398 = vsel %vm3375, %v3365, %v2904
      %v3399 = vsel %vm3375, %v3366, %v2906
      %v3400 = vsel %vm3375, %v3367, %v2908
      %v3401 = vsel %vm3375, %v3368, %v2910
      %v3402 = vsel %vm3375, %v3369, %v2912
      %v3403 = vsel %vm3375, %v3370, %v2914
      %v3404 = vsel %vm3375, %v3371, %v2916
      %v3405 = vsel %vm3375, %v3372, %v2918
      %v3406 = vsel %vm3375, %v3373, %v2920
      %v3407 = vsel %vm3375, %v3374, %v2922
      %vm3408 = vcmask 1014784
      %v3409 = vsel %vm3408, %v3376, %v2988
      %v3410 = vsel %vm3408, %v3377, %v2990
      %v3411 = vsel %vm3408, %v3378, %v2992
      %v3412 = vsel %vm3408, %v3379, %v2994
      %v3413 = vsel %vm3408, %v3380, %v2996
      %v3414 = vsel %vm3408, %v3381, %v2998
      %v3415 = vsel %vm3408, %v3382, %v3000
      %v3416 = vsel %vm3408, %v3383, %v3002
      %v3417 = vsel %vm3408, %v3384, %v3004
      %v3418 = vsel %vm3408, %v3385, %v3006
      %v3419 = vsel %vm3408, %v3386, %v3008
      %v3420 = vsel %vm3408, %v3387, %v3010
      %v3421 = vsel %vm3408, %v3388, %v3012
      %v3422 = vsel %vm3408, %v3389, %v3014
      %v3423 = vsel %vm3408, %v3390, %v3016
      %v3424 = vsel %vm3408, %v3391, %v3018
      %v3425 = vsel %vm3408, %v3392, %v3020
      %v3426 = vsel %vm3408, %v3393, %v3022
      %v3427 = vsel %vm3408, %v3394, %v3024
      %v3428 = vsel %vm3408, %v3395, %v3026
      %v3429 = vsel %vm3408, %v3396, %v3028
      %v3430 = vsel %vm3408, %v3397, %v3030
      %v3431 = vsel %vm3408, %v3398, %v3032
      %v3432 = vsel %vm3408, %v3399, %v3034
      %v3433 = vsel %vm3408, %v3400, %v3036
      %v3434 = vsel %vm3408, %v3401, %v3038
      %v3435 = vsel %vm3408, %v3402, %v3040
      %v3436 = vsel %vm3408, %v3403, %v3042
      %v3437 = vsel %vm3408, %v3404, %v3044
      %v3438 = vsel %vm3408, %v3405, %v3046
      %v3439 = vsel %vm3408, %v3406, %v3048
      %v3440 = vsel %vm3408, %v3407, %v3050
      %vm3441 = vcmask 261120
      %v3442 = vsel %vm3441, %v2988, %v3116
      %v3443 = vsel %vm3441, %v2990, %v3118
      %v3444 = vsel %vm3441, %v2992, %v3120
      %v3445 = vsel %vm3441, %v2994, %v3122
      %v3446 = vsel %vm3441, %v2996, %v3124
      %v3447 = vsel %vm3441, %v2998, %v3126
      %v3448 = vsel %vm3441, %v3000, %v3128
      %v3449 = vsel %vm3441, %v3002, %v3130
      %v3450 = vsel %vm3441, %v3004, %v3132
      %v3451 = vsel %vm3441, %v3006, %v3134
      %v3452 = vsel %vm3441, %v3008, %v3136
      %v3453 = vsel %vm3441, %v3010, %v3138
      %v3454 = vsel %vm3441, %v3012, %v3140
      %v3455 = vsel %vm3441, %v3014, %v3142
      %v3456 = vsel %vm3441, %v3016, %v3144
      %v3457 = vsel %vm3441, %v3018, %v3146
      %v3458 = vsel %vm3441, %v3020, %v3148
      %v3459 = vsel %vm3441, %v3022, %v3150
      %v3460 = vsel %vm3441, %v3024, %v3152
      %v3461 = vsel %vm3441, %v3026, %v3154
      %v3462 = vsel %vm3441, %v3028, %v3156
      %v3463 = vsel %vm3441, %v3030, %v3158
      %v3464 = vsel %vm3441, %v3032, %v3160
      %v3465 = vsel %vm3441, %v3034, %v3162
      %v3466 = vsel %vm3441, %v3036, %v3164
      %v3467 = vsel %vm3441, %v3038, %v3166
      %v3468 = vsel %vm3441, %v3040, %v3168
      %v3469 = vsel %vm3441, %v3042, %v3170
      %v3470 = vsel %vm3441, %v3044, %v3172
      %v3471 = vsel %vm3441, %v3046, %v3174
      %v3472 = vsel %vm3441, %v3048, %v3176
      %v3473 = vsel %vm3441, %v3050, %v3178
      %v3474 = vpack.c.bf16 %v3278, %v3277
      %v3475 = vpack.c.bf16 %v3410, %v3409
      %v3476 = vpack.c.bf16 %v3443, %v3442
      %v3477 = vpack.c.bf16 %v3280, %v3279
      %v3478 = vpack.c.bf16 %v3412, %v3411
      %v3479 = vpack.c.bf16 %v3445, %v3444
      %v3480 = vpack.c.bf16 %v3282, %v3281
      %v3481 = vpack.c.bf16 %v3414, %v3413
      %v3482 = vpack.c.bf16 %v3447, %v3446
      %v3483 = vpack.c.bf16 %v3284, %v3283
      %v3484 = vpack.c.bf16 %v3416, %v3415
      %v3485 = vpack.c.bf16 %v3449, %v3448
      %v3486 = vpack.c.bf16 %v3286, %v3285
      %v3487 = vpack.c.bf16 %v3418, %v3417
      %v3488 = vpack.c.bf16 %v3451, %v3450
      %v3489 = vpack.c.bf16 %v3288, %v3287
      %v3490 = vpack.c.bf16 %v3420, %v3419
      %v3491 = vpack.c.bf16 %v3453, %v3452
      %v3492 = vpack.c.bf16 %v3290, %v3289
      %v3493 = vpack.c.bf16 %v3422, %v3421
      %v3494 = vpack.c.bf16 %v3455, %v3454
      %v3495 = vpack.c.bf16 %v3292, %v3291
      %v3496 = vpack.c.bf16 %v3424, %v3423
      %v3497 = vpack.c.bf16 %v3457, %v3456
      %v3498 = vpack.c.bf16 %v3294, %v3293
      %v3499 = vpack.c.bf16 %v3426, %v3425
      %v3500 = vpack.c.bf16 %v3459, %v3458
      %v3501 = vpack.c.bf16 %v3296, %v3295
      %v3502 = vpack.c.bf16 %v3428, %v3427
      %v3503 = vpack.c.bf16 %v3461, %v3460
      %v3504 = vpack.c.bf16 %v3298, %v3297
      %v3505 = vpack.c.bf16 %v3430, %v3429
      %v3506 = vpack.c.bf16 %v3463, %v3462
      %v3507 = vpack.c.bf16 %v3300, %v3299
      %v3508 = vpack.c.bf16 %v3432, %v3431
      %v3509 = vpack.c.bf16 %v3465, %v3464
      %v3510 = vpack.c.bf16 %v3302, %v3301
      %v3511 = vpack.c.bf16 %v3434, %v3433
      %v3512 = vpack.c.bf16 %v3467, %v3466
      %v3513 = vpack.c.bf16 %v3304, %v3303
      %v3514 = vpack.c.bf16 %v3436, %v3435
      %v3515 = vpack.c.bf16 %v3469, %v3468
      %v3516 = vpack.c.bf16 %v3306, %v3305
      %v3517 = vpack.c.bf16 %v3438, %v3437
      %v3518 = vpack.c.bf16 %v3471, %v3470
      %v3519 = vpack.c.bf16 %v3308, %v3307
      %v3520 = vpack.c.bf16 %v3440, %v3439
      %v3521 = vpack.c.bf16 %v3473, %v3472
      %v3522 = vld [vmem:[%s3] sm:$0xf]
      %v3523 = vld [vmem:[%s3 + $0x4] sm:$0xf]
      %v3524 = vld [vmem:[%s3 + $0x8] sm:$0xf]
      %v3525 = vld [vmem:[%s3 + $0xc] sm:$0xf]
      %v3526 = vld [vmem:[%s3 + $0x10] sm:$0xf]
      %v3527 = vld [vmem:[%s3 + $0x14] sm:$0xf]
      %v3528 = vld [vmem:[%s3 + $0x18] sm:$0xf]
      %v3529 = vld [vmem:[%s3 + $0x1c] sm:$0xf]
      %v3530 = vld [vmem:[%s3 + $0x20] sm:$0xf]
      %v3531 = vld [vmem:[%s3 + $0x24] sm:$0xf]
      %v3532 = vld [vmem:[%s3 + $0x28] sm:$0xf]
      %v3533 = vld [vmem:[%s3 + $0x2c] sm:$0xf]
      %v3534 = vld [vmem:[%s3 + $0x30] sm:$0xf]
      %v3535 = vld [vmem:[%s3 + $0x34] sm:$0xf]
      %v3536 = vld [vmem:[%s3 + $0x38] sm:$0xf]
      %v3537 = vld [vmem:[%s3 + $0x3c] sm:$0xf]
      %v3538 = vld [vmem:[%s3 + $0x40] sm:$0xf]
      %v3539 = vld [vmem:[%s3 + $0x44] sm:$0xf]
      %v3540 = vld [vmem:[%s3 + $0x48] sm:$0xf]
      %v3541 = vld [vmem:[%s3 + $0x4c] sm:$0xf]
      %v3542 = vld [vmem:[%s3 + $0x50] sm:$0xf]
      %v3543 = vld [vmem:[%s3 + $0x54] sm:$0xf]
      %v3544 = vld [vmem:[%s3 + $0x58] sm:$0xf]
      %v3545 = vld [vmem:[%s3 + $0x5c] sm:$0xf]
      %v3546 = vld [vmem:[%s3 + $0x60] sm:$0xf]
      %v3547 = vld [vmem:[%s3 + $0x64] sm:$0xf]
      %v3548 = vld [vmem:[%s3 + $0x68] sm:$0xf]
      %v3549 = vld [vmem:[%s3 + $0x6c] sm:$0xf]
      %v3550 = vld [vmem:[%s3 + $0x70] sm:$0xf]
      %v3551 = vld [vmem:[%s3 + $0x74] sm:$0xf]
      %v3552 = vld [vmem:[%s3 + $0x78] sm:$0xf]
      %v3553 = vld [vmem:[%s3 + $0x7c] sm:$0xf]
      %v3554 = vld [vmem:[%s3 + $0x80] sm:$0xf]
      %v3555 = vld [vmem:[%s3 + $0x84] sm:$0xf]
      %v3556 = vld [vmem:[%s3 + $0x88] sm:$0xf]
      %v3557 = vld [vmem:[%s3 + $0x8c] sm:$0xf]
      %v3558 = vld [vmem:[%s3 + $0x90] sm:$0xf]
      %v3559 = vld [vmem:[%s3 + $0x94] sm:$0xf]
      %v3560 = vld [vmem:[%s3 + $0x98] sm:$0xf]
      %v3561 = vld [vmem:[%s3 + $0x9c] sm:$0xf]
      %v3562 = vld [vmem:[%s3 + $0xa0] sm:$0x3]
      %v3563 = vld [vmem:[%s4] sm:$0x1]
      %v3565 = vlaneseq
      %v3566 = vshrl.u32 %v3565, 7
      %v3567 = vsub.s32 0, %v3566
      %v3568 = vrot.slane %v3563, %v3567
      %v3611 = vunpack.c.l.b16 %v3522
      %v3612 = vunpack.c.l.b16 %v3523
      %v3613 = vunpack.c.l.b16 %v3524
      %v3614 = vunpack.c.l.b16 %v3525
      %v3615 = vunpack.c.l.b16 %v3526
      %v3616 = vunpack.c.l.b16 %v3527
      %v3617 = vunpack.c.l.b16 %v3528
      %v3618 = vunpack.c.l.b16 %v3529
      %v3619 = vunpack.c.l.b16 %v3530
      %v3620 = vunpack.c.l.b16 %v3531
      %v3621 = vunpack.c.l.b16 %v3532
      %v3622 = vunpack.c.l.b16 %v3533
      %v3623 = vunpack.c.l.b16 %v3534
      %v3624 = vunpack.c.l.b16 %v3535
      %v3625 = vunpack.c.l.b16 %v3536
      %v3626 = vunpack.c.l.b16 %v3537
      %v3627 = vunpack.c.l.b16 %v3538
      %v3628 = vunpack.c.l.b16 %v3539
      %v3629 = vunpack.c.l.b16 %v3540
      %v3630 = vunpack.c.l.b16 %v3541
      %v3631 = vunpack.c.l.b16 %v3542
      %v3632 = vunpack.c.l.b16 %v3543
      %v3633 = vunpack.c.l.b16 %v3544
      %v3634 = vunpack.c.l.b16 %v3545
      %v3635 = vunpack.c.l.b16 %v3546
      %v3636 = vunpack.c.l.b16 %v3547
      %v3637 = vunpack.c.l.b16 %v3548
      %v3638 = vunpack.c.l.b16 %v3549
      %v3639 = vunpack.c.l.b16 %v3550
      %v3640 = vunpack.c.l.b16 %v3551
      %v3641 = vunpack.c.l.b16 %v3552
      %v3642 = vunpack.c.l.b16 %v3553
      %v3643 = vunpack.c.l.b16 %v3554
      %v3644 = vunpack.c.l.b16 %v3555
      %v3645 = vunpack.c.l.b16 %v3556
      %v3646 = vunpack.c.l.b16 %v3557
      %v3647 = vunpack.c.l.b16 %v3558
      %v3648 = vunpack.c.l.b16 %v3559
      %v3649 = vunpack.c.l.b16 %v3560
      %v3650 = vunpack.c.l.b16 %v3561
      %v3651 = vunpack.c.l.b16 %v3562
      %v3652 = vpack.c.b16 %v3612, %v3611
      %v3653 = vpack.c.b16 %v3614, %v3613
      %v3654 = vpack.c.b16 %v3616, %v3615
      %v3655 = vpack.c.b16 %v3618, %v3617
      %v3656 = vpack.c.b16 %v3620, %v3619
      %v3657 = vpack.c.b16 %v3622, %v3621
      %v3658 = vpack.c.b16 %v3624, %v3623
      %v3659 = vpack.c.b16 %v3626, %v3625
      %v3660 = vpack.c.b16 %v3628, %v3627
      %v3661 = vpack.c.b16 %v3630, %v3629
      %v3662 = vpack.c.b16 %v3632, %v3631
      %v3663 = vpack.c.b16 %v3634, %v3633
      %v3664 = vpack.c.b16 %v3636, %v3635
      %v3665 = vpack.c.b16 %v3638, %v3637
      %v3666 = vpack.c.b16 %v3640, %v3639
      %v3667 = vpack.c.b16 %v3642, %v3641
      %v3668 = vpack.c.b16 %v3644, %v3643
      %v3669 = vpack.c.b16 %v3646, %v3645
      %v3670 = vpack.c.b16 %v3648, %v3647
      %v3671 = vpack.c.b16 %v3650, %v3649
      %v3672 = vpack.c.b16 %v3651, %v3651
      %vm3693 = vcmask 556032
      %v3695 = vsel %vm3693, %v3476, 0
      %v3698 = vsel %vm3693, %v3479, 0
      %v3701 = vsel %vm3693, %v3482, 0
      %v3704 = vsel %vm3693, %v3485, 0
      %v3707 = vsel %vm3693, %v3488, 0
      %v3710 = vsel %vm3693, %v3491, 0
      %v3713 = vsel %vm3693, %v3494, 0
      %v3716 = vsel %vm3693, %v3497, 0
      %v3719 = vsel %vm3693, %v3500, 0
      %v3722 = vsel %vm3693, %v3503, 0
      %v3725 = vsel %vm3693, %v3506, 0
      %v3728 = vsel %vm3693, %v3509, 0
      %v3731 = vsel %vm3693, %v3512, 0
      %v3734 = vsel %vm3693, %v3515, 0
      %v3737 = vsel %vm3693, %v3518, 0
      %v3740 = vsel %vm3693, %v3521, 0
      %vm3742 = vcmask 1041408
      %v3744 = vsel %vm3742, %v3672, 0
      %3746 = vmatprep.subr.bf16.mxu0 0
      %3747 = vmatpush1.bf16.msra.mxu0 %v3652
      %3748 = vmatprep.subr.bf16.mxu0 0
      %3749 = vmatpush1.bf16.msra.mxu0 %v3653
      %3750 = vmatprep.subr.bf16.mxu0 0
      %3751 = vmatpush1.bf16.msra.mxu0 %v3654
      %3752 = vmatprep.subr.bf16.mxu0 0
      %3753 = vmatpush1.bf16.msra.mxu0 %v3655
      %3754 = vmatprep.subr.bf16.mxu0 0
      %3755 = vmatpush1.bf16.msra.mxu0 %v3656
      %3756 = vmatprep.subr.bf16.mxu0 0
      %3757 = vmatpush1.bf16.msra.mxu0 %v3657
      %3758 = vmatprep.subr.bf16.mxu0 0
      %3759 = vmatpush1.bf16.msra.mxu0 %v3658
      %3760 = vmatprep.subr.bf16.mxu0 0
      %3761 = vmatpush1.bf16.msra.mxu0 %v3659
      %3762 = vmatprep.subr.bf16.mxu0 0
      %3763 = vmatpush1.bf16.msra.mxu0 %v3660
      %3764 = vmatprep.subr.bf16.mxu0 0
      %3765 = vmatpush1.bf16.msra.mxu0 %v3661
      %3766 = vmatprep.subr.bf16.mxu0 0
      %3767 = vmatpush1.bf16.msra.mxu0 %v3662
      %3768 = vmatprep.subr.bf16.mxu0 0
      %3769 = vmatpush1.bf16.msra.mxu0 %v3663
      %3770 = vmatprep.subr.bf16.mxu0 0
      %3771 = vmatpush1.bf16.msra.mxu0 %v3664
      %3772 = vmatprep.subr.bf16.mxu0 0
      %3773 = vmatpush1.bf16.msra.mxu0 %v3665
      %3774 = vmatprep.subr.bf16.mxu0 0
      %3775 = vmatpush1.bf16.msra.mxu0 %v3666
      %3776 = vmatprep.subr.bf16.mxu0 0
      %3777 = vmatpush1.bf16.msra.mxu0 %v3667
      %3778 = vmatprep.mubr.bf16.mxu0 %v3475
      %3779 = vmatmul.mubr.bf16.gmra.mrb[0].mxu0 %v3474
      %v3780 = vpop.f32.mrb[0].mxu0
      %v3781 = vadd.f32 %v3568, %v3780
      %v3782 = vpop.f32.mrb[0].mxu0
      %v3783 = vpop.f32.mrb[0].mxu0
      %v3784 = vadd.f32 %v3568, %v3783
      %v3785 = vpop.f32.mrb[0].mxu0
      %3786 = vmatprep.mubr.bf16.mxu0 %v3478
      %3787 = vmatmul.mubr.bf16.gmra.mrb[0].mxu0 %v3477
      %v3788 = vpop.f32.mrb[0].mxu0
      %v3789 = vadd.f32 %v3568, %v3788
      %v3790 = vpop.f32.mrb[0].mxu0
      %v3791 = vpop.f32.mrb[0].mxu0
      %v3792 = vadd.f32 %v3568, %v3791
      %v3793 = vpop.f32.mrb[0].mxu0
      %3794 = vmatprep.mubr.bf16.mxu0 %v3481
      %3795 = vmatmul.mubr.bf16.gmra.mrb[0].mxu0 %v3480
      %v3796 = vpop.f32.mrb[0].mxu0
      %v3797 = vadd.f32 %v3568, %v3796
      %v3798 = vpop.f32.mrb[0].mxu0
      %v3799 = vpop.f32.mrb[0].mxu0
      %v3800 = vadd.f32 %v3568, %v3799
      %v3801 = vpop.f32.mrb[0].mxu0
      %3802 = vmatprep.mubr.bf16.mxu0 %v3484
      %3803 = vmatmul.mubr.bf16.gmra.mrb[0].mxu0 %v3483
      %v3804 = vpop.f32.mrb[0].mxu0
      %v3805 = vadd.f32 %v3568, %v3804
      %v3806 = vpop.f32.mrb[0].mxu0
      %v3807 = vpop.f32.mrb[0].mxu0
      %v3808 = vadd.f32 %v3568, %v3807
      %v3809 = vpop.f32.mrb[0].mxu0
      %3810 = vmatprep.mubr.bf16.mxu0 %v3487
      %3811 = vmatmul.mubr.bf16.gmra.mrb[0].mxu0 %v3486
      %v3812 = vpop.f32.mrb[0].mxu0
      %v3813 = vadd.f32 %v3568, %v3812
      %v3814 = vpop.f32.mrb[0].mxu0
      %v3815 = vpop.f32.mrb[0].mxu0
      %v3816 = vadd.f32 %v3568, %v3815
      %v3817 = vpop.f32.mrb[0].mxu0
      %3818 = vmatprep.mubr.bf16.mxu0 %v3490
      %3819 = vmatmul.mubr.bf16.gmra.mrb[0].mxu0 %v3489
      %v3820 = vpop.f32.mrb[0].mxu0
      %v3821 = vadd.f32 %v3568, %v3820
      %v3822 = vpop.f32.mrb[0].mxu0
      %v3823 = vpop.f32.mrb[0].mxu0
      %v3824 = vadd.f32 %v3568, %v3823
      %v3825 = vpop.f32.mrb[0].mxu0
      %3826 = vmatprep.mubr.bf16.mxu0 %v3493
      %3827 = vmatmul.mubr.bf16.gmra.mrb[0].mxu0 %v3492
      %v3828 = vpop.f32.mrb[0].mxu0
      %v3829 = vadd.f32 %v3568, %v3828
      %v3830 = vpop.f32.mrb[0].mxu0
      %v3831 = vpop.f32.mrb[0].mxu0
      %v3832 = vadd.f32 %v3568, %v3831
      %v3833 = vpop.f32.mrb[0].mxu0
      %3834 = vmatprep.mubr.bf16.mxu0 %v3496
      %3835 = vmatmul.mubr.bf16.gmra.mrb[0].mxu0 %v3495
      %v3836 = vpop.f32.mrb[0].mxu0
      %v3837 = vadd.f32 %v3568, %v3836
      %v3838 = vpop.f32.mrb[0].mxu0
      %v3839 = vpop.f32.mrb[0].mxu0
      %v3840 = vadd.f32 %v3568, %v3839
      %v3841 = vpop.f32.mrb[0].mxu0
      %3842 = vmatprep.mubr.bf16.mxu0 %v3499
      %3843 = vmatmul.mubr.bf16.gmra.mrb[0].mxu0 %v3498
      %v3844 = vpop.f32.mrb[0].mxu0
      %v3845 = vadd.f32 %v3568, %v3844
      %v3846 = vpop.f32.mrb[0].mxu0
      %v3847 = vpop.f32.mrb[0].mxu0
      %v3848 = vadd.f32 %v3568, %v3847
      %v3849 = vpop.f32.mrb[0].mxu0
      %3850 = vmatprep.mubr.bf16.mxu0 %v3502
      %3851 = vmatmul.mubr.bf16.gmra.mrb[0].mxu0 %v3501
      %v3852 = vpop.f32.mrb[0].mxu0
      %v3853 = vadd.f32 %v3568, %v3852
      %v3854 = vpop.f32.mrb[0].mxu0
      %v3855 = vpop.f32.mrb[0].mxu0
      %v3856 = vadd.f32 %v3568, %v3855
      %v3857 = vpop.f32.mrb[0].mxu0
      %3858 = vmatprep.mubr.bf16.mxu0 %v3505
      %3859 = vmatmul.mubr.bf16.gmra.mrb[0].mxu0 %v3504
      %v3860 = vpop.f32.mrb[0].mxu0
      %v3861 = vadd.f32 %v3568, %v3860
      %v3862 = vpop.f32.mrb[0].mxu0
      %v3863 = vpop.f32.mrb[0].mxu0
      %v3864 = vadd.f32 %v3568, %v3863
      %v3865 = vpop.f32.mrb[0].mxu0
      %3866 = vmatprep.mubr.bf16.mxu0 %v3508
      %3867 = vmatmul.mubr.bf16.gmra.mrb[0].mxu0 %v3507
      %v3868 = vpop.f32.mrb[0].mxu0
      %v3869 = vadd.f32 %v3568, %v3868
      %v3870 = vpop.f32.mrb[0].mxu0
      %v3871 = vpop.f32.mrb[0].mxu0
      %v3872 = vadd.f32 %v3568, %v3871
      %v3873 = vpop.f32.mrb[0].mxu0
      %3874 = vmatprep.mubr.bf16.mxu0 %v3511
      %3875 = vmatmul.mubr.bf16.gmra.mrb[0].mxu0 %v3510
      %v3876 = vpop.f32.mrb[0].mxu0
      %v3877 = vadd.f32 %v3568, %v3876
      %v3878 = vpop.f32.mrb[0].mxu0
      %v3879 = vpop.f32.mrb[0].mxu0
      %v3880 = vadd.f32 %v3568, %v3879
      %v3881 = vpop.f32.mrb[0].mxu0
      %3882 = vmatprep.mubr.bf16.mxu0 %v3514
      %3883 = vmatmul.mubr.bf16.gmra.mrb[0].mxu0 %v3513
      %v3884 = vpop.f32.mrb[0].mxu0
      %v3885 = vadd.f32 %v3568, %v3884
      %v3886 = vpop.f32.mrb[0].mxu0
      %v3887 = vpop.f32.mrb[0].mxu0
      %v3888 = vadd.f32 %v3568, %v3887
      %v3889 = vpop.f32.mrb[0].mxu0
      %3890 = vmatprep.mubr.bf16.mxu0 %v3517
      %3891 = vmatmul.mubr.bf16.gmra.mrb[0].mxu0 %v3516
      %v3892 = vpop.f32.mrb[0].mxu0
      %v3893 = vadd.f32 %v3568, %v3892
      %v3894 = vpop.f32.mrb[0].mxu0
      %v3895 = vpop.f32.mrb[0].mxu0
      %v3896 = vadd.f32 %v3568, %v3895
      %v3897 = vpop.f32.mrb[0].mxu0
      %3898 = vmatprep.mubr.bf16.mxu0 %v3520
      %3899 = vmatmul.mubr.bf16.gmra.mrb[0].mxu0 %v3519
      %v3900 = vpop.f32.mrb[0].mxu0
      %v3901 = vadd.f32 %v3568, %v3900
      %v3902 = vpop.f32.mrb[0].mxu0
      %v3903 = vpop.f32.mrb[0].mxu0
      %v3904 = vadd.f32 %v3568, %v3903
      %v3905 = vpop.f32.mrb[0].mxu0
      %3906 = vdwg.mxu0
      %3907 = vmatprep.subr.bf16.mxu0 0
      %3908 = vmatpush1.bf16.msra.mxu0 %v3668
      %3909 = vmatprep.subr.bf16.mxu0 0
      %3910 = vmatpush1.bf16.msra.mxu0 %v3669
      %3911 = vmatprep.subr.bf16.mxu0 0
      %3912 = vmatpush1.bf16.msra.mxu0 %v3670
      %3913 = vmatprep.subr.bf16.mxu0 0
      %3914 = vmatpush1.bf16.msra.mxu0 %v3671
      %3915 = vmatprep.subr.bf16.mxu0 0
      %3916 = vmatpush1.bf16.msra.mxu0 %v3744
      %3917 = vmatprep.subr.bf16.mxu0 0
      %3918 = vmatpush1.bf16.msra.mxu0 0
      %3919 = vmatprep.subr.bf16.mxu0 0
      %3920 = vmatpush1.bf16.msra.mxu0 0
      %3921 = vmatprep.subr.bf16.mxu0 0
      %3922 = vmatpush1.bf16.msra.mxu0 0
      %3923 = vmatprep.subr.bf16.mxu0 0
      %3924 = vmatpush1.bf16.msra.mxu0 0
      %3925 = vmatprep.subr.bf16.mxu0 0
      %3926 = vmatpush1.bf16.msra.mxu0 0
      %3927 = vmatprep.subr.bf16.mxu0 0
      %3928 = vmatpush1.bf16.msra.mxu0 0
      %3929 = vmatprep.subr.bf16.mxu0 0
      %3930 = vmatpush1.bf16.msra.mxu0 0
      %3931 = vmatprep.subr.bf16.mxu0 0
      %3932 = vmatpush1.bf16.msra.mxu0 0
      %3933 = vmatprep.subr.bf16.mxu0 0
      %3934 = vmatpush1.bf16.msra.mxu0 0
      %3935 = vmatprep.subr.bf16.mxu0 0
      %3936 = vmatpush1.bf16.msra.mxu0 0
      %3937 = vmatprep.subr.bf16.mxu0 0
      %3938 = vmatpush1.bf16.msra.mxu0 0
      %3939 = vmatprep.mubr.bf16.mxu0 0
      %3940 = vmatmul.mubr.bf16.gmra.mrb[0].mxu0 %v3695
      %v3941 = vpop.f32.mrb[0].mxu0
      %v3942 = vadd.f32 %v3781, %v3941
      %v3943 = vpop.f32.mrb[0].mxu0
      %v3944 = vpop.f32.mrb[0].mxu0
      %v3945 = vadd.f32 %v3784, %v3944
      %v3946 = vpop.f32.mrb[0].mxu0
      %3947 = vmatprep.mubr.bf16.mxu0 0
      %3948 = vmatmul.mubr.bf16.gmra.mrb[0].mxu0 %v3698
      %v3949 = vpop.f32.mrb[0].mxu0
      %v3950 = vadd.f32 %v3789, %v3949
      %v3951 = vpop.f32.mrb[0].mxu0
      %v3952 = vpop.f32.mrb[0].mxu0
      %v3953 = vadd.f32 %v3792, %v3952
      %v3954 = vpop.f32.mrb[0].mxu0
      %3955 = vmatprep.mubr.bf16.mxu0 0
      %3956 = vmatmul.mubr.bf16.gmra.mrb[0].mxu0 %v3701
      %v3957 = vpop.f32.mrb[0].mxu0
      %v3958 = vadd.f32 %v3797, %v3957
      %v3959 = vpop.f32.mrb[0].mxu0
      %v3960 = vpop.f32.mrb[0].mxu0
      %v3961 = vadd.f32 %v3800, %v3960
      %v3962 = vpop.f32.mrb[0].mxu0
      %3963 = vmatprep.mubr.bf16.mxu0 0
      %3964 = vmatmul.mubr.bf16.gmra.mrb[0].mxu0 %v3704
      %v3965 = vpop.f32.mrb[0].mxu0
      %v3966 = vadd.f32 %v3805, %v3965
      %v3967 = vpop.f32.mrb[0].mxu0
      %v3968 = vpop.f32.mrb[0].mxu0
      %v3969 = vadd.f32 %v3808, %v3968
      %v3970 = vpop.f32.mrb[0].mxu0
      %3971 = vmatprep.mubr.bf16.mxu0 0
      %3972 = vmatmul.mubr.bf16.gmra.mrb[0].mxu0 %v3707
      %v3973 = vpop.f32.mrb[0].mxu0
      %v3974 = vadd.f32 %v3813, %v3973
      %v3975 = vpop.f32.mrb[0].mxu0
      %v3976 = vpop.f32.mrb[0].mxu0
      %v3977 = vadd.f32 %v3816, %v3976
      %v3978 = vpop.f32.mrb[0].mxu0
      %3979 = vmatprep.mubr.bf16.mxu0 0
      %3980 = vmatmul.mubr.bf16.gmra.mrb[0].mxu0 %v3710
      %v3981 = vpop.f32.mrb[0].mxu0
      %v3982 = vadd.f32 %v3821, %v3981
      %v3983 = vpop.f32.mrb[0].mxu0
      %v3984 = vpop.f32.mrb[0].mxu0
      %v3985 = vadd.f32 %v3824, %v3984
      %v3986 = vpop.f32.mrb[0].mxu0
      %3987 = vmatprep.mubr.bf16.mxu0 0
      %3988 = vmatmul.mubr.bf16.gmra.mrb[0].mxu0 %v3713
      %v3989 = vpop.f32.mrb[0].mxu0
      %v3990 = vadd.f32 %v3829, %v3989
      %v3991 = vpop.f32.mrb[0].mxu0
      %v3992 = vpop.f32.mrb[0].mxu0
      %v3993 = vadd.f32 %v3832, %v3992
      %v3994 = vpop.f32.mrb[0].mxu0
      %3995 = vmatprep.mubr.bf16.mxu0 0
      %3996 = vmatmul.mubr.bf16.gmra.mrb[0].mxu0 %v3716
      %v3997 = vpop.f32.mrb[0].mxu0
      %v3998 = vadd.f32 %v3837, %v3997
      %v3999 = vpop.f32.mrb[0].mxu0
      %v4000 = vpop.f32.mrb[0].mxu0
      %v4001 = vadd.f32 %v3840, %v4000
      %v4002 = vpop.f32.mrb[0].mxu0
      %4003 = vmatprep.mubr.bf16.mxu0 0
      %4004 = vmatmul.mubr.bf16.gmra.mrb[0].mxu0 %v3719
      %v4005 = vpop.f32.mrb[0].mxu0
      %v4006 = vadd.f32 %v3845, %v4005
      %v4007 = vpop.f32.mrb[0].mxu0
      %v4008 = vpop.f32.mrb[0].mxu0
      %v4009 = vadd.f32 %v3848, %v4008
      %v4010 = vpop.f32.mrb[0].mxu0
      %4011 = vmatprep.mubr.bf16.mxu0 0
      %4012 = vmatmul.mubr.bf16.gmra.mrb[0].mxu0 %v3722
      %v4013 = vpop.f32.mrb[0].mxu0
      %v4014 = vadd.f32 %v3853, %v4013
      %v4015 = vpop.f32.mrb[0].mxu0
      %v4016 = vpop.f32.mrb[0].mxu0
      %v4017 = vadd.f32 %v3856, %v4016
      %v4018 = vpop.f32.mrb[0].mxu0
      %4019 = vmatprep.mubr.bf16.mxu0 0
      %4020 = vmatmul.mubr.bf16.gmra.mrb[0].mxu0 %v3725
      %v4021 = vpop.f32.mrb[0].mxu0
      %v4022 = vadd.f32 %v3861, %v4021
      %v4023 = vpop.f32.mrb[0].mxu0
      %v4024 = vpop.f32.mrb[0].mxu0
      %v4025 = vadd.f32 %v3864, %v4024
      %v4026 = vpop.f32.mrb[0].mxu0
      %4027 = vmatprep.mubr.bf16.mxu0 0
      %4028 = vmatmul.mubr.bf16.gmra.mrb[0].mxu0 %v3728
      %v4029 = vpop.f32.mrb[0].mxu0
      %v4030 = vadd.f32 %v3869, %v4029
      %v4031 = vpop.f32.mrb[0].mxu0
      %v4032 = vpop.f32.mrb[0].mxu0
      %v4033 = vadd.f32 %v3872, %v4032
      %v4034 = vpop.f32.mrb[0].mxu0
      %4035 = vmatprep.mubr.bf16.mxu0 0
      %4036 = vmatmul.mubr.bf16.gmra.mrb[0].mxu0 %v3731
      %v4037 = vpop.f32.mrb[0].mxu0
      %v4038 = vadd.f32 %v3877, %v4037
      %v4039 = vpop.f32.mrb[0].mxu0
      %v4040 = vpop.f32.mrb[0].mxu0
      %v4041 = vadd.f32 %v3880, %v4040
      %v4042 = vpop.f32.mrb[0].mxu0
      %4043 = vmatprep.mubr.bf16.mxu0 0
      %4044 = vmatmul.mubr.bf16.gmra.mrb[0].mxu0 %v3734
      %v4045 = vpop.f32.mrb[0].mxu0
      %v4046 = vadd.f32 %v3885, %v4045
      %v4047 = vpop.f32.mrb[0].mxu0
      %v4048 = vpop.f32.mrb[0].mxu0
      %v4049 = vadd.f32 %v3888, %v4048
      %v4050 = vpop.f32.mrb[0].mxu0
      %4051 = vmatprep.mubr.bf16.mxu0 0
      %4052 = vmatmul.mubr.bf16.gmra.mrb[0].mxu0 %v3737
      %v4053 = vpop.f32.mrb[0].mxu0
      %v4054 = vadd.f32 %v3893, %v4053
      %v4055 = vpop.f32.mrb[0].mxu0
      %v4056 = vpop.f32.mrb[0].mxu0
      %v4057 = vadd.f32 %v3896, %v4056
      %v4058 = vpop.f32.mrb[0].mxu0
      %4059 = vmatprep.mubr.bf16.mxu0 0
      %4060 = vmatmul.mubr.bf16.gmra.mrb[0].mxu0 %v3740
      %v4061 = vpop.f32.mrb[0].mxu0
      %v4062 = vadd.f32 %v3901, %v4061
      %v4063 = vpop.f32.mrb[0].mxu0
      %v4064 = vpop.f32.mrb[0].mxu0
      %v4065 = vadd.f32 %v3904, %v4064
      %v4066 = vpop.f32.mrb[0].mxu0
      %4067 = vdwg.mxu0
      %v4068 = vld [vmem:[%s5] sm:$0x1]
      %v4070 = vlaneseq
      %v4071 = vshrl.u32 %v4070, 7
      %v4072 = vsub.s32 0, %v4071
      %v4073 = vrot.slane %v4068, %v4072
      %v4075 = vmul.f32 %v3942, %v4073
      %v4076 = vmul.f32 %v3945, %v4073
      %v4077 = vmul.f32 %v3950, %v4073
      %v4078 = vmul.f32 %v3953, %v4073
      %v4079 = vmul.f32 %v3958, %v4073
      %v4080 = vmul.f32 %v3961, %v4073
      %v4081 = vmul.f32 %v3966, %v4073
      %v4082 = vmul.f32 %v3969, %v4073
      %v4083 = vmul.f32 %v3974, %v4073
      %v4084 = vmul.f32 %v3977, %v4073
      %v4085 = vmul.f32 %v3982, %v4073
      %v4086 = vmul.f32 %v3985, %v4073
      %v4087 = vmul.f32 %v3990, %v4073
      %v4088 = vmul.f32 %v3993, %v4073
      %v4089 = vmul.f32 %v3998, %v4073
      %v4090 = vmul.f32 %v4001, %v4073
      %v4091 = vmul.f32 %v4006, %v4073
      %v4092 = vmul.f32 %v4009, %v4073
      %v4093 = vmul.f32 %v4014, %v4073
      %v4094 = vmul.f32 %v4017, %v4073
      %v4095 = vmul.f32 %v4022, %v4073
      %v4096 = vmul.f32 %v4025, %v4073
      %v4097 = vmul.f32 %v4030, %v4073
      %v4098 = vmul.f32 %v4033, %v4073
      %v4099 = vmul.f32 %v4038, %v4073
      %v4100 = vmul.f32 %v4041, %v4073
      %v4101 = vmul.f32 %v4046, %v4073
      %v4102 = vmul.f32 %v4049, %v4073
      %v4103 = vmul.f32 %v4054, %v4073
      %v4104 = vmul.f32 %v4057, %v4073
      %v4105 = vmul.f32 %v4062, %v4073
      %v4106 = vmul.f32 %v4065, %v4073
      %v4107 = vld [vmem:[%s6] sm:$0x1]
      %v4109 = vlaneseq
      %v4110 = vshrl.u32 %v4109, 7
      %v4111 = vsub.s32 0, %v4110
      %v4112 = vrot.slane %v4107, %v4111
      %v4114 = vadd.f32 %v4075, %v4112
      %v4115 = vadd.f32 %v4076, %v4112
      %v4116 = vadd.f32 %v4077, %v4112
      %v4117 = vadd.f32 %v4078, %v4112
      %v4118 = vadd.f32 %v4079, %v4112
      %v4119 = vadd.f32 %v4080, %v4112
      %v4120 = vadd.f32 %v4081, %v4112
      %v4121 = vadd.f32 %v4082, %v4112
      %v4122 = vadd.f32 %v4083, %v4112
      %v4123 = vadd.f32 %v4084, %v4112
      %v4124 = vadd.f32 %v4085, %v4112
      %v4125 = vadd.f32 %v4086, %v4112
      %v4126 = vadd.f32 %v4087, %v4112
      %v4127 = vadd.f32 %v4088, %v4112
      %v4128 = vadd.f32 %v4089, %v4112
      %v4129 = vadd.f32 %v4090, %v4112
      %v4130 = vadd.f32 %v4091, %v4112
      %v4131 = vadd.f32 %v4092, %v4112
      %v4132 = vadd.f32 %v4093, %v4112
      %v4133 = vadd.f32 %v4094, %v4112
      %v4134 = vadd.f32 %v4095, %v4112
      %v4135 = vadd.f32 %v4096, %v4112
      %v4136 = vadd.f32 %v4097, %v4112
      %v4137 = vadd.f32 %v4098, %v4112
      %v4138 = vadd.f32 %v4099, %v4112
      %v4139 = vadd.f32 %v4100, %v4112
      %v4140 = vadd.f32 %v4101, %v4112
      %v4141 = vadd.f32 %v4102, %v4112
      %v4142 = vadd.f32 %v4103, %v4112
      %v4143 = vadd.f32 %v4104, %v4112
      %v4144 = vadd.f32 %v4105, %v4112
      %v4145 = vadd.f32 %v4106, %v4112
      %v4146 = vmax.f32 %v4114, 0.0
      %v4147 = vmax.f32 %v4115, 0.0
      %v4148 = vmax.f32 %v4116, 0.0
      %v4149 = vmax.f32 %v4117, 0.0
      %v4150 = vmax.f32 %v4118, 0.0
      %v4151 = vmax.f32 %v4119, 0.0
      %v4152 = vmax.f32 %v4120, 0.0
      %v4153 = vmax.f32 %v4121, 0.0
      %v4154 = vmax.f32 %v4122, 0.0
      %v4155 = vmax.f32 %v4123, 0.0
      %v4156 = vmax.f32 %v4124, 0.0
      %v4157 = vmax.f32 %v4125, 0.0
      %v4158 = vmax.f32 %v4126, 0.0
      %v4159 = vmax.f32 %v4127, 0.0
      %v4160 = vmax.f32 %v4128, 0.0
      %v4161 = vmax.f32 %v4129, 0.0
      %v4162 = vmax.f32 %v4130, 0.0
      %v4163 = vmax.f32 %v4131, 0.0
      %v4164 = vmax.f32 %v4132, 0.0
      %v4165 = vmax.f32 %v4133, 0.0
      %v4166 = vmax.f32 %v4134, 0.0
      %v4167 = vmax.f32 %v4135, 0.0
      %v4168 = vmax.f32 %v4136, 0.0
      %v4169 = vmax.f32 %v4137, 0.0
      %v4170 = vmax.f32 %v4138, 0.0
      %v4171 = vmax.f32 %v4139, 0.0
      %v4172 = vmax.f32 %v4140, 0.0
      %v4173 = vmax.f32 %v4141, 0.0
      %v4174 = vmax.f32 %v4142, 0.0
      %v4175 = vmax.f32 %v4143, 0.0
      %v4176 = vmax.f32 %v4144, 0.0
      %v4177 = vmax.f32 %v4145, 0.0
      %4178 = vst [vmem:[%s280] sm:$0xff] %v4146
      %4179 = vst [vmem:[%s280 + $0x8] sm:$0xff] %v4147
      %4180 = vst [vmem:[%s280 + $0x10] sm:$0xff] %v4148
      %4181 = vst [vmem:[%s280 + $0x18] sm:$0xff] %v4149
      %4182 = vst [vmem:[%s280 + $0x20] sm:$0xff] %v4150
      %4183 = vst [vmem:[%s280 + $0x28] sm:$0xff] %v4151
      %4184 = vst [vmem:[%s280 + $0x30] sm:$0xff] %v4152
      %4185 = vst [vmem:[%s280 + $0x38] sm:$0xff] %v4153
      %4186 = vst [vmem:[%s280 + $0x40] sm:$0xff] %v4154
      %4187 = vst [vmem:[%s280 + $0x48] sm:$0xff] %v4155
      %4188 = vst [vmem:[%s280 + $0x50] sm:$0xff] %v4156
      %4189 = vst [vmem:[%s280 + $0x58] sm:$0xff] %v4157
      %4190 = vst [vmem:[%s280 + $0x60] sm:$0xff] %v4158
      %4191 = vst [vmem:[%s280 + $0x68] sm:$0xff] %v4159
      %4192 = vst [vmem:[%s280 + $0x70] sm:$0xff] %v4160
      %4193 = vst [vmem:[%s280 + $0x78] sm:$0xff] %v4161
      %4194 = vst [vmem:[%s280 + $0x80] sm:$0xff] %v4162
      %4195 = vst [vmem:[%s280 + $0x88] sm:$0xff] %v4163
      %4196 = vst [vmem:[%s280 + $0x90] sm:$0xff] %v4164
      %4197 = vst [vmem:[%s280 + $0x98] sm:$0xff] %v4165
      %4198 = vst [vmem:[%s280 + $0xa0] sm:$0xff] %v4166
      %4199 = vst [vmem:[%s280 + $0xa8] sm:$0xff] %v4167
      %4200 = vst [vmem:[%s280 + $0xb0] sm:$0xff] %v4168
      %4201 = vst [vmem:[%s280 + $0xb8] sm:$0xff] %v4169
      %4202 = vst [vmem:[%s280 + $0xc0] sm:$0xff] %v4170
      %4203 = vst [vmem:[%s280 + $0xc8] sm:$0xff] %v4171
      %4204 = vst [vmem:[%s280 + $0xd0] sm:$0xff] %v4172
      %4205 = vst [vmem:[%s280 + $0xd8] sm:$0xff] %v4173
      %4206 = vst [vmem:[%s280 + $0xe0] sm:$0xff] %v4174
      %4207 = vst [vmem:[%s280 + $0xe8] sm:$0xff] %v4175
      %4208 = vst [vmem:[%s280 + $0xf0] sm:$0xff] %v4176
      %4209 = vst [vmem:[%s280 + $0xf8] sm:$0xff] %v4177
      %s4210 = smul.u32 32, %s18
      %p4211 = scmp.lt.s32.totalorder %s4210, 63
      %s4212 = scalar_select %p4211, %s4210, 63
      %s4213 = smul.addr %s4212, 8
      %s4214 = scalar_lea.vmem %s7, %s4213
      // Predicated region
      $region49: #{double_conv_forward.2} parent=47 // pred_check
        %p4215 = pneg %p188
      $region50: #{double_conv_forward.2} parent=47 // pred_check_branch
        %4217 = sbr.rel (%p4215) target = $region52
      $region51: #{double_conv_forward.2} parent=47 // pred_region
        %s4218 = smul.u32 32, %s18
      $region52: #{double_conv_forward.2} parent=47 // pred_fallthru
        _
    $region48: #{double_conv_forward.2} parent=5 // pred_fallthru
      _
    %p4219 = scmp.le.s32.totalorder 2, %s13
    // Predicated region
    $region53: #{double_conv_forward.2} parent=5 // pred_check
      %p4220 = pneg %p4219
    $region54: #{double_conv_forward.2} parent=5 // pred_check_branch
      %4222 = sbr.rel (%p4220) target = $region56
    $region55: #{double_conv_forward.2} parent=5 // pred_region
      %s4223 = ssub.s32 %s13, 2
      // Predicated region
      $region57: #{double_conv_forward.2} parent=55 // pred_check
        %p4224 = pneg %p194
      $region58: #{double_conv_forward.2} parent=55 // pred_check_branch
        %4226 = sbr.rel (%p4224) target = $region60
      $region59: #{double_conv_forward.2} parent=55 // pred_region
        %s4227 = smul.u32 32, %s19
        %p4228 = scmp.lt.s32.totalorder %s4227, 63
        %s4229 = scalar_select %p4228, %s4227, 63
        %s4230 = smul.addr %s4229, 8
        %s4231 = scalar_lea.vmem %s7, %s4230
      $region60: #{double_conv_forward.2} parent=55 // pred_fallthru
        _
    $region56: #{double_conv_forward.2} parent=5 // pred_fallthru
      _
  $region6: #{double_conv_forward.2} parent=0 // loop_footer
    %s17 = sadd.s32 1, %s13
  $region7: #{double_conv_forward.2} parent=0 // loop_footer_branch
    %12 = sbr.rel target = $region3
  $region8: #{double_conv_forward.2} parent=0 // loop_exit
    _

</llo_original>
